<compile_context>
chip_gen: v7x
topology: tpu7x:2x2x1
jax: 0.10.0
libtpu: 0.0.40
codegen_flags: <defaults>
</compile_context>

<pallas_src>
import functools

import jax
import jax.numpy as jnp
import numpy as np
from jax.experimental import pallas as pl
from jax.experimental.pallas import tpu as pltpu


def _round_up(x, m):
    return ((x + m - 1) // m) * m


def _cnn_lm_kernel(x_ref, c0w_ref, c0b_ref, cw_ref, cb_ref, prelu_ref,
                   f1w_ref, f1b_ref, f2w_ref, f2b_ref, out_ref,
                   *, bb, seq_len, fuse_taps):
    """One batch block per grid step: fused-tap conv stack + PReLU + MLP head.

    x_ref holds a (seq_len*bb, E) bf16 slab with row index = t*bb + b, so the
    two conv taps are simply the (static, sublane-aligned) row ranges
    [0, (T-1)*bb) and [bb, T*bb).
    """
    compute_dtype = x_ref.dtype

    def conv_prelu(h, t_len, w, b, alpha):
        m = (t_len - 1) * bb
        h_lo = h[:m, :]                       # tap at time t
        h_hi = h[bb:bb + m, :]                # tap at time t + 1
        if fuse_taps:
            # Single K = 2*Cin matmul (K = 128 for the C->C conv layers).
            xcat = jnp.concatenate([h_lo, h_hi], axis=-1)
            y = jnp.dot(xcat, w, preferred_element_type=jnp.float32)
        else:
            cin = w.shape[0] // 2
            y = (jnp.dot(h_lo, w[:cin, :], preferred_element_type=jnp.float32)
                 + jnp.dot(h_hi, w[cin:, :], preferred_element_type=jnp.float32))
        y = y + b                              # conv bias (+ folded BN shift term)
        # Dropout(p=0.0) == identity.  PReLU with a single scalar slope.
        y = jnp.where(y > 0, y, alpha * y)
        # BatchNorm of this layer is pre-folded into the *next* layer's weights.
        return y.astype(compute_dtype)

    h = x_ref[...]                                           # (seq_len*bb, E)
    t_len = seq_len
    h = conv_prelu(h, t_len, c0w_ref[...], c0b_ref[...], prelu_ref[0])
    t_len -= 1
    for i in range(seq_len - 2):                             # remaining conv blocks
        h = conv_prelu(h, t_len, cw_ref[i], cb_ref[i][None, :], prelu_ref[i + 1])
        t_len -= 1

    # h is now (bb, C): the time axis has collapsed to 1 (== squeeze(2)).
    z = jnp.dot(h, f1w_ref[...], preferred_element_type=jnp.float32) + f1b_ref[...]
    z = jnp.maximum(z, 0.0).astype(compute_dtype)            # ReLU(fc1)
    y = jnp.dot(z, f2w_ref[...], preferred_element_type=jnp.float32) + f2b_ref[...]
    out_ref[...] = y.astype(out_ref.dtype)                   # (bb, BHp) lane-dense store


def cnn_lm_forward(x_idx, prep, *, fuse_taps=True, block_b=None):
    """x_idx: (B, char_len) int32 token ids -> (B, bert_hid_size) float32."""
    B, L = x_idx.shape
    emb = prep['emb']                                        # (V, E) bf16
    E = emb.shape[1]
    C = prep['c0b'].shape[-1]
    H = prep['f1b'].shape[-1]
    BH = prep['f2b'].shape[-1]
    NL = L - 1
    NLr = NL - 1
    assert NLr >= 1, "demo assumes char_len >= 3"

    # Lane-dense output: pad fc2 output columns with zeros to a multiple of 128
    # so the per-step HBM writeback is an unmasked vst; wrapper slices it away.
    BHp = _round_up(BH, 128)
    f2w, f2b = prep['f2w'], prep['f2b']
    if BHp != BH:
        f2w = jnp.pad(f2w, ((0, 0), (0, BHp - BH)))
        f2b = jnp.pad(f2b, ((0, 0), (0, BHp - BH)))

    # Batch-block size: multiple of 16 (sublane-tile aligned for f32 and bf16),
    # capped at 512 so large batches keep >=2 grid steps (2 TCs on v7x).
    if block_b is None:
        if B <= 512:
            block_b = B
        else:
            n_blk = max(2, -(-B // 512))
            block_b = -(-B // n_blk)
    bb = min(512, _round_up(block_b, 16))
    b_pad = _round_up(B, bb)
    nb = b_pad // bb

    idx = x_idx if b_pad == B else jnp.pad(x_idx, ((0, b_pad - B), (0, 0)))
    x_emb = emb[idx]                                         # XLA gather, bf16
    # Time-major interleave within each batch block: row = t*bb + b.
    x_blk = (x_emb.reshape(nb, bb, L, E)
                  .transpose(0, 2, 1, 3)
                  .reshape(nb * L * bb, E))

    kernel = functools.partial(_cnn_lm_kernel, bb=bb, seq_len=L,
                               fuse_taps=fuse_taps)

    # Advisory cost estimate for the XLA scheduler.
    flops = 2 * (L - 1) * bb * (2 * E) * C
    for i in range(1, NL):
        flops += 2 * (L - 1 - i) * bb * (2 * C) * C
    flops += 2 * bb * C * H + 2 * bb * H * BHp
    flops *= nb
    w_bytes = sum(int(np.prod(prep[k].shape)) * prep[k].dtype.itemsize
                  for k in ('c0w', 'c0b', 'cw', 'cb', 'prelu',
                            'f1w', 'f1b', 'f2w', 'f2b'))
    bytes_accessed = int(x_blk.size) * x_blk.dtype.itemsize + w_bytes + b_pad * BHp * 4

    out = pl.pallas_call(
        kernel,
        out_shape=jax.ShapeDtypeStruct((b_pad, BHp), jnp.float32),
        grid=(nb,),
        in_specs=[
            pl.BlockSpec((L * bb, E), lambda i: (i, 0)),         # embedded chars
            pl.BlockSpec((2 * E, C), lambda i: (0, 0)),          # conv0 [W0;W1]
            pl.BlockSpec((1, C), lambda i: (0, 0)),              # conv0 bias
            pl.BlockSpec((NLr, 2 * C, C), lambda i: (0, 0, 0)),  # convs [W0;W1] (BN-folded)
            pl.BlockSpec((NLr, C), lambda i: (0, 0)),            # convs bias (BN-folded)
            pl.BlockSpec(memory_space=pltpu.MemorySpace.SMEM),   # PReLU scalar slopes
            pl.BlockSpec((C, H), lambda i: (0, 0)),              # fc1 W.T (BN-folded)
            pl.BlockSpec((1, H), lambda i: (0, 0)),              # fc1 bias (BN-folded)
            pl.BlockSpec((H, BHp), lambda i: (0, 0)),            # fc2 W.T (lane-padded)
            pl.BlockSpec((1, BHp), lambda i: (0, 0)),            # fc2 bias (lane-padded)
        ],
        out_specs=pl.BlockSpec((bb, BHp), lambda i: (i, 0)),
        compiler_params=pltpu.CompilerParams(dimension_semantics=("parallel",)),
        cost_estimate=pl.CostEstimate(flops=int(flops), transcendentals=0,
                                      bytes_accessed=int(bytes_accessed)),
    )(x_blk, prep['c0w'], prep['c0b'], prep['cw'], prep['cb'], prep['prelu'],
      prep['f1w'], prep['f1b'], f2w, f2b)
    return out[:B, :BH]


def init_params(key, char_vocab_size, char_len, embed_dim, chan_size,
                hid_size, bert_hid_size):
    """Deterministic synthetic parameters matching CNN_LM.__init__ shapes."""
    NL = char_len - 1
    NLr = NL - 1
    ks = jax.random.split(key, 15)

    def nrm(k, shape, scale):
        return (scale * jax.random.normal(k, shape)).astype(jnp.float32)

    p = {}
    p['emb'] = nrm(ks[0], (char_vocab_size, embed_dim), 1.0)
    # Conv weights stored pre-transposed per tap: (C_in, C_out).
    p['c0w0'] = nrm(ks[1], (embed_dim, chan_size), 1.0 / np.sqrt(2 * embed_dim))
    p['c0w1'] = nrm(ks[2], (embed_dim, chan_size), 1.0 / np.sqrt(2 * embed_dim))
    p['c0b'] = nrm(ks[3], (1, chan_size), 0.1)
    p['cw0'] = nrm(ks[4], (NLr, chan_size, chan_size), 1.0 / np.sqrt(2 * chan_size))
    p['cw1'] = nrm(ks[5], (NLr, chan_size, chan_size), 1.0 / np.sqrt(2 * chan_size))
    p['cb'] = nrm(ks[6], (NLr, chan_size), 0.1)
    # PReLU default: one scalar slope per block (torch init 0.25).
    p['prelu'] = jnp.full((NL,), 0.25, dtype=jnp.float32)
    # BatchNorm1d eval-mode statistics.
    p['bn_gamma'] = (1.0 + 0.1 * jax.random.normal(ks[7], (NL, chan_size))).astype(jnp.float32)
    p['bn_beta'] = (0.1 * jax.random.normal(ks[8], (NL, chan_size))).astype(jnp.float32)
    p['bn_mean'] = (0.1 * jax.random.normal(ks[9], (NL, chan_size))).astype(jnp.float32)
    p['bn_var'] = (0.5 + jax.random.uniform(ks[10], (NL, chan_size))).astype(jnp.float32)
    # fc weights stored pre-transposed: (in, out).
    p['f1w'] = nrm(ks[11], (chan_size, hid_size), 1.0 / np.sqrt(chan_size))
    p['f1b'] = nrm(ks[12], (1, hid_size), 0.1)
    p['f2w'] = nrm(ks[13], (hid_size, bert_hid_size), 1.0 / np.sqrt(hid_size))
    p['f2b'] = nrm(ks[14], (1, bert_hid_size), 0.1)
    return p


def prepare_params(p, compute_dtype=jnp.bfloat16):
    """Stack the two conv taps, fold each BN into the NEXT linear op, cast to bf16."""
    eps = 1e-5
    scale = p['bn_gamma'] / jnp.sqrt(p['bn_var'] + eps)          # (NL, C)
    shift = p['bn_beta'] - p['bn_mean'] * scale                  # (NL, C)
    NL = scale.shape[0]

    q = {}
    q['emb'] = p['emb'].astype(compute_dtype)
    # conv0: no preceding BN; just stack the taps along the contraction dim.
    q['c0w'] = jnp.concatenate([p['c0w0'], p['c0w1']], axis=0).astype(compute_dtype)
    q['c0b'] = p['c0b'].astype(jnp.float32)
    # conv blocks 1..NL-1: fold BN of block i into conv weights/bias of block i+1.
    cw, cb = [], []
    for i in range(NL - 1):
        s, t = scale[i], shift[i]
        w0 = p['cw0'][i] * s[:, None]
        w1 = p['cw1'][i] * s[:, None]
        cw.append(jnp.concatenate([w0, w1], axis=0))             # (2C, C)
        cb.append(p['cb'][i] + t @ p['cw0'][i] + t @ p['cw1'][i])
    q['cw'] = jnp.stack(cw).astype(compute_dtype)                # (NL-1, 2C, C)
    q['cb'] = jnp.stack(cb).astype(jnp.float32)                  # (NL-1, C)
    # Last BN folds into fc1.
    s, t = scale[NL - 1], shift[NL - 1]
    q['f1w'] = (p['f1w'] * s[:, None]).astype(compute_dtype)
    q['f1b'] = (p['f1b'] + (t @ p['f1w'])[None, :]).astype(jnp.float32)
    q['f2w'] = p['f2w'].astype(compute_dtype)
    q['f2b'] = p['f2b'].astype(jnp.float32)
    q['prelu'] = p['prelu'].astype(jnp.float32)
    return q


def ref_forward(x_idx, p):
    """Pure-JAX f32 reference with the original (unfolded) op order."""
    h = p['emb'][x_idx]                                          # (B, L, E)
    NL = h.shape[1] - 1
    eps = 1e-5

    def block(h, w0, w1, b, i):
        y = (jnp.einsum('btc,cd->btd', h[:, :-1], w0, precision='highest')
             + jnp.einsum('btc,cd->btd', h[:, 1:], w1, precision='highest')
             + b)
        a = p['prelu'][i]
        y = jnp.where(y > 0, y, a * y)                           # PReLU (scalar)
        scale = p['bn_gamma'][i] / jnp.sqrt(p['bn_var'][i] + eps)
        shift = p['bn_beta'][i] - p['bn_mean'][i] * scale
        return y * scale + shift                                 # BN (eval mode)

    h = block(h, p['c0w0'], p['c0w1'], p['c0b'][None], 0)
    for i in range(NL - 1):
        h = block(h, p['cw0'][i], p['cw1'][i], p['cb'][i][None, None, :], i + 1)
    h = h[:, 0, :]                                               # squeeze(2)
    z = jnp.maximum(jnp.dot(h, p['f1w'], precision='highest') + p['f1b'], 0.0)
    return jnp.dot(z, p['f2w'], precision='highest') + p['f2b']


if __name__ == "__main__":
    char_vocab_size = 50
    char_len = 8
    embed_dim = 32
    chan_size = 64
    hid_size = 32
    bert_hid_size = 64
    batch = 2

    key = jax.random.PRNGKey(0)
    kp, kx = jax.random.split(key)
    params = init_params(kp, char_vocab_size, char_len, embed_dim, chan_size,
                         hid_size, bert_hid_size)
    prep = prepare_params(params)
    x_idx = jax.random.randint(kx, (batch, char_len), 0, char_vocab_size,
                               dtype=jnp.int32)

    try:
        out = jax.block_until_ready(cnn_lm_forward(x_idx, prep, fuse_taps=True))
    except Exception:
        # Fallback: identical kernel with the two conv taps as separate matmuls.
        out = jax.block_until_ready(cnn_lm_forward(x_idx, prep, fuse_taps=False))

    ref = ref_forward(x_idx, params)
    # Tolerance covers bf16 MXU operands vs the f32 'highest' reference.
    np.testing.assert_allclose(np.asarray(out), np.asarray(ref),
                               rtol=3e-2, atol=3e-2)
    assert out.shape == (batch, bert_hid_size) and out.dtype == jnp.float32
    print("KERNEL_OK")
</pallas_src>

<mosaic_0001>
module attributes {stable_mosaic.version = 11 : i64} {
  func.func @_cnn_lm_kernel(%arg0: i32, %arg1: memref<128x32xbf16, #tpu.memory_space<vmem>>, %arg2: memref<64x64xbf16, #tpu.memory_space<vmem>>, %arg3: memref<1x64xf32, #tpu.memory_space<vmem>>, %arg4: memref<6x128x64xbf16, #tpu.memory_space<vmem>>, %arg5: memref<6x64xf32, #tpu.memory_space<vmem>>, %arg6: memref<7xf32, #tpu.memory_space<smem>>, %arg7: memref<64x32xbf16, #tpu.memory_space<vmem>>, %arg8: memref<1x32xf32, #tpu.memory_space<vmem>>, %arg9: memref<32x128xbf16, #tpu.memory_space<vmem>>, %arg10: memref<1x128xf32, #tpu.memory_space<vmem>>, %arg11: memref<16x128xf32, #tpu.memory_space<vmem>>) attributes {dimension_semantics = [#tpu.dimension_semantics<parallel>], iteration_bounds = array<i64: 1>, scalar_prefetch = 0 : i64, scratch_operands = 0 : i64, tpu.core_type = #tpu.core_type<tc>, window_params = [{transform_indices = @transform_0, window_bounds = array<i64: 128, 32>}, {pipeline_mode = #tpu.pipeline_mode<synchronous>, transform_indices = @transform_1, window_bounds = array<i64: 64, 64>}, {pipeline_mode = #tpu.pipeline_mode<synchronous>, transform_indices = @transform_2, window_bounds = array<i64: 1, 64>}, {pipeline_mode = #tpu.pipeline_mode<synchronous>, transform_indices = @transform_3, window_bounds = array<i64: 6, 128, 64>}, {pipeline_mode = #tpu.pipeline_mode<synchronous>, transform_indices = @transform_4, window_bounds = array<i64: 6, 64>}, {transform_indices = @transform_5, window_bounds = array<i64: 7>}, {pipeline_mode = #tpu.pipeline_mode<synchronous>, transform_indices = @transform_6, window_bounds = array<i64: 64, 32>}, {pipeline_mode = #tpu.pipeline_mode<synchronous>, transform_indices = @transform_7, window_bounds = array<i64: 1, 32>}, {pipeline_mode = #tpu.pipeline_mode<synchronous>, transform_indices = @transform_8, window_bounds = array<i64: 32, 128>}, {pipeline_mode = #tpu.pipeline_mode<synchronous>, transform_indices = @transform_9, window_bounds = array<i64: 1, 128>}, {transform_indices = @transform_10, window_bounds = array<i64: 16, 128>}]} {
    %c0 = arith.constant 0 : index
    %c0_0 = arith.constant 0 : index
    %0 = vector.load %arg1[%c0, %c0_0] : memref<128x32xbf16, #tpu.memory_space<vmem>>, vector<128x32xbf16>
    %c0_1 = arith.constant 0 : index
    %c0_2 = arith.constant 0 : index
    %1 = vector.load %arg2[%c0_1, %c0_2] : memref<64x64xbf16, #tpu.memory_space<vmem>>, vector<64x64xbf16>
    %c0_3 = arith.constant 0 : index
    %c0_4 = arith.constant 0 : index
    %2 = vector.load %arg3[%c0_3, %c0_4] : memref<1x64xf32, #tpu.memory_space<vmem>>, vector<1x64xf32>
    %c0_5 = arith.constant 0 : index
    %3 = memref.load %arg6[%c0_5] : memref<7xf32, #tpu.memory_space<smem>>
    %4 = vector.extract_strided_slice %0 {offsets = [0, 0], sizes = [112, 32], strides = [1, 1]} : vector<128x32xbf16> to vector<112x32xbf16>
    %5 = vector.extract_strided_slice %0 {offsets = [16, 0], sizes = [112, 32], strides = [1, 1]} : vector<128x32xbf16> to vector<112x32xbf16>
    %6 = tpu.concatenate %4, %5 in 1 : vector<112x32xbf16>, vector<112x32xbf16> -> vector<112x64xbf16>
    %cst = arith.constant dense<0.000000e+00> : vector<112x64xf32>
    %7 = tpu.matmul %6, %1, %cst {dimension_numbers = #tpu.dot_dimension_numbers<[1], [0], [0], [1], [0, 0, 1, 1], [], []>} : vector<112x64xbf16>, vector<64x64xbf16>, vector<112x64xf32> -> vector<112x64xf32>
    %8 = vector.broadcast %2 : vector<1x64xf32> to vector<112x64xf32>
    %9 = arith.addf %7, %8 : vector<112x64xf32>
    %cst_6 = arith.constant 0.000000e+00 : f32
    %10 = vector.broadcast %cst_6 : f32 to vector<112x64xf32>
    %11 = arith.cmpf ogt, %9, %10 : vector<112x64xf32>
    %12 = vector.broadcast %3 : f32 to vector<112x64xf32>
    %13 = arith.mulf %12, %9 : vector<112x64xf32>
    %14 = arith.select %11, %9, %13 : vector<112x64xi1>, vector<112x64xf32>
    %15 = arith.truncf %14 : vector<112x64xf32> to vector<112x64xbf16>
    %c0_7 = arith.constant 0 : index
    %c0_8 = arith.constant 0 : index
    %c0_9 = arith.constant 0 : index
    %16 = vector.load %arg4[%c0_7, %c0_8, %c0_9] : memref<6x128x64xbf16, #tpu.memory_space<vmem>>, vector<1x128x64xbf16>
    %17 = vector.shape_cast %16 : vector<1x128x64xbf16> to vector<128x64xbf16>
    %c0_10 = arith.constant 0 : index
    %c0_11 = arith.constant 0 : index
    %18 = vector.load %arg5[%c0_10, %c0_11] : memref<6x64xf32, #tpu.memory_space<vmem>>, vector<1x64xf32>
    %19 = vector.shape_cast %18 : vector<1x64xf32> to vector<64xf32>
    %20 = vector.shape_cast %19 : vector<64xf32> to vector<1x64xf32>
    %c1 = arith.constant 1 : index
    %21 = memref.load %arg6[%c1] : memref<7xf32, #tpu.memory_space<smem>>
    %22 = vector.extract_strided_slice %15 {offsets = [0, 0], sizes = [96, 64], strides = [1, 1]} : vector<112x64xbf16> to vector<96x64xbf16>
    %23 = vector.extract_strided_slice %15 {offsets = [16, 0], sizes = [96, 64], strides = [1, 1]} : vector<112x64xbf16> to vector<96x64xbf16>
    %24 = tpu.concatenate %22, %23 in 1 : vector<96x64xbf16>, vector<96x64xbf16> -> vector<96x128xbf16>
    %cst_12 = arith.constant dense<0.000000e+00> : vector<96x64xf32>
    %25 = tpu.matmul %24, %17, %cst_12 {dimension_numbers = #tpu.dot_dimension_numbers<[1], [0], [0], [1], [0, 0, 1, 1], [], []>} : vector<96x128xbf16>, vector<128x64xbf16>, vector<96x64xf32> -> vector<96x64xf32>
    %26 = vector.broadcast %20 : vector<1x64xf32> to vector<96x64xf32>
    %27 = arith.addf %25, %26 : vector<96x64xf32>
    %cst_13 = arith.constant 0.000000e+00 : f32
    %28 = vector.broadcast %cst_13 : f32 to vector<96x64xf32>
    %29 = arith.cmpf ogt, %27, %28 : vector<96x64xf32>
    %30 = vector.broadcast %21 : f32 to vector<96x64xf32>
    %31 = arith.mulf %30, %27 : vector<96x64xf32>
    %32 = arith.select %29, %27, %31 : vector<96x64xi1>, vector<96x64xf32>
    %33 = arith.truncf %32 : vector<96x64xf32> to vector<96x64xbf16>
    %c1_14 = arith.constant 1 : index
    %c0_15 = arith.constant 0 : index
    %c0_16 = arith.constant 0 : index
    %34 = vector.load %arg4[%c1_14, %c0_15, %c0_16] : memref<6x128x64xbf16, #tpu.memory_space<vmem>>, vector<1x128x64xbf16>
    %35 = vector.shape_cast %34 : vector<1x128x64xbf16> to vector<128x64xbf16>
    %c1_17 = arith.constant 1 : index
    %c0_18 = arith.constant 0 : index
    %36 = vector.load %arg5[%c1_17, %c0_18] : memref<6x64xf32, #tpu.memory_space<vmem>>, vector<1x64xf32>
    %37 = vector.shape_cast %36 : vector<1x64xf32> to vector<64xf32>
    %38 = vector.shape_cast %37 : vector<64xf32> to vector<1x64xf32>
    %c2 = arith.constant 2 : index
    %39 = memref.load %arg6[%c2] : memref<7xf32, #tpu.memory_space<smem>>
    %40 = vector.extract_strided_slice %33 {offsets = [0, 0], sizes = [80, 64], strides = [1, 1]} : vector<96x64xbf16> to vector<80x64xbf16>
    %41 = vector.extract_strided_slice %33 {offsets = [16, 0], sizes = [80, 64], strides = [1, 1]} : vector<96x64xbf16> to vector<80x64xbf16>
    %42 = tpu.concatenate %40, %41 in 1 : vector<80x64xbf16>, vector<80x64xbf16> -> vector<80x128xbf16>
    %cst_19 = arith.constant dense<0.000000e+00> : vector<80x64xf32>
    %43 = tpu.matmul %42, %35, %cst_19 {dimension_numbers = #tpu.dot_dimension_numbers<[1], [0], [0], [1], [0, 0, 1, 1], [], []>} : vector<80x128xbf16>, vector<128x64xbf16>, vector<80x64xf32> -> vector<80x64xf32>
    %44 = vector.broadcast %38 : vector<1x64xf32> to vector<80x64xf32>
    %45 = arith.addf %43, %44 : vector<80x64xf32>
    %cst_20 = arith.constant 0.000000e+00 : f32
    %46 = vector.broadcast %cst_20 : f32 to vector<80x64xf32>
    %47 = arith.cmpf ogt, %45, %46 : vector<80x64xf32>
    %48 = vector.broadcast %39 : f32 to vector<80x64xf32>
    %49 = arith.mulf %48, %45 : vector<80x64xf32>
    %50 = arith.select %47, %45, %49 : vector<80x64xi1>, vector<80x64xf32>
    %51 = arith.truncf %50 : vector<80x64xf32> to vector<80x64xbf16>
    %c2_21 = arith.constant 2 : index
    %c0_22 = arith.constant 0 : index
    %c0_23 = arith.constant 0 : index
    %52 = vector.load %arg4[%c2_21, %c0_22, %c0_23] : memref<6x128x64xbf16, #tpu.memory_space<vmem>>, vector<1x128x64xbf16>
    %53 = vector.shape_cast %52 : vector<1x128x64xbf16> to vector<128x64xbf16>
    %c2_24 = arith.constant 2 : index
    %c0_25 = arith.constant 0 : index
    %54 = vector.load %arg5[%c2_24, %c0_25] : memref<6x64xf32, #tpu.memory_space<vmem>>, vector<1x64xf32>
    %55 = vector.shape_cast %54 : vector<1x64xf32> to vector<64xf32>
    %56 = vector.shape_cast %55 : vector<64xf32> to vector<1x64xf32>
    %c3 = arith.constant 3 : index
    %57 = memref.load %arg6[%c3] : memref<7xf32, #tpu.memory_space<smem>>
    %58 = vector.extract_strided_slice %51 {offsets = [0, 0], sizes = [64, 64], strides = [1, 1]} : vector<80x64xbf16> to vector<64x64xbf16>
    %59 = vector.extract_strided_slice %51 {offsets = [16, 0], sizes = [64, 64], strides = [1, 1]} : vector<80x64xbf16> to vector<64x64xbf16>
    %60 = tpu.concatenate %58, %59 in 1 : vector<64x64xbf16>, vector<64x64xbf16> -> vector<64x128xbf16>
    %cst_26 = arith.constant dense<0.000000e+00> : vector<64x64xf32>
    %61 = tpu.matmul %60, %53, %cst_26 {dimension_numbers = #tpu.dot_dimension_numbers<[1], [0], [0], [1], [0, 0, 1, 1], [], []>} : vector<64x128xbf16>, vector<128x64xbf16>, vector<64x64xf32> -> vector<64x64xf32>
    %62 = vector.broadcast %56 : vector<1x64xf32> to vector<64x64xf32>
    %63 = arith.addf %61, %62 : vector<64x64xf32>
    %cst_27 = arith.constant 0.000000e+00 : f32
    %64 = vector.broadcast %cst_27 : f32 to vector<64x64xf32>
    %65 = arith.cmpf ogt, %63, %64 : vector<64x64xf32>
    %66 = vector.broadcast %57 : f32 to vector<64x64xf32>
    %67 = arith.mulf %66, %63 : vector<64x64xf32>
    %68 = arith.select %65, %63, %67 : vector<64x64xi1>, vector<64x64xf32>
    %69 = arith.truncf %68 : vector<64x64xf32> to vector<64x64xbf16>
    %c3_28 = arith.constant 3 : index
    %c0_29 = arith.constant 0 : index
    %c0_30 = arith.constant 0 : index
    %70 = vector.load %arg4[%c3_28, %c0_29, %c0_30] : memref<6x128x64xbf16, #tpu.memory_space<vmem>>, vector<1x128x64xbf16>
    %71 = vector.shape_cast %70 : vector<1x128x64xbf16> to vector<128x64xbf16>
    %c3_31 = arith.constant 3 : index
    %c0_32 = arith.constant 0 : index
    %72 = vector.load %arg5[%c3_31, %c0_32] : memref<6x64xf32, #tpu.memory_space<vmem>>, vector<1x64xf32>
    %73 = vector.shape_cast %72 : vector<1x64xf32> to vector<64xf32>
    %74 = vector.shape_cast %73 : vector<64xf32> to vector<1x64xf32>
    %c4 = arith.constant 4 : index
    %75 = memref.load %arg6[%c4] : memref<7xf32, #tpu.memory_space<smem>>
    %76 = vector.extract_strided_slice %69 {offsets = [0, 0], sizes = [48, 64], strides = [1, 1]} : vector<64x64xbf16> to vector<48x64xbf16>
    %77 = vector.extract_strided_slice %69 {offsets = [16, 0], sizes = [48, 64], strides = [1, 1]} : vector<64x64xbf16> to vector<48x64xbf16>
    %78 = tpu.concatenate %76, %77 in 1 : vector<48x64xbf16>, vector<48x64xbf16> -> vector<48x128xbf16>
    %cst_33 = arith.constant dense<0.000000e+00> : vector<48x64xf32>
    %79 = tpu.matmul %78, %71, %cst_33 {dimension_numbers = #tpu.dot_dimension_numbers<[1], [0], [0], [1], [0, 0, 1, 1], [], []>} : vector<48x128xbf16>, vector<128x64xbf16>, vector<48x64xf32> -> vector<48x64xf32>
    %80 = vector.broadcast %74 : vector<1x64xf32> to vector<48x64xf32>
    %81 = arith.addf %79, %80 : vector<48x64xf32>
    %cst_34 = arith.constant 0.000000e+00 : f32
    %82 = vector.broadcast %cst_34 : f32 to vector<48x64xf32>
    %83 = arith.cmpf ogt, %81, %82 : vector<48x64xf32>
    %84 = vector.broadcast %75 : f32 to vector<48x64xf32>
    %85 = arith.mulf %84, %81 : vector<48x64xf32>
    %86 = arith.select %83, %81, %85 : vector<48x64xi1>, vector<48x64xf32>
    %87 = arith.truncf %86 : vector<48x64xf32> to vector<48x64xbf16>
    %c4_35 = arith.constant 4 : index
    %c0_36 = arith.constant 0 : index
    %c0_37 = arith.constant 0 : index
    %88 = vector.load %arg4[%c4_35, %c0_36, %c0_37] : memref<6x128x64xbf16, #tpu.memory_space<vmem>>, vector<1x128x64xbf16>
    %89 = vector.shape_cast %88 : vector<1x128x64xbf16> to vector<128x64xbf16>
    %c4_38 = arith.constant 4 : index
    %c0_39 = arith.constant 0 : index
    %90 = vector.load %arg5[%c4_38, %c0_39] : memref<6x64xf32, #tpu.memory_space<vmem>>, vector<1x64xf32>
    %91 = vector.shape_cast %90 : vector<1x64xf32> to vector<64xf32>
    %92 = vector.shape_cast %91 : vector<64xf32> to vector<1x64xf32>
    %c5 = arith.constant 5 : index
    %93 = memref.load %arg6[%c5] : memref<7xf32, #tpu.memory_space<smem>>
    %94 = vector.extract_strided_slice %87 {offsets = [0, 0], sizes = [32, 64], strides = [1, 1]} : vector<48x64xbf16> to vector<32x64xbf16>
    %95 = vector.extract_strided_slice %87 {offsets = [16, 0], sizes = [32, 64], strides = [1, 1]} : vector<48x64xbf16> to vector<32x64xbf16>
    %96 = tpu.concatenate %94, %95 in 1 : vector<32x64xbf16>, vector<32x64xbf16> -> vector<32x128xbf16>
    %cst_40 = arith.constant dense<0.000000e+00> : vector<32x64xf32>
    %97 = tpu.matmul %96, %89, %cst_40 {dimension_numbers = #tpu.dot_dimension_numbers<[1], [0], [0], [1], [0, 0, 1, 1], [], []>} : vector<32x128xbf16>, vector<128x64xbf16>, vector<32x64xf32> -> vector<32x64xf32>
    %98 = vector.broadcast %92 : vector<1x64xf32> to vector<32x64xf32>
    %99 = arith.addf %97, %98 : vector<32x64xf32>
    %cst_41 = arith.constant 0.000000e+00 : f32
    %100 = vector.broadcast %cst_41 : f32 to vector<32x64xf32>
    %101 = arith.cmpf ogt, %99, %100 : vector<32x64xf32>
    %102 = vector.broadcast %93 : f32 to vector<32x64xf32>
    %103 = arith.mulf %102, %99 : vector<32x64xf32>
    %104 = arith.select %101, %99, %103 : vector<32x64xi1>, vector<32x64xf32>
    %105 = arith.truncf %104 : vector<32x64xf32> to vector<32x64xbf16>
    %c5_42 = arith.constant 5 : index
    %c0_43 = arith.constant 0 : index
    %c0_44 = arith.constant 0 : index
    %106 = vector.load %arg4[%c5_42, %c0_43, %c0_44] : memref<6x128x64xbf16, #tpu.memory_space<vmem>>, vector<1x128x64xbf16>
    %107 = vector.shape_cast %106 : vector<1x128x64xbf16> to vector<128x64xbf16>
    %c5_45 = arith.constant 5 : index
    %c0_46 = arith.constant 0 : index
    %108 = vector.load %arg5[%c5_45, %c0_46] : memref<6x64xf32, #tpu.memory_space<vmem>>, vector<1x64xf32>
    %109 = vector.shape_cast %108 : vector<1x64xf32> to vector<64xf32>
    %110 = vector.shape_cast %109 : vector<64xf32> to vector<1x64xf32>
    %c6 = arith.constant 6 : index
    %111 = memref.load %arg6[%c6] : memref<7xf32, #tpu.memory_space<smem>>
    %112 = vector.extract_strided_slice %105 {offsets = [0, 0], sizes = [16, 64], strides = [1, 1]} : vector<32x64xbf16> to vector<16x64xbf16>
    %113 = vector.extract_strided_slice %105 {offsets = [16, 0], sizes = [16, 64], strides = [1, 1]} : vector<32x64xbf16> to vector<16x64xbf16>
    %114 = tpu.concatenate %112, %113 in 1 : vector<16x64xbf16>, vector<16x64xbf16> -> vector<16x128xbf16>
    %cst_47 = arith.constant dense<0.000000e+00> : vector<16x64xf32>
    %115 = tpu.matmul %114, %107, %cst_47 {dimension_numbers = #tpu.dot_dimension_numbers<[1], [0], [0], [1], [0, 0, 1, 1], [], []>} : vector<16x128xbf16>, vector<128x64xbf16>, vector<16x64xf32> -> vector<16x64xf32>
    %116 = vector.broadcast %110 : vector<1x64xf32> to vector<16x64xf32>
    %117 = arith.addf %115, %116 : vector<16x64xf32>
    %cst_48 = arith.constant 0.000000e+00 : f32
    %118 = vector.broadcast %cst_48 : f32 to vector<16x64xf32>
    %119 = arith.cmpf ogt, %117, %118 : vector<16x64xf32>
    %120 = vector.broadcast %111 : f32 to vector<16x64xf32>
    %121 = arith.mulf %120, %117 : vector<16x64xf32>
    %122 = arith.select %119, %117, %121 : vector<16x64xi1>, vector<16x64xf32>
    %123 = arith.truncf %122 : vector<16x64xf32> to vector<16x64xbf16>
    %c0_49 = arith.constant 0 : index
    %c0_50 = arith.constant 0 : index
    %124 = vector.load %arg7[%c0_49, %c0_50] : memref<64x32xbf16, #tpu.memory_space<vmem>>, vector<64x32xbf16>
    %cst_51 = arith.constant dense<0.000000e+00> : vector<16x32xf32>
    %125 = tpu.matmul %123, %124, %cst_51 {dimension_numbers = #tpu.dot_dimension_numbers<[1], [0], [0], [1], [0, 0, 1, 1], [], []>} : vector<16x64xbf16>, vector<64x32xbf16>, vector<16x32xf32> -> vector<16x32xf32>
    %c0_52 = arith.constant 0 : index
    %c0_53 = arith.constant 0 : index
    %126 = vector.load %arg8[%c0_52, %c0_53] : memref<1x32xf32, #tpu.memory_space<vmem>>, vector<1x32xf32>
    %127 = vector.broadcast %126 : vector<1x32xf32> to vector<16x32xf32>
    %128 = arith.addf %125, %127 : vector<16x32xf32>
    %cst_54 = arith.constant 0.000000e+00 : f32
    %129 = vector.broadcast %cst_54 : f32 to vector<16x32xf32>
    %130 = arith.maximumf %128, %129 : vector<16x32xf32>
    %131 = arith.truncf %130 : vector<16x32xf32> to vector<16x32xbf16>
    %c0_55 = arith.constant 0 : index
    %c0_56 = arith.constant 0 : index
    %132 = vector.load %arg9[%c0_55, %c0_56] : memref<32x128xbf16, #tpu.memory_space<vmem>>, vector<32x128xbf16>
    %cst_57 = arith.constant dense<0.000000e+00> : vector<16x128xf32>
    %133 = tpu.matmul %131, %132, %cst_57 {dimension_numbers = #tpu.dot_dimension_numbers<[1], [0], [0], [1], [0, 0, 1, 1], [], []>} : vector<16x32xbf16>, vector<32x128xbf16>, vector<16x128xf32> -> vector<16x128xf32>
    %c0_58 = arith.constant 0 : index
    %c0_59 = arith.constant 0 : index
    %134 = vector.load %arg10[%c0_58, %c0_59] : memref<1x128xf32, #tpu.memory_space<vmem>>, vector<1x128xf32>
    %135 = vector.broadcast %134 : vector<1x128xf32> to vector<16x128xf32>
    %136 = arith.addf %133, %135 : vector<16x128xf32>
    %c0_60 = arith.constant 0 : index
    %c0_61 = arith.constant 0 : index
    %137 = vector.load %arg11[%c0_60, %c0_61] : memref<16x128xf32, #tpu.memory_space<vmem>>, vector<16x128xf32>
    tpu.vector_store %arg11[%c0_60, %c0_61], %136 {strides = array<i32>} : memref<16x128xf32, #tpu.memory_space<vmem>>, vector<16x128xf32>,
    return
  }
  func.func @transform_0(%arg0: i32) -> (i32, i32) {
    %c0_i32 = arith.constant 0 : i32
    %c0_i32_0 = arith.constant 0 : i32
    return %arg0, %c0_i32 : i32, i32
  }
  func.func @transform_1(%arg0: i32) -> (i32, i32) {
    %c0_i32 = arith.constant 0 : i32
    %c0_i32_0 = arith.constant 0 : i32
    %c0_i32_1 = arith.constant 0 : i32
    return %c0_i32, %c0_i32_0 : i32, i32
  }
  func.func @transform_2(%arg0: i32) -> (i32, i32) {
    %c0_i32 = arith.constant 0 : i32
    %c0_i32_0 = arith.constant 0 : i32
    %c0_i32_1 = arith.constant 0 : i32
    return %c0_i32, %c0_i32_0 : i32, i32
  }
  func.func @transform_3(%arg0: i32) -> (i32, i32, i32) {
    %c0_i32 = arith.constant 0 : i32
    %c0_i32_0 = arith.constant 0 : i32
    %c0_i32_1 = arith.constant 0 : i32
    %c0_i32_2 = arith.constant 0 : i32
    return %c0_i32, %c0_i32_0, %c0_i32_1 : i32, i32, i32
  }
  func.func @transform_4(%arg0: i32) -> (i32, i32) {
    %c0_i32 = arith.constant 0 : i32
    %c0_i32_0 = arith.constant 0 : i32
    %c0_i32_1 = arith.constant 0 : i32
    return %c0_i32, %c0_i32_0 : i32, i32
  }
  func.func @transform_5(%arg0: i32) -> i32 {
    %c0_i32 = arith.constant 0 : i32
    %c0_i32_0 = arith.constant 0 : i32
    return %c0_i32 : i32
  }
  func.func @transform_6(%arg0: i32) -> (i32, i32) {
    %c0_i32 = arith.constant 0 : i32
    %c0_i32_0 = arith.constant 0 : i32
    %c0_i32_1 = arith.constant 0 : i32
    return %c0_i32, %c0_i32_0 : i32, i32
  }
  func.func @transform_7(%arg0: i32) -> (i32, i32) {
    %c0_i32 = arith.constant 0 : i32
    %c0_i32_0 = arith.constant 0 : i32
    %c0_i32_1 = arith.constant 0 : i32
    return %c0_i32, %c0_i32_0 : i32, i32
  }
  func.func @transform_8(%arg0: i32) -> (i32, i32) {
    %c0_i32 = arith.constant 0 : i32
    %c0_i32_0 = arith.constant 0 : i32
    %c0_i32_1 = arith.constant 0 : i32
    return %c0_i32, %c0_i32_0 : i32, i32
  }
  func.func @transform_9(%arg0: i32) -> (i32, i32) {
    %c0_i32 = arith.constant 0 : i32
    %c0_i32_0 = arith.constant 0 : i32
    %c0_i32_1 = arith.constant 0 : i32
    return %c0_i32, %c0_i32_0 : i32, i32
  }
  func.func @transform_10(%arg0: i32) -> (i32, i32) {
    %c0_i32 = arith.constant 0 : i32
    %c0_i32_0 = arith.constant 0 : i32
    return %arg0, %c0_i32 : i32, i32
  }
}

module attributes {stable_mosaic.version = 11 : i64} {
  func.func @_cnn_lm_kernel(%arg0: i32, %arg1: memref<128x32xbf16, #tpu.memory_space<vmem>>, %arg2: memref<64x64xbf16, #tpu.memory_space<vmem>>, %arg3: memref<1x64xf32, #tpu.memory_space<vmem>>, %arg4: memref<6x128x64xbf16, #tpu.memory_space<vmem>>, %arg5: memref<6x64xf32, #tpu.memory_space<vmem>>, %arg6: memref<7xf32, #tpu.memory_space<smem>>, %arg7: memref<64x32xbf16, #tpu.memory_space<vmem>>, %arg8: memref<1x32xf32, #tpu.memory_space<vmem>>, %arg9: memref<32x128xbf16, #tpu.memory_space<vmem>>, %arg10: memref<1x128xf32, #tpu.memory_space<vmem>>, %arg11: memref<16x128xf32, #tpu.memory_space<vmem>>) attributes {dimension_semantics = [#tpu.dimension_semantics<parallel>], iteration_bounds = array<i64: 1>, scalar_prefetch = 0 : i64, scratch_operands = 0 : i64, tpu.core_type = #tpu.core_type<tc>, window_params = [{transform_indices = @transform_0, window_bounds = array<i64: 128, 32>}, {pipeline_mode = #tpu.pipeline_mode<synchronous>, transform_indices = @transform_1, window_bounds = array<i64: 64, 64>}, {pipeline_mode = #tpu.pipeline_mode<synchronous>, transform_indices = @transform_2, window_bounds = array<i64: 1, 64>}, {pipeline_mode = #tpu.pipeline_mode<synchronous>, transform_indices = @transform_3, window_bounds = array<i64: 6, 128, 64>}, {pipeline_mode = #tpu.pipeline_mode<synchronous>, transform_indices = @transform_4, window_bounds = array<i64: 6, 64>}, {transform_indices = @transform_5, window_bounds = array<i64: 7>}, {pipeline_mode = #tpu.pipeline_mode<synchronous>, transform_indices = @transform_6, window_bounds = array<i64: 64, 32>}, {pipeline_mode = #tpu.pipeline_mode<synchronous>, transform_indices = @transform_7, window_bounds = array<i64: 1, 32>}, {pipeline_mode = #tpu.pipeline_mode<synchronous>, transform_indices = @transform_8, window_bounds = array<i64: 32, 128>}, {pipeline_mode = #tpu.pipeline_mode<synchronous>, transform_indices = @transform_9, window_bounds = array<i64: 1, 128>}, {transform_indices = @transform_10, window_bounds = array<i64: 16, 128>}]} {
    %c0 = arith.constant 0 : index
    %c0_0 = arith.constant 0 : index
    %0 = vector.load %arg1[%c0, %c0_0] : memref<128x32xbf16, #tpu.memory_space<vmem>>, vector<128x32xbf16>
    %c0_1 = arith.constant 0 : index
    %c0_2 = arith.constant 0 : index
    %1 = vector.load %arg2[%c0_1, %c0_2] : memref<64x64xbf16, #tpu.memory_space<vmem>>, vector<64x64xbf16>
    %c0_3 = arith.constant 0 : index
    %c0_4 = arith.constant 0 : index
    %2 = vector.load %arg3[%c0_3, %c0_4] : memref<1x64xf32, #tpu.memory_space<vmem>>, vector<1x64xf32>
    %c0_5 = arith.constant 0 : index
    %3 = memref.load %arg6[%c0_5] : memref<7xf32, #tpu.memory_space<smem>>
    %4 = vector.extract_strided_slice %0 {offsets = [0, 0], sizes = [112, 32], strides = [1, 1]} : vector<128x32xbf16> to vector<112x32xbf16>
    %5 = vector.extract_strided_slice %0 {offsets = [16, 0], sizes = [112, 32], strides = [1, 1]} : vector<128x32xbf16> to vector<112x32xbf16>
    %6 = vector.extract_strided_slice %1 {offsets = [0, 0], sizes = [32, 64], strides = [1, 1]} : vector<64x64xbf16> to vector<32x64xbf16>
    %cst = arith.constant dense<0.000000e+00> : vector<112x64xf32>
    %7 = tpu.matmul %4, %6, %cst {dimension_numbers = #tpu.dot_dimension_numbers<[1], [0], [0], [1], [0, 0, 1, 1], [], []>} : vector<112x32xbf16>, vector<32x64xbf16>, vector<112x64xf32> -> vector<112x64xf32>
    %8 = vector.extract_strided_slice %1 {offsets = [32, 0], sizes = [32, 64], strides = [1, 1]} : vector<64x64xbf16> to vector<32x64xbf16>
    %cst_6 = arith.constant dense<0.000000e+00> : vector<112x64xf32>
    %9 = tpu.matmul %5, %8, %cst_6 {dimension_numbers = #tpu.dot_dimension_numbers<[1], [0], [0], [1], [0, 0, 1, 1], [], []>} : vector<112x32xbf16>, vector<32x64xbf16>, vector<112x64xf32> -> vector<112x64xf32>
    %10 = arith.addf %7, %9 : vector<112x64xf32>
    %11 = vector.broadcast %2 : vector<1x64xf32> to vector<112x64xf32>
    %12 = arith.addf %10, %11 : vector<112x64xf32>
    %cst_7 = arith.constant 0.000000e+00 : f32
    %13 = vector.broadcast %cst_7 : f32 to vector<112x64xf32>
    %14 = arith.cmpf ogt, %12, %13 : vector<112x64xf32>
    %15 = vector.broadcast %3 : f32 to vector<112x64xf32>
    %16 = arith.mulf %15, %12 : vector<112x64xf32>
    %17 = arith.select %14, %12, %16 : vector<112x64xi1>, vector<112x64xf32>
    %18 = arith.truncf %17 : vector<112x64xf32> to vector<112x64xbf16>
    %c0_8 = arith.constant 0 : index
    %c0_9 = arith.constant 0 : index
    %c0_10 = arith.constant 0 : index
    %19 = vector.load %arg4[%c0_8, %c0_9, %c0_10] : memref<6x128x64xbf16, #tpu.memory_space<vmem>>, vector<1x128x64xbf16>
    %20 = vector.shape_cast %19 : vector<1x128x64xbf16> to vector<128x64xbf16>
    %c0_11 = arith.constant 0 : index
    %c0_12 = arith.constant 0 : index
    %21 = vector.load %arg5[%c0_11, %c0_12] : memref<6x64xf32, #tpu.memory_space<vmem>>, vector<1x64xf32>
    %22 = vector.shape_cast %21 : vector<1x64xf32> to vector<64xf32>
    %23 = vector.shape_cast %22 : vector<64xf32> to vector<1x64xf32>
    %c1 = arith.constant 1 : index
    %24 = memref.load %arg6[%c1] : memref<7xf32, #tpu.memory_space<smem>>
    %25 = vector.extract_strided_slice %18 {offsets = [0, 0], sizes = [96, 64], strides = [1, 1]} : vector<112x64xbf16> to vector<96x64xbf16>
    %26 = vector.extract_strided_slice %18 {offsets = [16, 0], sizes = [96, 64], strides = [1, 1]} : vector<112x64xbf16> to vector<96x64xbf16>
    %27 = vector.extract_strided_slice %20 {offsets = [0, 0], sizes = [64, 64], strides = [1, 1]} : vector<128x64xbf16> to vector<64x64xbf16>
    %cst_13 = arith.constant dense<0.000000e+00> : vector<96x64xf32>
    %28 = tpu.matmul %25, %27, %cst_13 {dimension_numbers = #tpu.dot_dimension_numbers<[1], [0], [0], [1], [0, 0, 1, 1], [], []>} : vector<96x64xbf16>, vector<64x64xbf16>, vector<96x64xf32> -> vector<96x64xf32>
    %29 = vector.extract_strided_slice %20 {offsets = [64, 0], sizes = [64, 64], strides = [1, 1]} : vector<128x64xbf16> to vector<64x64xbf16>
    %cst_14 = arith.constant dense<0.000000e+00> : vector<96x64xf32>
    %30 = tpu.matmul %26, %29, %cst_14 {dimension_numbers = #tpu.dot_dimension_numbers<[1], [0], [0], [1], [0, 0, 1, 1], [], []>} : vector<96x64xbf16>, vector<64x64xbf16>, vector<96x64xf32> -> vector<96x64xf32>
    %31 = arith.addf %28, %30 : vector<96x64xf32>
    %32 = vector.broadcast %23 : vector<1x64xf32> to vector<96x64xf32>
    %33 = arith.addf %31, %32 : vector<96x64xf32>
    %cst_15 = arith.constant 0.000000e+00 : f32
    %34 = vector.broadcast %cst_15 : f32 to vector<96x64xf32>
    %35 = arith.cmpf ogt, %33, %34 : vector<96x64xf32>
    %36 = vector.broadcast %24 : f32 to vector<96x64xf32>
    %37 = arith.mulf %36, %33 : vector<96x64xf32>
    %38 = arith.select %35, %33, %37 : vector<96x64xi1>, vector<96x64xf32>
    %39 = arith.truncf %38 : vector<96x64xf32> to vector<96x64xbf16>
    %c1_16 = arith.constant 1 : index
    %c0_17 = arith.constant 0 : index
    %c0_18 = arith.constant 0 : index
    %40 = vector.load %arg4[%c1_16, %c0_17, %c0_18] : memref<6x128x64xbf16, #tpu.memory_space<vmem>>, vector<1x128x64xbf16>
    %41 = vector.shape_cast %40 : vector<1x128x64xbf16> to vector<128x64xbf16>
    %c1_19 = arith.constant 1 : index
    %c0_20 = arith.constant 0 : index
    %42 = vector.load %arg5[%c1_19, %c0_20] : memref<6x64xf32, #tpu.memory_space<vmem>>, vector<1x64xf32>
    %43 = vector.shape_cast %42 : vector<1x64xf32> to vector<64xf32>
    %44 = vector.shape_cast %43 : vector<64xf32> to vector<1x64xf32>
    %c2 = arith.constant 2 : index
    %45 = memref.load %arg6[%c2] : memref<7xf32, #tpu.memory_space<smem>>
    %46 = vector.extract_strided_slice %39 {offsets = [0, 0], sizes = [80, 64], strides = [1, 1]} : vector<96x64xbf16> to vector<80x64xbf16>
    %47 = vector.extract_strided_slice %39 {offsets = [16, 0], sizes = [80, 64], strides = [1, 1]} : vector<96x64xbf16> to vector<80x64xbf16>
    %48 = vector.extract_strided_slice %41 {offsets = [0, 0], sizes = [64, 64], strides = [1, 1]} : vector<128x64xbf16> to vector<64x64xbf16>
    %cst_21 = arith.constant dense<0.000000e+00> : vector<80x64xf32>
    %49 = tpu.matmul %46, %48, %cst_21 {dimension_numbers = #tpu.dot_dimension_numbers<[1], [0], [0], [1], [0, 0, 1, 1], [], []>} : vector<80x64xbf16>, vector<64x64xbf16>, vector<80x64xf32> -> vector<80x64xf32>
    %50 = vector.extract_strided_slice %41 {offsets = [64, 0], sizes = [64, 64], strides = [1, 1]} : vector<128x64xbf16> to vector<64x64xbf16>
    %cst_22 = arith.constant dense<0.000000e+00> : vector<80x64xf32>
    %51 = tpu.matmul %47, %50, %cst_22 {dimension_numbers = #tpu.dot_dimension_numbers<[1], [0], [0], [1], [0, 0, 1, 1], [], []>} : vector<80x64xbf16>, vector<64x64xbf16>, vector<80x64xf32> -> vector<80x64xf32>
    %52 = arith.addf %49, %51 : vector<80x64xf32>
    %53 = vector.broadcast %44 : vector<1x64xf32> to vector<80x64xf32>
    %54 = arith.addf %52, %53 : vector<80x64xf32>
    %cst_23 = arith.constant 0.000000e+00 : f32
    %55 = vector.broadcast %cst_23 : f32 to vector<80x64xf32>
    %56 = arith.cmpf ogt, %54, %55 : vector<80x64xf32>
    %57 = vector.broadcast %45 : f32 to vector<80x64xf32>
    %58 = arith.mulf %57, %54 : vector<80x64xf32>
    %59 = arith.select %56, %54, %58 : vector<80x64xi1>, vector<80x64xf32>
    %60 = arith.truncf %59 : vector<80x64xf32> to vector<80x64xbf16>
    %c2_24 = arith.constant 2 : index
    %c0_25 = arith.constant 0 : index
    %c0_26 = arith.constant 0 : index
    %61 = vector.load %arg4[%c2_24, %c0_25, %c0_26] : memref<6x128x64xbf16, #tpu.memory_space<vmem>>, vector<1x128x64xbf16>
    %62 = vector.shape_cast %61 : vector<1x128x64xbf16> to vector<128x64xbf16>
    %c2_27 = arith.constant 2 : index
    %c0_28 = arith.constant 0 : index
    %63 = vector.load %arg5[%c2_27, %c0_28] : memref<6x64xf32, #tpu.memory_space<vmem>>, vector<1x64xf32>
    %64 = vector.shape_cast %63 : vector<1x64xf32> to vector<64xf32>
    %65 = vector.shape_cast %64 : vector<64xf32> to vector<1x64xf32>
    %c3 = arith.constant 3 : index
    %66 = memref.load %arg6[%c3] : memref<7xf32, #tpu.memory_space<smem>>
    %67 = vector.extract_strided_slice %60 {offsets = [0, 0], sizes = [64, 64], strides = [1, 1]} : vector<80x64xbf16> to vector<64x64xbf16>
    %68 = vector.extract_strided_slice %60 {offsets = [16, 0], sizes = [64, 64], strides = [1, 1]} : vector<80x64xbf16> to vector<64x64xbf16>
    %69 = vector.extract_strided_slice %62 {offsets = [0, 0], sizes = [64, 64], strides = [1, 1]} : vector<128x64xbf16> to vector<64x64xbf16>
    %cst_29 = arith.constant dense<0.000000e+00> : vector<64x64xf32>
    %70 = tpu.matmul %67, %69, %cst_29 {dimension_numbers = #tpu.dot_dimension_numbers<[1], [0], [0], [1], [0, 0, 1, 1], [], []>} : vector<64x64xbf16>, vector<64x64xbf16>, vector<64x64xf32> -> vector<64x64xf32>
    %71 = vector.extract_strided_slice %62 {offsets = [64, 0], sizes = [64, 64], strides = [1, 1]} : vector<128x64xbf16> to vector<64x64xbf16>
    %cst_30 = arith.constant dense<0.000000e+00> : vector<64x64xf32>
    %72 = tpu.matmul %68, %71, %cst_30 {dimension_numbers = #tpu.dot_dimension_numbers<[1], [0], [0], [1], [0, 0, 1, 1], [], []>} : vector<64x64xbf16>, vector<64x64xbf16>, vector<64x64xf32> -> vector<64x64xf32>
    %73 = arith.addf %70, %72 : vector<64x64xf32>
    %74 = vector.broadcast %65 : vector<1x64xf32> to vector<64x64xf32>
    %75 = arith.addf %73, %74 : vector<64x64xf32>
    %cst_31 = arith.constant 0.000000e+00 : f32
    %76 = vector.broadcast %cst_31 : f32 to vector<64x64xf32>
    %77 = arith.cmpf ogt, %75, %76 : vector<64x64xf32>
    %78 = vector.broadcast %66 : f32 to vector<64x64xf32>
    %79 = arith.mulf %78, %75 : vector<64x64xf32>
    %80 = arith.select %77, %75, %79 : vector<64x64xi1>, vector<64x64xf32>
    %81 = arith.truncf %80 : vector<64x64xf32> to vector<64x64xbf16>
    %c3_32 = arith.constant 3 : index
    %c0_33 = arith.constant 0 : index
    %c0_34 = arith.constant 0 : index
    %82 = vector.load %arg4[%c3_32, %c0_33, %c0_34] : memref<6x128x64xbf16, #tpu.memory_space<vmem>>, vector<1x128x64xbf16>
    %83 = vector.shape_cast %82 : vector<1x128x64xbf16> to vector<128x64xbf16>
    %c3_35 = arith.constant 3 : index
    %c0_36 = arith.constant 0 : index
    %84 = vector.load %arg5[%c3_35, %c0_36] : memref<6x64xf32, #tpu.memory_space<vmem>>, vector<1x64xf32>
    %85 = vector.shape_cast %84 : vector<1x64xf32> to vector<64xf32>
    %86 = vector.shape_cast %85 : vector<64xf32> to vector<1x64xf32>
    %c4 = arith.constant 4 : index
    %87 = memref.load %arg6[%c4] : memref<7xf32, #tpu.memory_space<smem>>
    %88 = vector.extract_strided_slice %81 {offsets = [0, 0], sizes = [48, 64], strides = [1, 1]} : vector<64x64xbf16> to vector<48x64xbf16>
    %89 = vector.extract_strided_slice %81 {offsets = [16, 0], sizes = [48, 64], strides = [1, 1]} : vector<64x64xbf16> to vector<48x64xbf16>
    %90 = vector.extract_strided_slice %83 {offsets = [0, 0], sizes = [64, 64], strides = [1, 1]} : vector<128x64xbf16> to vector<64x64xbf16>
    %cst_37 = arith.constant dense<0.000000e+00> : vector<48x64xf32>
    %91 = tpu.matmul %88, %90, %cst_37 {dimension_numbers = #tpu.dot_dimension_numbers<[1], [0], [0], [1], [0, 0, 1, 1], [], []>} : vector<48x64xbf16>, vector<64x64xbf16>, vector<48x64xf32> -> vector<48x64xf32>
    %92 = vector.extract_strided_slice %83 {offsets = [64, 0], sizes = [64, 64], strides = [1, 1]} : vector<128x64xbf16> to vector<64x64xbf16>
    %cst_38 = arith.constant dense<0.000000e+00> : vector<48x64xf32>
    %93 = tpu.matmul %89, %92, %cst_38 {dimension_numbers = #tpu.dot_dimension_numbers<[1], [0], [0], [1], [0, 0, 1, 1], [], []>} : vector<48x64xbf16>, vector<64x64xbf16>, vector<48x64xf32> -> vector<48x64xf32>
    %94 = arith.addf %91, %93 : vector<48x64xf32>
    %95 = vector.broadcast %86 : vector<1x64xf32> to vector<48x64xf32>
    %96 = arith.addf %94, %95 : vector<48x64xf32>
    %cst_39 = arith.constant 0.000000e+00 : f32
    %97 = vector.broadcast %cst_39 : f32 to vector<48x64xf32>
    %98 = arith.cmpf ogt, %96, %97 : vector<48x64xf32>
    %99 = vector.broadcast %87 : f32 to vector<48x64xf32>
    %100 = arith.mulf %99, %96 : vector<48x64xf32>
    %101 = arith.select %98, %96, %100 : vector<48x64xi1>, vector<48x64xf32>
    %102 = arith.truncf %101 : vector<48x64xf32> to vector<48x64xbf16>
    %c4_40 = arith.constant 4 : index
    %c0_41 = arith.constant 0 : index
    %c0_42 = arith.constant 0 : index
    %103 = vector.load %arg4[%c4_40, %c0_41, %c0_42] : memref<6x128x64xbf16, #tpu.memory_space<vmem>>, vector<1x128x64xbf16>
    %104 = vector.shape_cast %103 : vector<1x128x64xbf16> to vector<128x64xbf16>
    %c4_43 = arith.constant 4 : index
    %c0_44 = arith.constant 0 : index
    %105 = vector.load %arg5[%c4_43, %c0_44] : memref<6x64xf32, #tpu.memory_space<vmem>>, vector<1x64xf32>
    %106 = vector.shape_cast %105 : vector<1x64xf32> to vector<64xf32>
    %107 = vector.shape_cast %106 : vector<64xf32> to vector<1x64xf32>
    %c5 = arith.constant 5 : index
    %108 = memref.load %arg6[%c5] : memref<7xf32, #tpu.memory_space<smem>>
    %109 = vector.extract_strided_slice %102 {offsets = [0, 0], sizes = [32, 64], strides = [1, 1]} : vector<48x64xbf16> to vector<32x64xbf16>
    %110 = vector.extract_strided_slice %102 {offsets = [16, 0], sizes = [32, 64], strides = [1, 1]} : vector<48x64xbf16> to vector<32x64xbf16>
    %111 = vector.extract_strided_slice %104 {offsets = [0, 0], sizes = [64, 64], strides = [1, 1]} : vector<128x64xbf16> to vector<64x64xbf16>
    %cst_45 = arith.constant dense<0.000000e+00> : vector<32x64xf32>
    %112 = tpu.matmul %109, %111, %cst_45 {dimension_numbers = #tpu.dot_dimension_numbers<[1], [0], [0], [1], [0, 0, 1, 1], [], []>} : vector<32x64xbf16>, vector<64x64xbf16>, vector<32x64xf32> -> vector<32x64xf32>
    %113 = vector.extract_strided_slice %104 {offsets = [64, 0], sizes = [64, 64], strides = [1, 1]} : vector<128x64xbf16> to vector<64x64xbf16>
    %cst_46 = arith.constant dense<0.000000e+00> : vector<32x64xf32>
    %114 = tpu.matmul %110, %113, %cst_46 {dimension_numbers = #tpu.dot_dimension_numbers<[1], [0], [0], [1], [0, 0, 1, 1], [], []>} : vector<32x64xbf16>, vector<64x64xbf16>, vector<32x64xf32> -> vector<32x64xf32>
    %115 = arith.addf %112, %114 : vector<32x64xf32>
    %116 = vector.broadcast %107 : vector<1x64xf32> to vector<32x64xf32>
    %117 = arith.addf %115, %116 : vector<32x64xf32>
    %cst_47 = arith.constant 0.000000e+00 : f32
    %118 = vector.broadcast %cst_47 : f32 to vector<32x64xf32>
    %119 = arith.cmpf ogt, %117, %118 : vector<32x64xf32>
    %120 = vector.broadcast %108 : f32 to vector<32x64xf32>
    %121 = arith.mulf %120, %117 : vector<32x64xf32>
    %122 = arith.select %119, %117, %121 : vector<32x64xi1>, vector<32x64xf32>
    %123 = arith.truncf %122 : vector<32x64xf32> to vector<32x64xbf16>
    %c5_48 = arith.constant 5 : index
    %c0_49 = arith.constant 0 : index
    %c0_50 = arith.constant 0 : index
    %124 = vector.load %arg4[%c5_48, %c0_49, %c0_50] : memref<6x128x64xbf16, #tpu.memory_space<vmem>>, vector<1x128x64xbf16>
    %125 = vector.shape_cast %124 : vector<1x128x64xbf16> to vector<128x64xbf16>
    %c5_51 = arith.constant 5 : index
    %c0_52 = arith.constant 0 : index
    %126 = vector.load %arg5[%c5_51, %c0_52] : memref<6x64xf32, #tpu.memory_space<vmem>>, vector<1x64xf32>
    %127 = vector.shape_cast %126 : vector<1x64xf32> to vector<64xf32>
    %128 = vector.shape_cast %127 : vector<64xf32> to vector<1x64xf32>
    %c6 = arith.constant 6 : index
    %129 = memref.load %arg6[%c6] : memref<7xf32, #tpu.memory_space<smem>>
    %130 = vector.extract_strided_slice %123 {offsets = [0, 0], sizes = [16, 64], strides = [1, 1]} : vector<32x64xbf16> to vector<16x64xbf16>
    %131 = vector.extract_strided_slice %123 {offsets = [16, 0], sizes = [16, 64], strides = [1, 1]} : vector<32x64xbf16> to vector<16x64xbf16>
    %132 = vector.extract_strided_slice %125 {offsets = [0, 0], sizes = [64, 64], strides = [1, 1]} : vector<128x64xbf16> to vector<64x64xbf16>
    %cst_53 = arith.constant dense<0.000000e+00> : vector<16x64xf32>
    %133 = tpu.matmul %130, %132, %cst_53 {dimension_numbers = #tpu.dot_dimension_numbers<[1], [0], [0], [1], [0, 0, 1, 1], [], []>} : vector<16x64xbf16>, vector<64x64xbf16>, vector<16x64xf32> -> vector<16x64xf32>
    %134 = vector.extract_strided_slice %125 {offsets = [64, 0], sizes = [64, 64], strides = [1, 1]} : vector<128x64xbf16> to vector<64x64xbf16>
    %cst_54 = arith.constant dense<0.000000e+00> : vector<16x64xf32>
    %135 = tpu.matmul %131, %134, %cst_54 {dimension_numbers = #tpu.dot_dimension_numbers<[1], [0], [0], [1], [0, 0, 1, 1], [], []>} : vector<16x64xbf16>, vector<64x64xbf16>, vector<16x64xf32> -> vector<16x64xf32>
    %136 = arith.addf %133, %135 : vector<16x64xf32>
    %137 = vector.broadcast %128 : vector<1x64xf32> to vector<16x64xf32>
    %138 = arith.addf %136, %137 : vector<16x64xf32>
    %cst_55 = arith.constant 0.000000e+00 : f32
    %139 = vector.broadcast %cst_55 : f32 to vector<16x64xf32>
    %140 = arith.cmpf ogt, %138, %139 : vector<16x64xf32>
    %141 = vector.broadcast %129 : f32 to vector<16x64xf32>
    %142 = arith.mulf %141, %138 : vector<16x64xf32>
    %143 = arith.select %140, %138, %142 : vector<16x64xi1>, vector<16x64xf32>
    %144 = arith.truncf %143 : vector<16x64xf32> to vector<16x64xbf16>
    %c0_56 = arith.constant 0 : index
    %c0_57 = arith.constant 0 : index
    %145 = vector.load %arg7[%c0_56, %c0_57] : memref<64x32xbf16, #tpu.memory_space<vmem>>, vector<64x32xbf16>
    %cst_58 = arith.constant dense<0.000000e+00> : vector<16x32xf32>
    %146 = tpu.matmul %144, %145, %cst_58 {dimension_numbers = #tpu.dot_dimension_numbers<[1], [0], [0], [1], [0, 0, 1, 1], [], []>} : vector<16x64xbf16>, vector<64x32xbf16>, vector<16x32xf32> -> vector<16x32xf32>
    %c0_59 = arith.constant 0 : index
    %c0_60 = arith.constant 0 : index
    %147 = vector.load %arg8[%c0_59, %c0_60] : memref<1x32xf32, #tpu.memory_space<vmem>>, vector<1x32xf32>
    %148 = vector.broadcast %147 : vector<1x32xf32> to vector<16x32xf32>
    %149 = arith.addf %146, %148 : vector<16x32xf32>
    %cst_61 = arith.constant 0.000000e+00 : f32
    %150 = vector.broadcast %cst_61 : f32 to vector<16x32xf32>
    %151 = arith.maximumf %149, %150 : vector<16x32xf32>
    %152 = arith.truncf %151 : vector<16x32xf32> to vector<16x32xbf16>
    %c0_62 = arith.constant 0 : index
    %c0_63 = arith.constant 0 : index
    %153 = vector.load %arg9[%c0_62, %c0_63] : memref<32x128xbf16, #tpu.memory_space<vmem>>, vector<32x128xbf16>
    %cst_64 = arith.constant dense<0.000000e+00> : vector<16x128xf32>
    %154 = tpu.matmul %152, %153, %cst_64 {dimension_numbers = #tpu.dot_dimension_numbers<[1], [0], [0], [1], [0, 0, 1, 1], [], []>} : vector<16x32xbf16>, vector<32x128xbf16>, vector<16x128xf32> -> vector<16x128xf32>
    %c0_65 = arith.constant 0 : index
    %c0_66 = arith.constant 0 : index
    %155 = vector.load %arg10[%c0_65, %c0_66] : memref<1x128xf32, #tpu.memory_space<vmem>>, vector<1x128xf32>
    %156 = vector.broadcast %155 : vector<1x128xf32> to vector<16x128xf32>
    %157 = arith.addf %154, %156 : vector<16x128xf32>
    %c0_67 = arith.constant 0 : index
    %c0_68 = arith.constant 0 : index
    %158 = vector.load %arg11[%c0_67, %c0_68] : memref<16x128xf32, #tpu.memory_space<vmem>>, vector<16x128xf32>
    tpu.vector_store %arg11[%c0_67, %c0_68], %157 {strides = array<i32>} : memref<16x128xf32, #tpu.memory_space<vmem>>, vector<16x128xf32>,
    return
  }
  func.func @transform_0(%arg0: i32) -> (i32, i32) {
    %c0_i32 = arith.constant 0 : i32
    %c0_i32_0 = arith.constant 0 : i32
    return %arg0, %c0_i32 : i32, i32
  }
  func.func @transform_1(%arg0: i32) -> (i32, i32) {
    %c0_i32 = arith.constant 0 : i32
    %c0_i32_0 = arith.constant 0 : i32
    %c0_i32_1 = arith.constant 0 : i32
    return %c0_i32, %c0_i32_0 : i32, i32
  }
  func.func @transform_2(%arg0: i32) -> (i32, i32) {
    %c0_i32 = arith.constant 0 : i32
    %c0_i32_0 = arith.constant 0 : i32
    %c0_i32_1 = arith.constant 0 : i32
    return %c0_i32, %c0_i32_0 : i32, i32
  }
  func.func @transform_3(%arg0: i32) -> (i32, i32, i32) {
    %c0_i32 = arith.constant 0 : i32
    %c0_i32_0 = arith.constant 0 : i32
    %c0_i32_1 = arith.constant 0 : i32
    %c0_i32_2 = arith.constant 0 : i32
    return %c0_i32, %c0_i32_0, %c0_i32_1 : i32, i32, i32
  }
  func.func @transform_4(%arg0: i32) -> (i32, i32) {
    %c0_i32 = arith.constant 0 : i32
    %c0_i32_0 = arith.constant 0 : i32
    %c0_i32_1 = arith.constant 0 : i32
    return %c0_i32, %c0_i32_0 : i32, i32
  }
  func.func @transform_5(%arg0: i32) -> i32 {
    %c0_i32 = arith.constant 0 : i32
    %c0_i32_0 = arith.constant 0 : i32
    return %c0_i32 : i32
  }
  func.func @transform_6(%arg0: i32) -> (i32, i32) {
    %c0_i32 = arith.constant 0 : i32
    %c0_i32_0 = arith.constant 0 : i32
    %c0_i32_1 = arith.constant 0 : i32
    return %c0_i32, %c0_i32_0 : i32, i32
  }
  func.func @transform_7(%arg0: i32) -> (i32, i32) {
    %c0_i32 = arith.constant 0 : i32
    %c0_i32_0 = arith.constant 0 : i32
    %c0_i32_1 = arith.constant 0 : i32
    return %c0_i32, %c0_i32_0 : i32, i32
  }
  func.func @transform_8(%arg0: i32) -> (i32, i32) {
    %c0_i32 = arith.constant 0 : i32
    %c0_i32_0 = arith.constant 0 : i32
    %c0_i32_1 = arith.constant 0 : i32
    return %c0_i32, %c0_i32_0 : i32, i32
  }
  func.func @transform_9(%arg0: i32) -> (i32, i32) {
    %c0_i32 = arith.constant 0 : i32
    %c0_i32_0 = arith.constant 0 : i32
    %c0_i32_1 = arith.constant 0 : i32
    return %c0_i32, %c0_i32_0 : i32, i32
  }
  func.func @transform_10(%arg0: i32) -> (i32, i32) {
    %c0_i32 = arith.constant 0 : i32
    %c0_i32_0 = arith.constant 0 : i32
    return %arg0, %c0_i32 : i32, i32
  }
}

</mosaic_0001>

<llo_original>
// kernel: tpu_custom_call.1
$region0: #{tpu_custom_call.1}
  #allocation0 [shape = 'u32[]', space=smem, size = 0x4, offset = 0x4, fixed_abs, tag = 'smem constant byte address 0x4 - core index']
  #allocation1 [shape = 'u32[144,128]{1,0:T(1,128)}', space=vmem, size = 0x12000, scoped, tag = 'internal scratch']
  %s0 = inlined_call_operand.vmem [shape: bf16[128,32], index: 0, kind: input, shape index: {}]
  %s1 = inlined_call_operand.vmem [shape: bf16[64,64], index: 1, kind: input, shape index: {}]
  %s2 = inlined_call_operand.vmem [shape: f32[1,64], index: 2, kind: input, shape index: {}]
  %s3 = inlined_call_operand.vmem [shape: bf16[6,128,64], index: 3, kind: input, shape index: {}]
  %s4 = inlined_call_operand.vmem [shape: f32[6,64], index: 4, kind: input, shape index: {}]
  %s5 = inlined_call_operand.vmem [shape: f32[7], index: 5, kind: input, shape index: {}]
  %s6 = inlined_call_operand.vmem [shape: bf16[64,32], index: 6, kind: input, shape index: {}]
  %s7 = inlined_call_operand.vmem [shape: f32[1,32], index: 7, kind: input, shape index: {}]
  %s8 = inlined_call_operand.vmem [shape: bf16[32,128], index: 8, kind: input, shape index: {}]
  %s9 = inlined_call_operand.vmem [shape: f32[1,128], index: 9, kind: input, shape index: {}]
  %s10 = inlined_call_operand.hbm [shape: f32[16,128], index: 10, kind: output, shape index: {}]
  %s11 = sld [smem:[#allocation0]]
  $region54: #{tpu_custom_call.1} parent=0
    _
  %s13 = ssub.s32 1, %s11
  %s14 = scalar_select 0, %s13, %s11
  $region1: #{tpu_custom_call.1} parent=0
    #allocation2 [shape = 'u8[512]{0}', space=smem, size = 0x200, scoped, tag = 'input window, operand 5, single buffered']
    #allocation3 [shape = 's32[1]{0}', space=sflag, size = 0x4, scoped, tag = 'scoped memory for tpu_custom_call.1']
    #allocation4 [shape = 's32[1]{0}', space=sflag, size = 0x4, scoped, tag = 'scoped memory for tpu_custom_call.1']
    #allocation5 [shape = 'u8[8192]{0}', space=vmem, size = 0x2000, scoped, tag = 'output window, operand 0, single buffered']
    %15 = vsyncpa [#allocation4], 0
    %16 = vsyncpa [#allocation3], 0
    // Predicated region
    $region2: #{tpu_custom_call.1} parent=1 // pred_check
      _
    $region3: #{tpu_custom_call.1} parent=1 // pred_check_branch
      %18 = sbr.rel (0) target = $region5
    $region4: #{tpu_custom_call.1} parent=1 // pred_region
      _
    $region5: #{tpu_custom_call.1} parent=1 // pred_fallthru
      _
    // Predicated region
    $region6: #{tpu_custom_call.1} parent=1 // pred_check
      _
    $region7: #{tpu_custom_call.1} parent=1 // pred_check_branch
      %20 = sbr.rel (0) target = $region9
    $region8: #{tpu_custom_call.1} parent=1 // pred_region
      _
    $region9: #{tpu_custom_call.1} parent=1 // pred_fallthru
      _
    // Predicated region
    $region10: #{tpu_custom_call.1} parent=1 // pred_check
      _
    $region11: #{tpu_custom_call.1} parent=1 // pred_check_branch
      %22 = sbr.rel (0) target = $region13
    $region12: #{tpu_custom_call.1} parent=1 // pred_region
      _
    $region13: #{tpu_custom_call.1} parent=1 // pred_fallthru
      _
    // Predicated region
    $region14: #{tpu_custom_call.1} parent=1 // pred_check
      _
    $region15: #{tpu_custom_call.1} parent=1 // pred_check_branch
      %24 = sbr.rel (0) target = $region17
    $region16: #{tpu_custom_call.1} parent=1 // pred_region
      _
    $region17: #{tpu_custom_call.1} parent=1 // pred_fallthru
      _
    // Predicated region
    $region18: #{tpu_custom_call.1} parent=1 // pred_check
      _
    $region19: #{tpu_custom_call.1} parent=1 // pred_check_branch
      %26 = sbr.rel (0) target = $region21
    $region20: #{tpu_custom_call.1} parent=1 // pred_region
      _
    $region21: #{tpu_custom_call.1} parent=1 // pred_fallthru
      _
    // Predicated region
    $region22: #{tpu_custom_call.1} parent=1 // pred_check
      _
    $region23: #{tpu_custom_call.1} parent=1 // pred_check_branch
      %28 = sbr.rel (0) target = $region25
    $region24: #{tpu_custom_call.1} parent=1 // pred_region
      %s30 = ssub.s32 16, 16
      %31 = vsyncadd [#allocation4], %s30
      %s33 = sshll.u32 %s5, 4
      %s34 = int_to_ptr.vmem [resolvable:$true] %s33
      %36 = dma.vmem_to_smem %s34, 16, [#allocation2], [#allocation4]
    $region25: #{tpu_custom_call.1} parent=1 // pred_fallthru
      _
    // Predicated region
    $region26: #{tpu_custom_call.1} parent=1 // pred_check
      _
    $region27: #{tpu_custom_call.1} parent=1 // pred_check_branch
      %38 = sbr.rel (0) target = $region29
    $region28: #{tpu_custom_call.1} parent=1 // pred_region
      _
    $region29: #{tpu_custom_call.1} parent=1 // pred_fallthru
      _
    // Predicated region
    $region30: #{tpu_custom_call.1} parent=1 // pred_check
      _
    $region31: #{tpu_custom_call.1} parent=1 // pred_check_branch
      %40 = sbr.rel (0) target = $region33
    $region32: #{tpu_custom_call.1} parent=1 // pred_region
      _
    $region33: #{tpu_custom_call.1} parent=1 // pred_fallthru
      _
    // Predicated region
    $region34: #{tpu_custom_call.1} parent=1 // pred_check
      _
    $region35: #{tpu_custom_call.1} parent=1 // pred_check_branch
      %42 = sbr.rel (0) target = $region37
    $region36: #{tpu_custom_call.1} parent=1 // pred_region
      _
    $region37: #{tpu_custom_call.1} parent=1 // pred_fallthru
      _
    // Predicated region
    $region38: #{tpu_custom_call.1} parent=1 // pred_check
      _
    $region39: #{tpu_custom_call.1} parent=1 // pred_check_branch
      %44 = sbr.rel (0) target = $region41
    $region40: #{tpu_custom_call.1} parent=1 // pred_region
      _
    $region41: #{tpu_custom_call.1} parent=1 // pred_fallthru
      _
    // Predicated region
    $region42: #{tpu_custom_call.1} parent=1 // pred_check
      _
    $region43: #{tpu_custom_call.1} parent=1 // pred_check_branch
      %46 = sbr.rel (0) target = $region45
    $region44: #{tpu_custom_call.1} parent=1 // pred_region
      %47 = dma.done [#allocation4], 16
    $region45: #{tpu_custom_call.1} parent=1 // pred_fallthru
      _
    %48 = sfence
    %v50 = vld [vmem:[%s0] sm:$0xf]
    %v51 = vld [vmem:[%s0 + $0x4] sm:$0xf]
    %v52 = vld [vmem:[%s0 + $0x8] sm:$0xf]
    %v53 = vld [vmem:[%s0 + $0xc] sm:$0xf]
    %v54 = vld [vmem:[%s0 + $0x10] sm:$0xf]
    %v55 = vld [vmem:[%s0 + $0x14] sm:$0xf]
    %v56 = vld [vmem:[%s0 + $0x18] sm:$0xf]
    %v57 = vld [vmem:[%s0 + $0x1c] sm:$0xf]
    %v58 = vld [vmem:[%s0 + $0x20] sm:$0xf]
    %v59 = vld [vmem:[%s0 + $0x24] sm:$0xf]
    %v60 = vld [vmem:[%s0 + $0x28] sm:$0xf]
    %v61 = vld [vmem:[%s0 + $0x2c] sm:$0xf]
    %v62 = vld [vmem:[%s0 + $0x30] sm:$0xf]
    %v63 = vld [vmem:[%s0 + $0x34] sm:$0xf]
    %v64 = vld [vmem:[%s0 + $0x38] sm:$0xf]
    %v65 = vld [vmem:[%s0 + $0x3c] sm:$0xf]
    %v66 = vld [vmem:[%s1] sm:$0xf]
    %v67 = vld [vmem:[%s1 + $0x4] sm:$0xf]
    %v68 = vld [vmem:[%s1 + $0x8] sm:$0xf]
    %v69 = vld [vmem:[%s1 + $0xc] sm:$0xf]
    %v70 = vld [vmem:[%s1 + $0x10] sm:$0xf]
    %v71 = vld [vmem:[%s1 + $0x14] sm:$0xf]
    %v72 = vld [vmem:[%s1 + $0x18] sm:$0xf]
    %v73 = vld [vmem:[%s1 + $0x1c] sm:$0xf]
    %v74 = vld [vmem:[%s2] sm:$0x1]
    %s75 = sld [smem:[#allocation2]]
    %v90 = vunpack.c.l.b16 %v50
    %v91 = vunpack.c.l.b16 %v51
    %v92 = vunpack.c.l.b16 %v52
    %v93 = vunpack.c.l.b16 %v53
    %v94 = vunpack.c.l.b16 %v54
    %v95 = vunpack.c.l.b16 %v55
    %v96 = vunpack.c.l.b16 %v56
    %v97 = vunpack.c.l.b16 %v57
    %v98 = vunpack.c.l.b16 %v58
    %v99 = vunpack.c.l.b16 %v59
    %v100 = vunpack.c.l.b16 %v60
    %v101 = vunpack.c.l.b16 %v61
    %v102 = vunpack.c.l.b16 %v62
    %v103 = vunpack.c.l.b16 %v63
    %v104 = vpack.c.b16 %v91, %v90
    %v105 = vpack.c.b16 %v93, %v92
    %v106 = vpack.c.b16 %v95, %v94
    %v107 = vpack.c.b16 %v97, %v96
    %v108 = vpack.c.b16 %v99, %v98
    %v109 = vpack.c.b16 %v101, %v100
    %v110 = vpack.c.b16 %v103, %v102
    %v113 = vunpack.c.l.b16 %v64
    %v114 = vunpack.c.l.b16 %v65
    %v115 = vpack.c.b16 %v114, %v113
    %116 = vrot.lane.b32.xlu0 %v105, 32
    %v117 = vpop.permute.xlu0 %116
    %118 = vrot.lane.b32.xlu0 %v106, 32
    %v119 = vpop.permute.xlu0 %118
    %120 = vrot.lane.b32.xlu0 %v107, 32
    %v121 = vpop.permute.xlu0 %120
    %122 = vrot.lane.b32.xlu0 %v108, 32
    %v123 = vpop.permute.xlu0 %122
    %124 = vrot.lane.b32.xlu0 %v109, 32
    %v125 = vpop.permute.xlu0 %124
    %126 = vrot.lane.b32.xlu0 %v110, 32
    %v127 = vpop.permute.xlu0 %126
    %128 = vrot.lane.b32.xlu0 %v115, 32
    %v129 = vpop.permute.xlu0 %128
    %vm130 = vcmask 261120
    %v133 = vsel %vm130, %v104, %v117
    %v136 = vsel %vm130, %v105, %v119
    %v139 = vsel %vm130, %v106, %v121
    %v142 = vsel %vm130, %v107, %v123
    %v145 = vsel %vm130, %v108, %v125
    %v148 = vsel %vm130, %v109, %v127
    %v151 = vsel %vm130, %v110, %v129
    %v153 = vlaneseq
    %v154 = vshrl.u32 %v153, 7
    %v155 = vsub.s32 0, %v154
    %v156 = vrot.slane %v74, %v155
    %v166 = vunpack.c.l.b16 %v66
    %v167 = vunpack.c.l.b16 %v67
    %v168 = vunpack.c.l.b16 %v68
    %v169 = vunpack.c.l.b16 %v69
    %v170 = vunpack.c.l.b16 %v70
    %v171 = vunpack.c.l.b16 %v71
    %v172 = vunpack.c.l.b16 %v72
    %v173 = vunpack.c.l.b16 %v73
    %v174 = vpack.c.b16 %v167, %v166
    %v175 = vpack.c.b16 %v169, %v168
    %v176 = vpack.c.b16 %v171, %v170
    %v177 = vpack.c.b16 %v173, %v172
    %vm182 = vcmask 523264
    %v183 = vsel %vm182, %v133, 0
    %v185 = vsel %vm182, %v136, 0
    %v187 = vsel %vm182, %v139, 0
    %v189 = vsel %vm182, %v142, 0
    %v191 = vsel %vm182, %v145, 0
    %v193 = vsel %vm182, %v148, 0
    %v195 = vsel %vm182, %v151, 0
    %197 = vmatprep.subr.bf16.mxu0 0
    %198 = vmatpush1.bf16.msra.mxu0 %v174
    %199 = vmatprep.subr.bf16.mxu0 0
    %200 = vmatpush1.bf16.msra.mxu0 %v175
    %201 = vmatprep.subr.bf16.mxu0 0
    %202 = vmatpush1.bf16.msra.mxu0 %v176
    %203 = vmatprep.subr.bf16.mxu0 0
    %204 = vmatpush1.bf16.msra.mxu0 %v177
    %205 = vmatprep.subr.bf16.mxu0 0
    %206 = vmatpush1.bf16.msra.mxu0 0
    %207 = vmatprep.subr.bf16.mxu0 0
    %208 = vmatpush1.bf16.msra.mxu0 0
    %209 = vmatprep.subr.bf16.mxu0 0
    %210 = vmatpush1.bf16.msra.mxu0 0
    %211 = vmatprep.subr.bf16.mxu0 0
    %212 = vmatpush1.bf16.msra.mxu0 0
    %213 = vmatprep.subr.bf16.mxu0 0
    %214 = vmatpush1.bf16.msra.mxu0 0
    %215 = vmatprep.subr.bf16.mxu0 0
    %216 = vmatpush1.bf16.msra.mxu0 0
    %217 = vmatprep.subr.bf16.mxu0 0
    %218 = vmatpush1.bf16.msra.mxu0 0
    %219 = vmatprep.subr.bf16.mxu0 0
    %220 = vmatpush1.bf16.msra.mxu0 0
    %221 = vmatprep.subr.bf16.mxu0 0
    %222 = vmatpush1.bf16.msra.mxu0 0
    %223 = vmatprep.subr.bf16.mxu0 0
    %224 = vmatpush1.bf16.msra.mxu0 0
    %225 = vmatprep.subr.bf16.mxu0 0
    %226 = vmatpush1.bf16.msra.mxu0 0
    %227 = vmatprep.subr.bf16.mxu0 0
    %228 = vmatpush1.bf16.msra.mxu0 0
    %229 = vmatprep.mubr.bf16.mxu0 0
    %230 = vmatmul.mubr.bf16.gmra.mrb[0].mxu0 %v183
    %v231 = vpop.f32.mrb[0].mxu0
    %v232 = vadd.f32 %v156, %v231
    %v233 = vpop.f32.mrb[0].mxu0
    %v234 = vpop.f32.mrb[0].mxu0
    %v235 = vadd.f32 %v156, %v234
    %v236 = vpop.f32.mrb[0].mxu0
    %237 = vmatprep.mubr.bf16.mxu0 0
    %238 = vmatmul.mubr.bf16.gmra.mrb[0].mxu0 %v185
    %v239 = vpop.f32.mrb[0].mxu0
    %v240 = vadd.f32 %v156, %v239
    %v241 = vpop.f32.mrb[0].mxu0
    %v242 = vpop.f32.mrb[0].mxu0
    %v243 = vadd.f32 %v156, %v242
    %v244 = vpop.f32.mrb[0].mxu0
    %245 = vmatprep.mubr.bf16.mxu0 0
    %246 = vmatmul.mubr.bf16.gmra.mrb[0].mxu0 %v187
    %v247 = vpop.f32.mrb[0].mxu0
    %v248 = vadd.f32 %v156, %v247
    %v249 = vpop.f32.mrb[0].mxu0
    %v250 = vpop.f32.mrb[0].mxu0
    %v251 = vadd.f32 %v156, %v250
    %v252 = vpop.f32.mrb[0].mxu0
    %253 = vmatprep.mubr.bf16.mxu0 0
    %254 = vmatmul.mubr.bf16.gmra.mrb[0].mxu0 %v189
    %v255 = vpop.f32.mrb[0].mxu0
    %v256 = vadd.f32 %v156, %v255
    %v257 = vpop.f32.mrb[0].mxu0
    %v258 = vpop.f32.mrb[0].mxu0
    %v259 = vadd.f32 %v156, %v258
    %v260 = vpop.f32.mrb[0].mxu0
    %261 = vmatprep.mubr.bf16.mxu0 0
    %262 = vmatmul.mubr.bf16.gmra.mrb[0].mxu0 %v191
    %v263 = vpop.f32.mrb[0].mxu0
    %v264 = vadd.f32 %v156, %v263
    %v265 = vpop.f32.mrb[0].mxu0
    %v266 = vpop.f32.mrb[0].mxu0
    %v267 = vadd.f32 %v156, %v266
    %v268 = vpop.f32.mrb[0].mxu0
    %269 = vmatprep.mubr.bf16.mxu0 0
    %270 = vmatmul.mubr.bf16.gmra.mrb[0].mxu0 %v193
    %v271 = vpop.f32.mrb[0].mxu0
    %v272 = vadd.f32 %v156, %v271
    %v273 = vpop.f32.mrb[0].mxu0
    %v274 = vpop.f32.mrb[0].mxu0
    %v275 = vadd.f32 %v156, %v274
    %v276 = vpop.f32.mrb[0].mxu0
    %277 = vmatprep.mubr.bf16.mxu0 0
    %278 = vmatmul.mubr.bf16.gmra.mrb[0].mxu0 %v195
    %v279 = vpop.f32.mrb[0].mxu0
    %v280 = vadd.f32 %v156, %v279
    %v281 = vpop.f32.mrb[0].mxu0
    %v282 = vpop.f32.mrb[0].mxu0
    %v283 = vadd.f32 %v156, %v282
    %v284 = vpop.f32.mrb[0].mxu0
    %285 = vdwg.mxu0
    %vm286 = vcmp.gt.f32.partialorder %v232, 0.0
    %vm287 = vcmp.gt.f32.partialorder %v235, 0.0
    %vm288 = vcmp.gt.f32.partialorder %v240, 0.0
    %vm289 = vcmp.gt.f32.partialorder %v243, 0.0
    %vm290 = vcmp.gt.f32.partialorder %v248, 0.0
    %vm291 = vcmp.gt.f32.partialorder %v251, 0.0
    %vm292 = vcmp.gt.f32.partialorder %v256, 0.0
    %vm293 = vcmp.gt.f32.partialorder %v259, 0.0
    %vm294 = vcmp.gt.f32.partialorder %v264, 0.0
    %vm295 = vcmp.gt.f32.partialorder %v267, 0.0
    %vm296 = vcmp.gt.f32.partialorder %v272, 0.0
    %vm297 = vcmp.gt.f32.partialorder %v275, 0.0
    %vm298 = vcmp.gt.f32.partialorder %v280, 0.0
    %vm299 = vcmp.gt.f32.partialorder %v283, 0.0
    %v300 = vstv %s75
    %v301 = vmul.f32 %v300, %v232
    %v302 = vmul.f32 %v300, %v235
    %v303 = vmul.f32 %v300, %v240
    %v304 = vmul.f32 %v300, %v243
    %v305 = vmul.f32 %v300, %v248
    %v306 = vmul.f32 %v300, %v251
    %v307 = vmul.f32 %v300, %v256
    %v308 = vmul.f32 %v300, %v259
    %v309 = vmul.f32 %v300, %v264
    %v310 = vmul.f32 %v300, %v267
    %v311 = vmul.f32 %v300, %v272
    %v312 = vmul.f32 %v300, %v275
    %v313 = vmul.f32 %v300, %v280
    %v314 = vmul.f32 %v300, %v283
    %v315 = vsel %vm286, %v232, %v301
    %v316 = vsel %vm287, %v235, %v302
    %v317 = vsel %vm288, %v240, %v303
    %v318 = vsel %vm289, %v243, %v304
    %v319 = vsel %vm290, %v248, %v305
    %v320 = vsel %vm291, %v251, %v306
    %v321 = vsel %vm292, %v256, %v307
    %v322 = vsel %vm293, %v259, %v308
    %v323 = vsel %vm294, %v264, %v309
    %v324 = vsel %vm295, %v267, %v310
    %v325 = vsel %vm296, %v272, %v311
    %v326 = vsel %vm297, %v275, %v312
    %v327 = vsel %vm298, %v280, %v313
    %v328 = vsel %vm299, %v283, %v314
    %v329 = vpack.c.bf16 %v316, %v315
    %v330 = vpack.c.bf16 %v318, %v317
    %v331 = vpack.c.bf16 %v320, %v319
    %v332 = vpack.c.bf16 %v322, %v321
    %v333 = vpack.c.bf16 %v324, %v323
    %v334 = vpack.c.bf16 %v326, %v325
    %v335 = vpack.c.bf16 %v328, %v327
    %v336 = vld [vmem:[%s3] sm:$0xf]
    %v337 = vld [vmem:[%s3 + $0x4] sm:$0xf]
    %v338 = vld [vmem:[%s3 + $0x8] sm:$0xf]
    %v339 = vld [vmem:[%s3 + $0xc] sm:$0xf]
    %v340 = vld [vmem:[%s3 + $0x10] sm:$0xf]
    %v341 = vld [vmem:[%s3 + $0x14] sm:$0xf]
    %v342 = vld [vmem:[%s3 + $0x18] sm:$0xf]
    %v343 = vld [vmem:[%s3 + $0x1c] sm:$0xf]
    %v344 = vld [vmem:[%s3 + $0x20] sm:$0xf]
    %v345 = vld [vmem:[%s3 + $0x24] sm:$0xf]
    %v346 = vld [vmem:[%s3 + $0x28] sm:$0xf]
    %v347 = vld [vmem:[%s3 + $0x2c] sm:$0xf]
    %v348 = vld [vmem:[%s3 + $0x30] sm:$0xf]
    %v349 = vld [vmem:[%s3 + $0x34] sm:$0xf]
    %v350 = vld [vmem:[%s3 + $0x38] sm:$0xf]
    %v351 = vld [vmem:[%s3 + $0x3c] sm:$0xf]
    %v352 = vld [vmem:[%s4] sm:$0x1]
    %s353 = sld [smem:[#allocation2 + $0x1]]
    %360 = vrot.lane.b32.xlu0 %v330, 64
    %v361 = vpop.permute.xlu0 %360
    %362 = vrot.lane.b32.xlu0 %v331, 64
    %v363 = vpop.permute.xlu0 %362
    %364 = vrot.lane.b32.xlu0 %v332, 64
    %v365 = vpop.permute.xlu0 %364
    %366 = vrot.lane.b32.xlu0 %v333, 64
    %v367 = vpop.permute.xlu0 %366
    %368 = vrot.lane.b32.xlu0 %v334, 64
    %v369 = vpop.permute.xlu0 %368
    %370 = vrot.lane.b32.xlu0 %v335, 64
    %v371 = vpop.permute.xlu0 %370
    %v374 = vsel %vm182, %v329, %v361
    %v378 = vsel %vm182, %v330, %v363
    %v382 = vsel %vm182, %v331, %v365
    %v386 = vsel %vm182, %v332, %v367
    %v390 = vsel %vm182, %v333, %v369
    %v394 = vsel %vm182, %v334, %v371
    %v396 = vlaneseq
    %v397 = vshrl.u32 %v396, 7
    %v398 = vsub.s32 0, %v397
    %v399 = vrot.slane %v352, %v398
    %v416 = vunpack.c.l.b16 %v336
    %v417 = vunpack.c.l.b16 %v337
    %v418 = vunpack.c.l.b16 %v338
    %v419 = vunpack.c.l.b16 %v339
    %v420 = vunpack.c.l.b16 %v340
    %v421 = vunpack.c.l.b16 %v341
    %v422 = vunpack.c.l.b16 %v342
    %v423 = vunpack.c.l.b16 %v343
    %v424 = vunpack.c.l.b16 %v344
    %v425 = vunpack.c.l.b16 %v345
    %v426 = vunpack.c.l.b16 %v346
    %v427 = vunpack.c.l.b16 %v347
    %v428 = vunpack.c.l.b16 %v348
    %v429 = vunpack.c.l.b16 %v349
    %v430 = vunpack.c.l.b16 %v350
    %v431 = vunpack.c.l.b16 %v351
    %v432 = vpack.c.b16 %v417, %v416
    %v433 = vpack.c.b16 %v419, %v418
    %v434 = vpack.c.b16 %v421, %v420
    %v435 = vpack.c.b16 %v423, %v422
    %v436 = vpack.c.b16 %v425, %v424
    %v437 = vpack.c.b16 %v427, %v426
    %v438 = vpack.c.b16 %v429, %v428
    %v439 = vpack.c.b16 %v431, %v430
    %448 = vmatprep.subr.bf16.mxu0 0
    %449 = vmatpush1.bf16.msra.mxu0 %v432
    %450 = vmatprep.subr.bf16.mxu0 0
    %451 = vmatpush1.bf16.msra.mxu0 %v433
    %452 = vmatprep.subr.bf16.mxu0 0
    %453 = vmatpush1.bf16.msra.mxu0 %v434
    %454 = vmatprep.subr.bf16.mxu0 0
    %455 = vmatpush1.bf16.msra.mxu0 %v435
    %456 = vmatprep.subr.bf16.mxu0 0
    %457 = vmatpush1.bf16.msra.mxu0 %v436
    %458 = vmatprep.subr.bf16.mxu0 0
    %459 = vmatpush1.bf16.msra.mxu0 %v437
    %460 = vmatprep.subr.bf16.mxu0 0
    %461 = vmatpush1.bf16.msra.mxu0 %v438
    %462 = vmatprep.subr.bf16.mxu0 0
    %463 = vmatpush1.bf16.msra.mxu0 %v439
    %464 = vmatprep.subr.bf16.mxu0 0
    %465 = vmatpush1.bf16.msra.mxu0 0
    %466 = vmatprep.subr.bf16.mxu0 0
    %467 = vmatpush1.bf16.msra.mxu0 0
    %468 = vmatprep.subr.bf16.mxu0 0
    %469 = vmatpush1.bf16.msra.mxu0 0
    %470 = vmatprep.subr.bf16.mxu0 0
    %471 = vmatpush1.bf16.msra.mxu0 0
    %472 = vmatprep.subr.bf16.mxu0 0
    %473 = vmatpush1.bf16.msra.mxu0 0
    %474 = vmatprep.subr.bf16.mxu0 0
    %475 = vmatpush1.bf16.msra.mxu0 0
    %476 = vmatprep.subr.bf16.mxu0 0
    %477 = vmatpush1.bf16.msra.mxu0 0
    %478 = vmatprep.subr.bf16.mxu0 0
    %479 = vmatpush1.bf16.msra.mxu0 0
    %480 = vmatprep.mubr.bf16.mxu0 0
    %481 = vmatmul.mubr.bf16.gmra.mrb[0].mxu0 %v374
    %v482 = vpop.f32.mrb[0].mxu0
    %v483 = vadd.f32 %v399, %v482
    %v484 = vpop.f32.mrb[0].mxu0
    %v485 = vpop.f32.mrb[0].mxu0
    %v486 = vadd.f32 %v399, %v485
    %v487 = vpop.f32.mrb[0].mxu0
    %488 = vmatprep.mubr.bf16.mxu0 0
    %489 = vmatmul.mubr.bf16.gmra.mrb[0].mxu0 %v378
    %v490 = vpop.f32.mrb[0].mxu0
    %v491 = vadd.f32 %v399, %v490
    %v492 = vpop.f32.mrb[0].mxu0
    %v493 = vpop.f32.mrb[0].mxu0
    %v494 = vadd.f32 %v399, %v493
    %v495 = vpop.f32.mrb[0].mxu0
    %496 = vmatprep.mubr.bf16.mxu0 0
    %497 = vmatmul.mubr.bf16.gmra.mrb[0].mxu0 %v382
    %v498 = vpop.f32.mrb[0].mxu0
    %v499 = vadd.f32 %v399, %v498
    %v500 = vpop.f32.mrb[0].mxu0
    %v501 = vpop.f32.mrb[0].mxu0
    %v502 = vadd.f32 %v399, %v501
    %v503 = vpop.f32.mrb[0].mxu0
    %504 = vmatprep.mubr.bf16.mxu0 0
    %505 = vmatmul.mubr.bf16.gmra.mrb[0].mxu0 %v386
    %v506 = vpop.f32.mrb[0].mxu0
    %v507 = vadd.f32 %v399, %v506
    %v508 = vpop.f32.mrb[0].mxu0
    %v509 = vpop.f32.mrb[0].mxu0
    %v510 = vadd.f32 %v399, %v509
    %v511 = vpop.f32.mrb[0].mxu0
    %512 = vmatprep.mubr.bf16.mxu0 0
    %513 = vmatmul.mubr.bf16.gmra.mrb[0].mxu0 %v390
    %v514 = vpop.f32.mrb[0].mxu0
    %v515 = vadd.f32 %v399, %v514
    %v516 = vpop.f32.mrb[0].mxu0
    %v517 = vpop.f32.mrb[0].mxu0
    %v518 = vadd.f32 %v399, %v517
    %v519 = vpop.f32.mrb[0].mxu0
    %520 = vmatprep.mubr.bf16.mxu0 0
    %521 = vmatmul.mubr.bf16.gmra.mrb[0].mxu0 %v394
    %v522 = vpop.f32.mrb[0].mxu0
    %v523 = vadd.f32 %v399, %v522
    %v524 = vpop.f32.mrb[0].mxu0
    %v525 = vpop.f32.mrb[0].mxu0
    %v526 = vadd.f32 %v399, %v525
    %v527 = vpop.f32.mrb[0].mxu0
    %528 = vdwg.mxu0
    %vm529 = vcmp.gt.f32.partialorder %v483, 0.0
    %vm530 = vcmp.gt.f32.partialorder %v486, 0.0
    %vm531 = vcmp.gt.f32.partialorder %v491, 0.0
    %vm532 = vcmp.gt.f32.partialorder %v494, 0.0
    %vm533 = vcmp.gt.f32.partialorder %v499, 0.0
    %vm534 = vcmp.gt.f32.partialorder %v502, 0.0
    %vm535 = vcmp.gt.f32.partialorder %v507, 0.0
    %vm536 = vcmp.gt.f32.partialorder %v510, 0.0
    %vm537 = vcmp.gt.f32.partialorder %v515, 0.0
    %vm538 = vcmp.gt.f32.partialorder %v518, 0.0
    %vm539 = vcmp.gt.f32.partialorder %v523, 0.0
    %vm540 = vcmp.gt.f32.partialorder %v526, 0.0
    %v541 = vstv %s353
    %v542 = vmul.f32 %v541, %v483
    %v543 = vmul.f32 %v541, %v486
    %v544 = vmul.f32 %v541, %v491
    %v545 = vmul.f32 %v541, %v494
    %v546 = vmul.f32 %v541, %v499
    %v547 = vmul.f32 %v541, %v502
    %v548 = vmul.f32 %v541, %v507
    %v549 = vmul.f32 %v541, %v510
    %v550 = vmul.f32 %v541, %v515
    %v551 = vmul.f32 %v541, %v518
    %v552 = vmul.f32 %v541, %v523
    %v553 = vmul.f32 %v541, %v526
    %v554 = vsel %vm529, %v483, %v542
    %v555 = vsel %vm530, %v486, %v543
    %v556 = vsel %vm531, %v491, %v544
    %v557 = vsel %vm532, %v494, %v545
    %v558 = vsel %vm533, %v499, %v546
    %v559 = vsel %vm534, %v502, %v547
    %v560 = vsel %vm535, %v507, %v548
    %v561 = vsel %vm536, %v510, %v549
    %v562 = vsel %vm537, %v515, %v550
    %v563 = vsel %vm538, %v518, %v551
    %v564 = vsel %vm539, %v523, %v552
    %v565 = vsel %vm540, %v526, %v553
    %v566 = vpack.c.bf16 %v555, %v554
    %v567 = vpack.c.bf16 %v557, %v556
    %v568 = vpack.c.bf16 %v559, %v558
    %v569 = vpack.c.bf16 %v561, %v560
    %v570 = vpack.c.bf16 %v563, %v562
    %v571 = vpack.c.bf16 %v565, %v564
    %s572 = scalar_lea.vmem %s3, 64
    %v573 = vld [vmem:[%s572] sm:$0xf]
    %v574 = vld [vmem:[%s572 + $0x4] sm:$0xf]
    %v575 = vld [vmem:[%s572 + $0x8] sm:$0xf]
    %v576 = vld [vmem:[%s572 + $0xc] sm:$0xf]
    %v577 = vld [vmem:[%s572 + $0x10] sm:$0xf]
    %v578 = vld [vmem:[%s572 + $0x14] sm:$0xf]
    %v579 = vld [vmem:[%s572 + $0x18] sm:$0xf]
    %v580 = vld [vmem:[%s572 + $0x1c] sm:$0xf]
    %v581 = vld [vmem:[%s572 + $0x20] sm:$0xf]
    %v582 = vld [vmem:[%s572 + $0x24] sm:$0xf]
    %v583 = vld [vmem:[%s572 + $0x28] sm:$0xf]
    %v584 = vld [vmem:[%s572 + $0x2c] sm:$0xf]
    %v585 = vld [vmem:[%s572 + $0x30] sm:$0xf]
    %v586 = vld [vmem:[%s572 + $0x34] sm:$0xf]
    %v587 = vld [vmem:[%s572 + $0x38] sm:$0xf]
    %v588 = vld [vmem:[%s572 + $0x3c] sm:$0xf]
    %v589 = vld [vmem:[%s4 + $0x1] sm:$0x1]
    %s590 = sld [smem:[#allocation2 + $0x2]]
    %596 = vrot.lane.b32.xlu0 %v567, 64
    %v597 = vpop.permute.xlu0 %596
    %598 = vrot.lane.b32.xlu0 %v568, 64
    %v599 = vpop.permute.xlu0 %598
    %600 = vrot.lane.b32.xlu0 %v569, 64
    %v601 = vpop.permute.xlu0 %600
    %602 = vrot.lane.b32.xlu0 %v570, 64
    %v603 = vpop.permute.xlu0 %602
    %604 = vrot.lane.b32.xlu0 %v571, 64
    %v605 = vpop.permute.xlu0 %604
    %v608 = vsel %vm182, %v566, %v597
    %v612 = vsel %vm182, %v567, %v599
    %v616 = vsel %vm182, %v568, %v601
    %v620 = vsel %vm182, %v569, %v603
    %v624 = vsel %vm182, %v570, %v605
    %v626 = vlaneseq
    %v627 = vshrl.u32 %v626, 7
    %v628 = vsub.s32 0, %v627
    %v629 = vrot.slane %v589, %v628
    %v646 = vunpack.c.l.b16 %v573
    %v647 = vunpack.c.l.b16 %v574
    %v648 = vunpack.c.l.b16 %v575
    %v649 = vunpack.c.l.b16 %v576
    %v650 = vunpack.c.l.b16 %v577
    %v651 = vunpack.c.l.b16 %v578
    %v652 = vunpack.c.l.b16 %v579
    %v653 = vunpack.c.l.b16 %v580
    %v654 = vunpack.c.l.b16 %v581
    %v655 = vunpack.c.l.b16 %v582
    %v656 = vunpack.c.l.b16 %v583
    %v657 = vunpack.c.l.b16 %v584
    %v658 = vunpack.c.l.b16 %v585
    %v659 = vunpack.c.l.b16 %v586
    %v660 = vunpack.c.l.b16 %v587
    %v661 = vunpack.c.l.b16 %v588
    %v662 = vpack.c.b16 %v647, %v646
    %v663 = vpack.c.b16 %v649, %v648
    %v664 = vpack.c.b16 %v651, %v650
    %v665 = vpack.c.b16 %v653, %v652
    %v666 = vpack.c.b16 %v655, %v654
    %v667 = vpack.c.b16 %v657, %v656
    %v668 = vpack.c.b16 %v659, %v658
    %v669 = vpack.c.b16 %v661, %v660
    %678 = vmatprep.subr.bf16.mxu0 0
    %679 = vmatpush1.bf16.msra.mxu0 %v662
    %680 = vmatprep.subr.bf16.mxu0 0
    %681 = vmatpush1.bf16.msra.mxu0 %v663
    %682 = vmatprep.subr.bf16.mxu0 0
    %683 = vmatpush1.bf16.msra.mxu0 %v664
    %684 = vmatprep.subr.bf16.mxu0 0
    %685 = vmatpush1.bf16.msra.mxu0 %v665
    %686 = vmatprep.subr.bf16.mxu0 0
    %687 = vmatpush1.bf16.msra.mxu0 %v666
    %688 = vmatprep.subr.bf16.mxu0 0
    %689 = vmatpush1.bf16.msra.mxu0 %v667
    %690 = vmatprep.subr.bf16.mxu0 0
    %691 = vmatpush1.bf16.msra.mxu0 %v668
    %692 = vmatprep.subr.bf16.mxu0 0
    %693 = vmatpush1.bf16.msra.mxu0 %v669
    %694 = vmatprep.subr.bf16.mxu0 0
    %695 = vmatpush1.bf16.msra.mxu0 0
    %696 = vmatprep.subr.bf16.mxu0 0
    %697 = vmatpush1.bf16.msra.mxu0 0
    %698 = vmatprep.subr.bf16.mxu0 0
    %699 = vmatpush1.bf16.msra.mxu0 0
    %700 = vmatprep.subr.bf16.mxu0 0
    %701 = vmatpush1.bf16.msra.mxu0 0
    %702 = vmatprep.subr.bf16.mxu0 0
    %703 = vmatpush1.bf16.msra.mxu0 0
    %704 = vmatprep.subr.bf16.mxu0 0
    %705 = vmatpush1.bf16.msra.mxu0 0
    %706 = vmatprep.subr.bf16.mxu0 0
    %707 = vmatpush1.bf16.msra.mxu0 0
    %708 = vmatprep.subr.bf16.mxu0 0
    %709 = vmatpush1.bf16.msra.mxu0 0
    %710 = vmatprep.mubr.bf16.mxu0 0
    %711 = vmatmul.mubr.bf16.gmra.mrb[0].mxu0 %v608
    %v712 = vpop.f32.mrb[0].mxu0
    %v713 = vadd.f32 %v629, %v712
    %v714 = vpop.f32.mrb[0].mxu0
    %v715 = vpop.f32.mrb[0].mxu0
    %v716 = vadd.f32 %v629, %v715
    %v717 = vpop.f32.mrb[0].mxu0
    %718 = vmatprep.mubr.bf16.mxu0 0
    %719 = vmatmul.mubr.bf16.gmra.mrb[0].mxu0 %v612
    %v720 = vpop.f32.mrb[0].mxu0
    %v721 = vadd.f32 %v629, %v720
    %v722 = vpop.f32.mrb[0].mxu0
    %v723 = vpop.f32.mrb[0].mxu0
    %v724 = vadd.f32 %v629, %v723
    %v725 = vpop.f32.mrb[0].mxu0
    %726 = vmatprep.mubr.bf16.mxu0 0
    %727 = vmatmul.mubr.bf16.gmra.mrb[0].mxu0 %v616
    %v728 = vpop.f32.mrb[0].mxu0
    %v729 = vadd.f32 %v629, %v728
    %v730 = vpop.f32.mrb[0].mxu0
    %v731 = vpop.f32.mrb[0].mxu0
    %v732 = vadd.f32 %v629, %v731
    %v733 = vpop.f32.mrb[0].mxu0
    %734 = vmatprep.mubr.bf16.mxu0 0
    %735 = vmatmul.mubr.bf16.gmra.mrb[0].mxu0 %v620
    %v736 = vpop.f32.mrb[0].mxu0
    %v737 = vadd.f32 %v629, %v736
    %v738 = vpop.f32.mrb[0].mxu0
    %v739 = vpop.f32.mrb[0].mxu0
    %v740 = vadd.f32 %v629, %v739
    %v741 = vpop.f32.mrb[0].mxu0
    %742 = vmatprep.mubr.bf16.mxu0 0
    %743 = vmatmul.mubr.bf16.gmra.mrb[0].mxu0 %v624
    %v744 = vpop.f32.mrb[0].mxu0
    %v745 = vadd.f32 %v629, %v744
    %v746 = vpop.f32.mrb[0].mxu0
    %v747 = vpop.f32.mrb[0].mxu0
    %v748 = vadd.f32 %v629, %v747
    %v749 = vpop.f32.mrb[0].mxu0
    %750 = vdwg.mxu0
    %vm751 = vcmp.gt.f32.partialorder %v713, 0.0
    %vm752 = vcmp.gt.f32.partialorder %v716, 0.0
    %vm753 = vcmp.gt.f32.partialorder %v721, 0.0
    %vm754 = vcmp.gt.f32.partialorder %v724, 0.0
    %vm755 = vcmp.gt.f32.partialorder %v729, 0.0
    %vm756 = vcmp.gt.f32.partialorder %v732, 0.0
    %vm757 = vcmp.gt.f32.partialorder %v737, 0.0
    %vm758 = vcmp.gt.f32.partialorder %v740, 0.0
    %vm759 = vcmp.gt.f32.partialorder %v745, 0.0
    %vm760 = vcmp.gt.f32.partialorder %v748, 0.0
    %v761 = vstv %s590
    %v762 = vmul.f32 %v761, %v713
    %v763 = vmul.f32 %v761, %v716
    %v764 = vmul.f32 %v761, %v721
    %v765 = vmul.f32 %v761, %v724
    %v766 = vmul.f32 %v761, %v729
    %v767 = vmul.f32 %v761, %v732
    %v768 = vmul.f32 %v761, %v737
    %v769 = vmul.f32 %v761, %v740
    %v770 = vmul.f32 %v761, %v745
    %v771 = vmul.f32 %v761, %v748
    %v772 = vsel %vm751, %v713, %v762
    %v773 = vsel %vm752, %v716, %v763
    %v774 = vsel %vm753, %v721, %v764
    %v775 = vsel %vm754, %v724, %v765
    %v776 = vsel %vm755, %v729, %v766
    %v777 = vsel %vm756, %v732, %v767
    %v778 = vsel %vm757, %v737, %v768
    %v779 = vsel %vm758, %v740, %v769
    %v780 = vsel %vm759, %v745, %v770
    %v781 = vsel %vm760, %v748, %v771
    %v782 = vpack.c.bf16 %v773, %v772
    %v783 = vpack.c.bf16 %v775, %v774
    %v784 = vpack.c.bf16 %v777, %v776
    %v785 = vpack.c.bf16 %v779, %v778
    %v786 = vpack.c.bf16 %v781, %v780
    %s787 = scalar_lea.vmem %s3, 128
    %v788 = vld [vmem:[%s787] sm:$0xf]
    %v789 = vld [vmem:[%s787 + $0x4] sm:$0xf]
    %v790 = vld [vmem:[%s787 + $0x8] sm:$0xf]
    %v791 = vld [vmem:[%s787 + $0xc] sm:$0xf]
    %v792 = vld [vmem:[%s787 + $0x10] sm:$0xf]
    %v793 = vld [vmem:[%s787 + $0x14] sm:$0xf]
    %v794 = vld [vmem:[%s787 + $0x18] sm:$0xf]
    %v795 = vld [vmem:[%s787 + $0x1c] sm:$0xf]
    %v796 = vld [vmem:[%s787 + $0x20] sm:$0xf]
    %v797 = vld [vmem:[%s787 + $0x24] sm:$0xf]
    %v798 = vld [vmem:[%s787 + $0x28] sm:$0xf]
    %v799 = vld [vmem:[%s787 + $0x2c] sm:$0xf]
    %v800 = vld [vmem:[%s787 + $0x30] sm:$0xf]
    %v801 = vld [vmem:[%s787 + $0x34] sm:$0xf]
    %v802 = vld [vmem:[%s787 + $0x38] sm:$0xf]
    %v803 = vld [vmem:[%s787 + $0x3c] sm:$0xf]
    %v804 = vld [vmem:[%s4 + $0x2] sm:$0x1]
    %s805 = sld [smem:[#allocation2 + $0x3]]
    %810 = vrot.lane.b32.xlu0 %v783, 64
    %v811 = vpop.permute.xlu0 %810
    %812 = vrot.lane.b32.xlu0 %v784, 64
    %v813 = vpop.permute.xlu0 %812
    %814 = vrot.lane.b32.xlu0 %v785, 64
    %v815 = vpop.permute.xlu0 %814
    %816 = vrot.lane.b32.xlu0 %v786, 64
    %v817 = vpop.permute.xlu0 %816
    %v820 = vsel %vm182, %v782, %v811
    %v824 = vsel %vm182, %v783, %v813
    %v828 = vsel %vm182, %v784, %v815
    %v832 = vsel %vm182, %v785, %v817
    %v834 = vlaneseq
    %v835 = vshrl.u32 %v834, 7
    %v836 = vsub.s32 0, %v835
    %v837 = vrot.slane %v804, %v836
    %v854 = vunpack.c.l.b16 %v788
    %v855 = vunpack.c.l.b16 %v789
    %v856 = vunpack.c.l.b16 %v790
    %v857 = vunpack.c.l.b16 %v791
    %v858 = vunpack.c.l.b16 %v792
    %v859 = vunpack.c.l.b16 %v793
    %v860 = vunpack.c.l.b16 %v794
    %v861 = vunpack.c.l.b16 %v795
    %v862 = vunpack.c.l.b16 %v796
    %v863 = vunpack.c.l.b16 %v797
    %v864 = vunpack.c.l.b16 %v798
    %v865 = vunpack.c.l.b16 %v799
    %v866 = vunpack.c.l.b16 %v800
    %v867 = vunpack.c.l.b16 %v801
    %v868 = vunpack.c.l.b16 %v802
    %v869 = vunpack.c.l.b16 %v803
    %v870 = vpack.c.b16 %v855, %v854
    %v871 = vpack.c.b16 %v857, %v856
    %v872 = vpack.c.b16 %v859, %v858
    %v873 = vpack.c.b16 %v861, %v860
    %v874 = vpack.c.b16 %v863, %v862
    %v875 = vpack.c.b16 %v865, %v864
    %v876 = vpack.c.b16 %v867, %v866
    %v877 = vpack.c.b16 %v869, %v868
    %886 = vmatprep.subr.bf16.mxu0 0
    %887 = vmatpush1.bf16.msra.mxu0 %v870
    %888 = vmatprep.subr.bf16.mxu0 0
    %889 = vmatpush1.bf16.msra.mxu0 %v871
    %890 = vmatprep.subr.bf16.mxu0 0
    %891 = vmatpush1.bf16.msra.mxu0 %v872
    %892 = vmatprep.subr.bf16.mxu0 0
    %893 = vmatpush1.bf16.msra.mxu0 %v873
    %894 = vmatprep.subr.bf16.mxu0 0
    %895 = vmatpush1.bf16.msra.mxu0 %v874
    %896 = vmatprep.subr.bf16.mxu0 0
    %897 = vmatpush1.bf16.msra.mxu0 %v875
    %898 = vmatprep.subr.bf16.mxu0 0
    %899 = vmatpush1.bf16.msra.mxu0 %v876
    %900 = vmatprep.subr.bf16.mxu0 0
    %901 = vmatpush1.bf16.msra.mxu0 %v877
    %902 = vmatprep.subr.bf16.mxu0 0
    %903 = vmatpush1.bf16.msra.mxu0 0
    %904 = vmatprep.subr.bf16.mxu0 0
    %905 = vmatpush1.bf16.msra.mxu0 0
    %906 = vmatprep.subr.bf16.mxu0 0
    %907 = vmatpush1.bf16.msra.mxu0 0
    %908 = vmatprep.subr.bf16.mxu0 0
    %909 = vmatpush1.bf16.msra.mxu0 0
    %910 = vmatprep.subr.bf16.mxu0 0
    %911 = vmatpush1.bf16.msra.mxu0 0
    %912 = vmatprep.subr.bf16.mxu0 0
    %913 = vmatpush1.bf16.msra.mxu0 0
    %914 = vmatprep.subr.bf16.mxu0 0
    %915 = vmatpush1.bf16.msra.mxu0 0
    %916 = vmatprep.subr.bf16.mxu0 0
    %917 = vmatpush1.bf16.msra.mxu0 0
    %918 = vmatprep.mubr.bf16.mxu0 0
    %919 = vmatmul.mubr.bf16.gmra.mrb[0].mxu0 %v820
    %v920 = vpop.f32.mrb[0].mxu0
    %v921 = vadd.f32 %v837, %v920
    %v922 = vpop.f32.mrb[0].mxu0
    %v923 = vpop.f32.mrb[0].mxu0
    %v924 = vadd.f32 %v837, %v923
    %v925 = vpop.f32.mrb[0].mxu0
    %926 = vmatprep.mubr.bf16.mxu0 0
    %927 = vmatmul.mubr.bf16.gmra.mrb[0].mxu0 %v824
    %v928 = vpop.f32.mrb[0].mxu0
    %v929 = vadd.f32 %v837, %v928
    %v930 = vpop.f32.mrb[0].mxu0
    %v931 = vpop.f32.mrb[0].mxu0
    %v932 = vadd.f32 %v837, %v931
    %v933 = vpop.f32.mrb[0].mxu0
    %934 = vmatprep.mubr.bf16.mxu0 0
    %935 = vmatmul.mubr.bf16.gmra.mrb[0].mxu0 %v828
    %v936 = vpop.f32.mrb[0].mxu0
    %v937 = vadd.f32 %v837, %v936
    %v938 = vpop.f32.mrb[0].mxu0
    %v939 = vpop.f32.mrb[0].mxu0
    %v940 = vadd.f32 %v837, %v939
    %v941 = vpop.f32.mrb[0].mxu0
    %942 = vmatprep.mubr.bf16.mxu0 0
    %943 = vmatmul.mubr.bf16.gmra.mrb[0].mxu0 %v832
    %v944 = vpop.f32.mrb[0].mxu0
    %v945 = vadd.f32 %v837, %v944
    %v946 = vpop.f32.mrb[0].mxu0
    %v947 = vpop.f32.mrb[0].mxu0
    %v948 = vadd.f32 %v837, %v947
    %v949 = vpop.f32.mrb[0].mxu0
    %950 = vdwg.mxu0
    %vm951 = vcmp.gt.f32.partialorder %v921, 0.0
    %vm952 = vcmp.gt.f32.partialorder %v924, 0.0
    %vm953 = vcmp.gt.f32.partialorder %v929, 0.0
    %vm954 = vcmp.gt.f32.partialorder %v932, 0.0
    %vm955 = vcmp.gt.f32.partialorder %v937, 0.0
    %vm956 = vcmp.gt.f32.partialorder %v940, 0.0
    %vm957 = vcmp.gt.f32.partialorder %v945, 0.0
    %vm958 = vcmp.gt.f32.partialorder %v948, 0.0
    %v959 = vstv %s805
    %v960 = vmul.f32 %v959, %v921
    %v961 = vmul.f32 %v959, %v924
    %v962 = vmul.f32 %v959, %v929
    %v963 = vmul.f32 %v959, %v932
    %v964 = vmul.f32 %v959, %v937
    %v965 = vmul.f32 %v959, %v940
    %v966 = vmul.f32 %v959, %v945
    %v967 = vmul.f32 %v959, %v948
    %v968 = vsel %vm951, %v921, %v960
    %v969 = vsel %vm952, %v924, %v961
    %v970 = vsel %vm953, %v929, %v962
    %v971 = vsel %vm954, %v932, %v963
    %v972 = vsel %vm955, %v937, %v964
    %v973 = vsel %vm956, %v940, %v965
    %v974 = vsel %vm957, %v945, %v966
    %v975 = vsel %vm958, %v948, %v967
    %v976 = vpack.c.bf16 %v969, %v968
    %v977 = vpack.c.bf16 %v971, %v970
    %v978 = vpack.c.bf16 %v973, %v972
    %v979 = vpack.c.bf16 %v975, %v974
    %s980 = scalar_lea.vmem %s3, 192
    %v981 = vld [vmem:[%s980] sm:$0xf]
    %v982 = vld [vmem:[%s980 + $0x4] sm:$0xf]
    %v983 = vld [vmem:[%s980 + $0x8] sm:$0xf]
    %v984 = vld [vmem:[%s980 + $0xc] sm:$0xf]
    %v985 = vld [vmem:[%s980 + $0x10] sm:$0xf]
    %v986 = vld [vmem:[%s980 + $0x14] sm:$0xf]
    %v987 = vld [vmem:[%s980 + $0x18] sm:$0xf]
    %v988 = vld [vmem:[%s980 + $0x1c] sm:$0xf]
    %v989 = vld [vmem:[%s980 + $0x20] sm:$0xf]
    %v990 = vld [vmem:[%s980 + $0x24] sm:$0xf]
    %v991 = vld [vmem:[%s980 + $0x28] sm:$0xf]
    %v992 = vld [vmem:[%s980 + $0x2c] sm:$0xf]
    %v993 = vld [vmem:[%s980 + $0x30] sm:$0xf]
    %v994 = vld [vmem:[%s980 + $0x34] sm:$0xf]
    %v995 = vld [vmem:[%s980 + $0x38] sm:$0xf]
    %v996 = vld [vmem:[%s980 + $0x3c] sm:$0xf]
    %v997 = vld [vmem:[%s4 + $0x3] sm:$0x1]
    %s998 = sld [smem:[#allocation2 + $0x4]]
    %1002 = vrot.lane.b32.xlu0 %v977, 64
    %v1003 = vpop.permute.xlu0 %1002
    %1004 = vrot.lane.b32.xlu0 %v978, 64
    %v1005 = vpop.permute.xlu0 %1004
    %1006 = vrot.lane.b32.xlu0 %v979, 64
    %v1007 = vpop.permute.xlu0 %1006
    %v1010 = vsel %vm182, %v976, %v1003
    %v1014 = vsel %vm182, %v977, %v1005
    %v1018 = vsel %vm182, %v978, %v1007
    %v1020 = vlaneseq
    %v1021 = vshrl.u32 %v1020, 7
    %v1022 = vsub.s32 0, %v1021
    %v1023 = vrot.slane %v997, %v1022
    %v1040 = vunpack.c.l.b16 %v981
    %v1041 = vunpack.c.l.b16 %v982
    %v1042 = vunpack.c.l.b16 %v983
    %v1043 = vunpack.c.l.b16 %v984
    %v1044 = vunpack.c.l.b16 %v985
    %v1045 = vunpack.c.l.b16 %v986
    %v1046 = vunpack.c.l.b16 %v987
    %v1047 = vunpack.c.l.b16 %v988
    %v1048 = vunpack.c.l.b16 %v989
    %v1049 = vunpack.c.l.b16 %v990
    %v1050 = vunpack.c.l.b16 %v991
    %v1051 = vunpack.c.l.b16 %v992
    %v1052 = vunpack.c.l.b16 %v993
    %v1053 = vunpack.c.l.b16 %v994
    %v1054 = vunpack.c.l.b16 %v995
    %v1055 = vunpack.c.l.b16 %v996
    %v1056 = vpack.c.b16 %v1041, %v1040
    %v1057 = vpack.c.b16 %v1043, %v1042
    %v1058 = vpack.c.b16 %v1045, %v1044
    %v1059 = vpack.c.b16 %v1047, %v1046
    %v1060 = vpack.c.b16 %v1049, %v1048
    %v1061 = vpack.c.b16 %v1051, %v1050
    %v1062 = vpack.c.b16 %v1053, %v1052
    %v1063 = vpack.c.b16 %v1055, %v1054
    %1072 = vmatprep.subr.bf16.mxu0 0
    %1073 = vmatpush1.bf16.msra.mxu0 %v1056
    %1074 = vmatprep.subr.bf16.mxu0 0
    %1075 = vmatpush1.bf16.msra.mxu0 %v1057
    %1076 = vmatprep.subr.bf16.mxu0 0
    %1077 = vmatpush1.bf16.msra.mxu0 %v1058
    %1078 = vmatprep.subr.bf16.mxu0 0
    %1079 = vmatpush1.bf16.msra.mxu0 %v1059
    %1080 = vmatprep.subr.bf16.mxu0 0
    %1081 = vmatpush1.bf16.msra.mxu0 %v1060
    %1082 = vmatprep.subr.bf16.mxu0 0
    %1083 = vmatpush1.bf16.msra.mxu0 %v1061
    %1084 = vmatprep.subr.bf16.mxu0 0
    %1085 = vmatpush1.bf16.msra.mxu0 %v1062
    %1086 = vmatprep.subr.bf16.mxu0 0
    %1087 = vmatpush1.bf16.msra.mxu0 %v1063
    %1088 = vmatprep.subr.bf16.mxu0 0
    %1089 = vmatpush1.bf16.msra.mxu0 0
    %1090 = vmatprep.subr.bf16.mxu0 0
    %1091 = vmatpush1.bf16.msra.mxu0 0
    %1092 = vmatprep.subr.bf16.mxu0 0
    %1093 = vmatpush1.bf16.msra.mxu0 0
    %1094 = vmatprep.subr.bf16.mxu0 0
    %1095 = vmatpush1.bf16.msra.mxu0 0
    %1096 = vmatprep.subr.bf16.mxu0 0
    %1097 = vmatpush1.bf16.msra.mxu0 0
    %1098 = vmatprep.subr.bf16.mxu0 0
    %1099 = vmatpush1.bf16.msra.mxu0 0
    %1100 = vmatprep.subr.bf16.mxu0 0
    %1101 = vmatpush1.bf16.msra.mxu0 0
    %1102 = vmatprep.subr.bf16.mxu0 0
    %1103 = vmatpush1.bf16.msra.mxu0 0
    %1104 = vmatprep.mubr.bf16.mxu0 0
    %1105 = vmatmul.mubr.bf16.gmra.mrb[0].mxu0 %v1010
    %v1106 = vpop.f32.mrb[0].mxu0
    %v1107 = vadd.f32 %v1023, %v1106
    %v1108 = vpop.f32.mrb[0].mxu0
    %v1109 = vpop.f32.mrb[0].mxu0
    %v1110 = vadd.f32 %v1023, %v1109
    %v1111 = vpop.f32.mrb[0].mxu0
    %1112 = vmatprep.mubr.bf16.mxu0 0
    %1113 = vmatmul.mubr.bf16.gmra.mrb[0].mxu0 %v1014
    %v1114 = vpop.f32.mrb[0].mxu0
    %v1115 = vadd.f32 %v1023, %v1114
    %v1116 = vpop.f32.mrb[0].mxu0
    %v1117 = vpop.f32.mrb[0].mxu0
    %v1118 = vadd.f32 %v1023, %v1117
    %v1119 = vpop.f32.mrb[0].mxu0
    %1120 = vmatprep.mubr.bf16.mxu0 0
    %1121 = vmatmul.mubr.bf16.gmra.mrb[0].mxu0 %v1018
    %v1122 = vpop.f32.mrb[0].mxu0
    %v1123 = vadd.f32 %v1023, %v1122
    %v1124 = vpop.f32.mrb[0].mxu0
    %v1125 = vpop.f32.mrb[0].mxu0
    %v1126 = vadd.f32 %v1023, %v1125
    %v1127 = vpop.f32.mrb[0].mxu0
    %1128 = vdwg.mxu0
    %vm1129 = vcmp.gt.f32.partialorder %v1107, 0.0
    %vm1130 = vcmp.gt.f32.partialorder %v1110, 0.0
    %vm1131 = vcmp.gt.f32.partialorder %v1115, 0.0
    %vm1132 = vcmp.gt.f32.partialorder %v1118, 0.0
    %vm1133 = vcmp.gt.f32.partialorder %v1123, 0.0
    %vm1134 = vcmp.gt.f32.partialorder %v1126, 0.0
    %v1135 = vstv %s998
    %v1136 = vmul.f32 %v1135, %v1107
    %v1137 = vmul.f32 %v1135, %v1110
    %v1138 = vmul.f32 %v1135, %v1115
    %v1139 = vmul.f32 %v1135, %v1118
    %v1140 = vmul.f32 %v1135, %v1123
    %v1141 = vmul.f32 %v1135, %v1126
    %v1142 = vsel %vm1129, %v1107, %v1136
    %v1143 = vsel %vm1130, %v1110, %v1137
    %v1144 = vsel %vm1131, %v1115, %v1138
    %v1145 = vsel %vm1132, %v1118, %v1139
    %v1146 = vsel %vm1133, %v1123, %v1140
    %v1147 = vsel %vm1134, %v1126, %v1141
    %v1148 = vpack.c.bf16 %v1143, %v1142
    %v1149 = vpack.c.bf16 %v1145, %v1144
    %v1150 = vpack.c.bf16 %v1147, %v1146
    %s1151 = scalar_lea.vmem %s3, 256
    %v1152 = vld [vmem:[%s1151] sm:$0xf]
    %v1153 = vld [vmem:[%s1151 + $0x4] sm:$0xf]
    %v1154 = vld [vmem:[%s1151 + $0x8] sm:$0xf]
    %v1155 = vld [vmem:[%s1151 + $0xc] sm:$0xf]
    %v1156 = vld [vmem:[%s1151 + $0x10] sm:$0xf]
    %v1157 = vld [vmem:[%s1151 + $0x14] sm:$0xf]
    %v1158 = vld [vmem:[%s1151 + $0x18] sm:$0xf]
    %v1159 = vld [vmem:[%s1151 + $0x1c] sm:$0xf]
    %v1160 = vld [vmem:[%s1151 + $0x20] sm:$0xf]
    %v1161 = vld [vmem:[%s1151 + $0x24] sm:$0xf]
    %v1162 = vld [vmem:[%s1151 + $0x28] sm:$0xf]
    %v1163 = vld [vmem:[%s1151 + $0x2c] sm:$0xf]
    %v1164 = vld [vmem:[%s1151 + $0x30] sm:$0xf]
    %v1165 = vld [vmem:[%s1151 + $0x34] sm:$0xf]
    %v1166 = vld [vmem:[%s1151 + $0x38] sm:$0xf]
    %v1167 = vld [vmem:[%s1151 + $0x3c] sm:$0xf]
    %v1168 = vld [vmem:[%s4 + $0x4] sm:$0x1]
    %s1169 = sld [smem:[#allocation2 + $0x5]]
    %1172 = vrot.lane.b32.xlu0 %v1149, 64
    %v1173 = vpop.permute.xlu0 %1172
    %1174 = vrot.lane.b32.xlu0 %v1150, 64
    %v1175 = vpop.permute.xlu0 %1174
    %v1178 = vsel %vm182, %v1148, %v1173
    %v1182 = vsel %vm182, %v1149, %v1175
    %v1184 = vlaneseq
    %v1185 = vshrl.u32 %v1184, 7
    %v1186 = vsub.s32 0, %v1185
    %v1187 = vrot.slane %v1168, %v1186
    %v1204 = vunpack.c.l.b16 %v1152
    %v1205 = vunpack.c.l.b16 %v1153
    %v1206 = vunpack.c.l.b16 %v1154
    %v1207 = vunpack.c.l.b16 %v1155
    %v1208 = vunpack.c.l.b16 %v1156
    %v1209 = vunpack.c.l.b16 %v1157
    %v1210 = vunpack.c.l.b16 %v1158
    %v1211 = vunpack.c.l.b16 %v1159
    %v1212 = vunpack.c.l.b16 %v1160
    %v1213 = vunpack.c.l.b16 %v1161
    %v1214 = vunpack.c.l.b16 %v1162
    %v1215 = vunpack.c.l.b16 %v1163
    %v1216 = vunpack.c.l.b16 %v1164
    %v1217 = vunpack.c.l.b16 %v1165
    %v1218 = vunpack.c.l.b16 %v1166
    %v1219 = vunpack.c.l.b16 %v1167
    %v1220 = vpack.c.b16 %v1205, %v1204
    %v1221 = vpack.c.b16 %v1207, %v1206
    %v1222 = vpack.c.b16 %v1209, %v1208
    %v1223 = vpack.c.b16 %v1211, %v1210
    %v1224 = vpack.c.b16 %v1213, %v1212
    %v1225 = vpack.c.b16 %v1215, %v1214
    %v1226 = vpack.c.b16 %v1217, %v1216
    %v1227 = vpack.c.b16 %v1219, %v1218
    %1236 = vmatprep.subr.bf16.mxu0 0
    %1237 = vmatpush1.bf16.msra.mxu0 %v1220
    %1238 = vmatprep.subr.bf16.mxu0 0
    %1239 = vmatpush1.bf16.msra.mxu0 %v1221
    %1240 = vmatprep.subr.bf16.mxu0 0
    %1241 = vmatpush1.bf16.msra.mxu0 %v1222
    %1242 = vmatprep.subr.bf16.mxu0 0
    %1243 = vmatpush1.bf16.msra.mxu0 %v1223
    %1244 = vmatprep.subr.bf16.mxu0 0
    %1245 = vmatpush1.bf16.msra.mxu0 %v1224
    %1246 = vmatprep.subr.bf16.mxu0 0
    %1247 = vmatpush1.bf16.msra.mxu0 %v1225
    %1248 = vmatprep.subr.bf16.mxu0 0
    %1249 = vmatpush1.bf16.msra.mxu0 %v1226
    %1250 = vmatprep.subr.bf16.mxu0 0
    %1251 = vmatpush1.bf16.msra.mxu0 %v1227
    %1252 = vmatprep.subr.bf16.mxu0 0
    %1253 = vmatpush1.bf16.msra.mxu0 0
    %1254 = vmatprep.subr.bf16.mxu0 0
    %1255 = vmatpush1.bf16.msra.mxu0 0
    %1256 = vmatprep.subr.bf16.mxu0 0
    %1257 = vmatpush1.bf16.msra.mxu0 0
    %1258 = vmatprep.subr.bf16.mxu0 0
    %1259 = vmatpush1.bf16.msra.mxu0 0
    %1260 = vmatprep.subr.bf16.mxu0 0
    %1261 = vmatpush1.bf16.msra.mxu0 0
    %1262 = vmatprep.subr.bf16.mxu0 0
    %1263 = vmatpush1.bf16.msra.mxu0 0
    %1264 = vmatprep.subr.bf16.mxu0 0
    %1265 = vmatpush1.bf16.msra.mxu0 0
    %1266 = vmatprep.subr.bf16.mxu0 0
    %1267 = vmatpush1.bf16.msra.mxu0 0
    %1268 = vmatprep.mubr.bf16.mxu0 0
    %1269 = vmatmul.mubr.bf16.gmra.mrb[0].mxu0 %v1178
    %v1270 = vpop.f32.mrb[0].mxu0
    %v1271 = vadd.f32 %v1187, %v1270
    %v1272 = vpop.f32.mrb[0].mxu0
    %v1273 = vpop.f32.mrb[0].mxu0
    %v1274 = vadd.f32 %v1187, %v1273
    %v1275 = vpop.f32.mrb[0].mxu0
    %1276 = vmatprep.mubr.bf16.mxu0 0
    %1277 = vmatmul.mubr.bf16.gmra.mrb[0].mxu0 %v1182
    %v1278 = vpop.f32.mrb[0].mxu0
    %v1279 = vadd.f32 %v1187, %v1278
    %v1280 = vpop.f32.mrb[0].mxu0
    %v1281 = vpop.f32.mrb[0].mxu0
    %v1282 = vadd.f32 %v1187, %v1281
    %v1283 = vpop.f32.mrb[0].mxu0
    %1284 = vdwg.mxu0
    %vm1285 = vcmp.gt.f32.partialorder %v1271, 0.0
    %vm1286 = vcmp.gt.f32.partialorder %v1274, 0.0
    %vm1287 = vcmp.gt.f32.partialorder %v1279, 0.0
    %vm1288 = vcmp.gt.f32.partialorder %v1282, 0.0
    %v1289 = vstv %s1169
    %v1290 = vmul.f32 %v1289, %v1271
    %v1291 = vmul.f32 %v1289, %v1274
    %v1292 = vmul.f32 %v1289, %v1279
    %v1293 = vmul.f32 %v1289, %v1282
    %v1294 = vsel %vm1285, %v1271, %v1290
    %v1295 = vsel %vm1286, %v1274, %v1291
    %v1296 = vsel %vm1287, %v1279, %v1292
    %v1297 = vsel %vm1288, %v1282, %v1293
    %v1298 = vpack.c.bf16 %v1295, %v1294
    %v1299 = vpack.c.bf16 %v1297, %v1296
    %s1300 = scalar_lea.vmem %s3, 320
    %v1301 = vld [vmem:[%s1300] sm:$0xf]
    %v1302 = vld [vmem:[%s1300 + $0x4] sm:$0xf]
    %v1303 = vld [vmem:[%s1300 + $0x8] sm:$0xf]
    %v1304 = vld [vmem:[%s1300 + $0xc] sm:$0xf]
    %v1305 = vld [vmem:[%s1300 + $0x10] sm:$0xf]
    %v1306 = vld [vmem:[%s1300 + $0x14] sm:$0xf]
    %v1307 = vld [vmem:[%s1300 + $0x18] sm:$0xf]
    %v1308 = vld [vmem:[%s1300 + $0x1c] sm:$0xf]
    %v1309 = vld [vmem:[%s1300 + $0x20] sm:$0xf]
    %v1310 = vld [vmem:[%s1300 + $0x24] sm:$0xf]
    %v1311 = vld [vmem:[%s1300 + $0x28] sm:$0xf]
    %v1312 = vld [vmem:[%s1300 + $0x2c] sm:$0xf]
    %v1313 = vld [vmem:[%s1300 + $0x30] sm:$0xf]
    %v1314 = vld [vmem:[%s1300 + $0x34] sm:$0xf]
    %v1315 = vld [vmem:[%s1300 + $0x38] sm:$0xf]
    %v1316 = vld [vmem:[%s1300 + $0x3c] sm:$0xf]
    %v1317 = vld [vmem:[%s4 + $0x5] sm:$0x1]
    %s1318 = sld [smem:[#allocation2 + $0x6]]
    %1320 = vrot.lane.b32.xlu0 %v1299, 64
    %v1321 = vpop.permute.xlu0 %1320
    %v1324 = vsel %vm182, %v1298, %v1321
    %v1326 = vlaneseq
    %v1327 = vshrl.u32 %v1326, 7
    %v1328 = vsub.s32 0, %v1327
    %v1329 = vrot.slane %v1317, %v1328
    %v1346 = vunpack.c.l.b16 %v1301
    %v1347 = vunpack.c.l.b16 %v1302
    %v1348 = vunpack.c.l.b16 %v1303
    %v1349 = vunpack.c.l.b16 %v1304
    %v1350 = vunpack.c.l.b16 %v1305
    %v1351 = vunpack.c.l.b16 %v1306
    %v1352 = vunpack.c.l.b16 %v1307
    %v1353 = vunpack.c.l.b16 %v1308
    %v1354 = vunpack.c.l.b16 %v1309
    %v1355 = vunpack.c.l.b16 %v1310
    %v1356 = vunpack.c.l.b16 %v1311
    %v1357 = vunpack.c.l.b16 %v1312
    %v1358 = vunpack.c.l.b16 %v1313
    %v1359 = vunpack.c.l.b16 %v1314
    %v1360 = vunpack.c.l.b16 %v1315
    %v1361 = vunpack.c.l.b16 %v1316
    %v1362 = vpack.c.b16 %v1347, %v1346
    %v1363 = vpack.c.b16 %v1349, %v1348
    %v1364 = vpack.c.b16 %v1351, %v1350
    %v1365 = vpack.c.b16 %v1353, %v1352
    %v1366 = vpack.c.b16 %v1355, %v1354
    %v1367 = vpack.c.b16 %v1357, %v1356
    %v1368 = vpack.c.b16 %v1359, %v1358
    %v1369 = vpack.c.b16 %v1361, %v1360
    %1378 = vmatprep.subr.bf16.mxu0 0
    %1379 = vmatpush1.bf16.msra.mxu0 %v1362
    %1380 = vmatprep.subr.bf16.mxu0 0
    %1381 = vmatpush1.bf16.msra.mxu0 %v1363
    %1382 = vmatprep.subr.bf16.mxu0 0
    %1383 = vmatpush1.bf16.msra.mxu0 %v1364
    %1384 = vmatprep.subr.bf16.mxu0 0
    %1385 = vmatpush1.bf16.msra.mxu0 %v1365
    %1386 = vmatprep.subr.bf16.mxu0 0
    %1387 = vmatpush1.bf16.msra.mxu0 %v1366
    %1388 = vmatprep.subr.bf16.mxu0 0
    %1389 = vmatpush1.bf16.msra.mxu0 %v1367
    %1390 = vmatprep.subr.bf16.mxu0 0
    %1391 = vmatpush1.bf16.msra.mxu0 %v1368
    %1392 = vmatprep.subr.bf16.mxu0 0
    %1393 = vmatpush1.bf16.msra.mxu0 %v1369
    %1394 = vmatprep.subr.bf16.mxu0 0
    %1395 = vmatpush1.bf16.msra.mxu0 0
    %1396 = vmatprep.subr.bf16.mxu0 0
    %1397 = vmatpush1.bf16.msra.mxu0 0
    %1398 = vmatprep.subr.bf16.mxu0 0
    %1399 = vmatpush1.bf16.msra.mxu0 0
    %1400 = vmatprep.subr.bf16.mxu0 0
    %1401 = vmatpush1.bf16.msra.mxu0 0
    %1402 = vmatprep.subr.bf16.mxu0 0
    %1403 = vmatpush1.bf16.msra.mxu0 0
    %1404 = vmatprep.subr.bf16.mxu0 0
    %1405 = vmatpush1.bf16.msra.mxu0 0
    %1406 = vmatprep.subr.bf16.mxu0 0
    %1407 = vmatpush1.bf16.msra.mxu0 0
    %1408 = vmatprep.subr.bf16.mxu0 0
    %1409 = vmatpush1.bf16.msra.mxu0 0
    %1410 = vmatprep.mubr.bf16.mxu0 0
    %1411 = vmatmul.mubr.bf16.gmra.mrb[0].mxu0 %v1324
    %v1412 = vpop.f32.mrb[0].mxu0
    %v1413 = vadd.f32 %v1329, %v1412
    %v1414 = vpop.f32.mrb[0].mxu0
    %v1415 = vpop.f32.mrb[0].mxu0
    %v1416 = vadd.f32 %v1329, %v1415
    %v1417 = vpop.f32.mrb[0].mxu0
    %1418 = vdwg.mxu0
    %vm1419 = vcmp.gt.f32.partialorder %v1413, 0.0
    %vm1420 = vcmp.gt.f32.partialorder %v1416, 0.0
    %v1421 = vstv %s1318
    %v1422 = vmul.f32 %v1421, %v1413
    %v1423 = vmul.f32 %v1421, %v1416
    %v1424 = vsel %vm1419, %v1413, %v1422
    %v1425 = vsel %vm1420, %v1416, %v1423
    %v1426 = vpack.c.bf16 %v1425, %v1424
    %v1427 = vld [vmem:[%s6] sm:$0xf]
    %v1428 = vld [vmem:[%s6 + $0x4] sm:$0xf]
    %v1429 = vld [vmem:[%s6 + $0x8] sm:$0xf]
    %v1430 = vld [vmem:[%s6 + $0xc] sm:$0xf]
    %v1431 = vld [vmem:[%s6 + $0x10] sm:$0xf]
    %v1432 = vld [vmem:[%s6 + $0x14] sm:$0xf]
    %v1433 = vld [vmem:[%s6 + $0x18] sm:$0xf]
    %v1434 = vld [vmem:[%s6 + $0x1c] sm:$0xf]
    %v1435 = vld [vmem:[%s7] sm:$0x1]
    %v1437 = vlaneseq
    %v1438 = vshrl.u32 %v1437, 7
    %v1439 = vsub.s32 0, %v1438
    %v1440 = vrot.slane %v1435, %v1439
    %v1450 = vunpack.c.l.b16 %v1427
    %v1451 = vunpack.c.l.b16 %v1428
    %v1452 = vunpack.c.l.b16 %v1429
    %v1453 = vunpack.c.l.b16 %v1430
    %v1454 = vunpack.c.l.b16 %v1431
    %v1455 = vunpack.c.l.b16 %v1432
    %v1456 = vunpack.c.l.b16 %v1433
    %v1457 = vunpack.c.l.b16 %v1434
    %v1458 = vpack.c.b16 %v1451, %v1450
    %v1459 = vpack.c.b16 %v1453, %v1452
    %v1460 = vpack.c.b16 %v1455, %v1454
    %v1461 = vpack.c.b16 %v1457, %v1456
    %v1467 = vsel %vm182, %v1426, 0
    %1469 = vmatprep.subr.bf16.mxu0 0
    %1470 = vmatpush1.bf16.msra.mxu0 %v1458
    %1471 = vmatprep.subr.bf16.mxu0 0
    %1472 = vmatpush1.bf16.msra.mxu0 %v1459
    %1473 = vmatprep.subr.bf16.mxu0 0
    %1474 = vmatpush1.bf16.msra.mxu0 %v1460
    %1475 = vmatprep.subr.bf16.mxu0 0
    %1476 = vmatpush1.bf16.msra.mxu0 %v1461
    %1477 = vmatprep.subr.bf16.mxu0 0
    %1478 = vmatpush1.bf16.msra.mxu0 0
    %1479 = vmatprep.subr.bf16.mxu0 0
    %1480 = vmatpush1.bf16.msra.mxu0 0
    %1481 = vmatprep.subr.bf16.mxu0 0
    %1482 = vmatpush1.bf16.msra.mxu0 0
    %1483 = vmatprep.subr.bf16.mxu0 0
    %1484 = vmatpush1.bf16.msra.mxu0 0
    %1485 = vmatprep.subr.bf16.mxu0 0
    %1486 = vmatpush1.bf16.msra.mxu0 0
    %1487 = vmatprep.subr.bf16.mxu0 0
    %1488 = vmatpush1.bf16.msra.mxu0 0
    %1489 = vmatprep.subr.bf16.mxu0 0
    %1490 = vmatpush1.bf16.msra.mxu0 0
    %1491 = vmatprep.subr.bf16.mxu0 0
    %1492 = vmatpush1.bf16.msra.mxu0 0
    %1493 = vmatprep.subr.bf16.mxu0 0
    %1494 = vmatpush1.bf16.msra.mxu0 0
    %1495 = vmatprep.subr.bf16.mxu0 0
    %1496 = vmatpush1.bf16.msra.mxu0 0
    %1497 = vmatprep.subr.bf16.mxu0 0
    %1498 = vmatpush1.bf16.msra.mxu0 0
    %1499 = vmatprep.subr.bf16.mxu0 0
    %1500 = vmatpush1.bf16.msra.mxu0 0
    %1501 = vmatprep.mubr.bf16.mxu0 0
    %1502 = vmatmul.mubr.bf16.gmra.mrb[0].mxu0 %v1467
    %v1503 = vpop.f32.mrb[0].mxu0
    %v1504 = vadd.f32 %v1440, %v1503
    %v1505 = vpop.f32.mrb[0].mxu0
    %v1506 = vpop.f32.mrb[0].mxu0
    %v1507 = vadd.f32 %v1440, %v1506
    %v1508 = vpop.f32.mrb[0].mxu0
    %1509 = vdwg.mxu0
    %v1510 = vmax.f32 %v1504, 0.0
    %v1511 = vmax.f32 %v1507, 0.0
    %v1512 = vpack.c.bf16 %v1511, %v1510
    %v1513 = vld [vmem:[%s8] sm:$0xf]
    %v1514 = vld [vmem:[%s8 + $0x4] sm:$0xf]
    %v1515 = vld [vmem:[%s8 + $0x8] sm:$0xf]
    %v1516 = vld [vmem:[%s8 + $0xc] sm:$0xf]
    %v1517 = vld [vmem:[%s9] sm:$0x1]
    %v1519 = vlaneseq
    %v1520 = vshrl.u32 %v1519, 7
    %v1521 = vsub.s32 0, %v1520
    %v1522 = vrot.slane %v1517, %v1521
    %v1528 = vunpack.c.l.b16 %v1513
    %v1529 = vunpack.c.l.b16 %v1514
    %v1530 = vunpack.c.l.b16 %v1515
    %v1531 = vunpack.c.l.b16 %v1516
    %v1532 = vpack.c.b16 %v1529, %v1528
    %v1533 = vpack.c.b16 %v1531, %v1530
    %v1537 = vsel %vm130, %v1512, 0
    %1539 = vmatprep.subr.bf16.mxu0 0
    %1540 = vmatpush1.bf16.msra.mxu0 %v1532
    %1541 = vmatprep.subr.bf16.mxu0 0
    %1542 = vmatpush1.bf16.msra.mxu0 %v1533
    %1543 = vmatprep.subr.bf16.mxu0 0
    %1544 = vmatpush1.bf16.msra.mxu0 0
    %1545 = vmatprep.subr.bf16.mxu0 0
    %1546 = vmatpush1.bf16.msra.mxu0 0
    %1547 = vmatprep.subr.bf16.mxu0 0
    %1548 = vmatpush1.bf16.msra.mxu0 0
    %1549 = vmatprep.subr.bf16.mxu0 0
    %1550 = vmatpush1.bf16.msra.mxu0 0
    %1551 = vmatprep.subr.bf16.mxu0 0
    %1552 = vmatpush1.bf16.msra.mxu0 0
    %1553 = vmatprep.subr.bf16.mxu0 0
    %1554 = vmatpush1.bf16.msra.mxu0 0
    %1555 = vmatprep.subr.bf16.mxu0 0
    %1556 = vmatpush1.bf16.msra.mxu0 0
    %1557 = vmatprep.subr.bf16.mxu0 0
    %1558 = vmatpush1.bf16.msra.mxu0 0
    %1559 = vmatprep.subr.bf16.mxu0 0
    %1560 = vmatpush1.bf16.msra.mxu0 0
    %1561 = vmatprep.subr.bf16.mxu0 0
    %1562 = vmatpush1.bf16.msra.mxu0 0
    %1563 = vmatprep.subr.bf16.mxu0 0
    %1564 = vmatpush1.bf16.msra.mxu0 0
    %1565 = vmatprep.subr.bf16.mxu0 0
    %1566 = vmatpush1.bf16.msra.mxu0 0
    %1567 = vmatprep.subr.bf16.mxu0 0
    %1568 = vmatpush1.bf16.msra.mxu0 0
    %1569 = vmatprep.subr.bf16.mxu0 0
    %1570 = vmatpush1.bf16.msra.mxu0 0
    %1571 = vmatprep.mubr.bf16.mxu0 0
    %1572 = vmatmul.mubr.bf16.gmra.mrb[0].mxu0 %v1537
    %v1573 = vpop.f32.mrb[0].mxu0
    %v1574 = vadd.f32 %v1522, %v1573
    %v1575 = vpop.f32.mrb[0].mxu0
    %v1576 = vpop.f32.mrb[0].mxu0
    %v1577 = vadd.f32 %v1522, %v1576
    %v1578 = vpop.f32.mrb[0].mxu0
    %1579 = vdwg.mxu0
    %1580 = vst [vmem:[#allocation5] sm:$0xff] %v1574
    %1581 = vst [vmem:[#allocation5 + $0x8] sm:$0xff] %v1577
    // Predicated region
    $region46: #{tpu_custom_call.1} parent=1 // pred_check
      _
    $region47: #{tpu_custom_call.1} parent=1 // pred_check_branch
      %1583 = sbr.rel (0) target = $region49
    $region48: #{tpu_custom_call.1} parent=1 // pred_region
      %s1585 = ssub.s32 256, 256
      %1586 = vsyncadd [#allocation3], %s1585
      %s1587 = sshll.u32 [#allocation5], 4
      %s1588 = int_to_ptr.vmem [resolvable:$true] %s1587
      %1593 = dma.vmem_to_hbm [thread:$0]  %s1588, 256, %s10, [#allocation3], 128, 128, 8
    $region49: #{tpu_custom_call.1} parent=1 // pred_fallthru
      _
    // Predicated region
    $region50: #{tpu_custom_call.1} parent=1 // pred_check
      _
    $region51: #{tpu_custom_call.1} parent=1 // pred_check_branch
      %1595 = sbr.rel (0) target = $region53
    $region52: #{tpu_custom_call.1} parent=1 // pred_region
      %1596 = dma.done [#allocation3], 256
    $region53: #{tpu_custom_call.1} parent=1 // pred_fallthru
      _
    %1597 = vsyncpa [#allocation3], 1
    %1598 = vsyncpa [#allocation4], 1

// kernel: tpu_custom_call.1
$region0: #{tpu_custom_call.1}
  #allocation0 [shape = 'u32[]', space=smem, size = 0x4, offset = 0x4, fixed_abs, tag = 'smem constant byte address 0x4 - core index']
  #allocation1 [shape = 'u32[144,128]{1,0:T(1,128)}', space=vmem, size = 0x12000, scoped, tag = 'internal scratch']
  %s0 = inlined_call_operand.vmem [shape: bf16[128,32], index: 0, kind: input, shape index: {}]
  %s1 = inlined_call_operand.vmem [shape: bf16[64,64], index: 1, kind: input, shape index: {}]
  %s2 = inlined_call_operand.vmem [shape: f32[1,64], index: 2, kind: input, shape index: {}]
  %s3 = inlined_call_operand.vmem [shape: bf16[6,128,64], index: 3, kind: input, shape index: {}]
  %s4 = inlined_call_operand.vmem [shape: f32[6,64], index: 4, kind: input, shape index: {}]
  %s5 = inlined_call_operand.vmem [shape: f32[7], index: 5, kind: input, shape index: {}]
  %s6 = inlined_call_operand.vmem [shape: bf16[64,32], index: 6, kind: input, shape index: {}]
  %s7 = inlined_call_operand.vmem [shape: f32[1,32], index: 7, kind: input, shape index: {}]
  %s8 = inlined_call_operand.vmem [shape: bf16[32,128], index: 8, kind: input, shape index: {}]
  %s9 = inlined_call_operand.vmem [shape: f32[1,128], index: 9, kind: input, shape index: {}]
  %s10 = inlined_call_operand.hbm [shape: f32[16,128], index: 10, kind: output, shape index: {}]
  %s11 = sld [smem:[#allocation0]]
  $region54: #{tpu_custom_call.1} parent=0
    _
  %s13 = ssub.s32 1, %s11
  %s14 = scalar_select 0, %s13, %s11
  $region1: #{tpu_custom_call.1} parent=0
    #allocation2 [shape = 'u8[512]{0}', space=smem, size = 0x200, scoped, tag = 'input window, operand 5, single buffered']
    #allocation3 [shape = 's32[1]{0}', space=sflag, size = 0x4, scoped, tag = 'scoped memory for tpu_custom_call.1']
    #allocation4 [shape = 's32[1]{0}', space=sflag, size = 0x4, scoped, tag = 'scoped memory for tpu_custom_call.1']
    #allocation5 [shape = 'u8[8192]{0}', space=vmem, size = 0x2000, scoped, tag = 'output window, operand 0, single buffered']
    %15 = vsyncpa [#allocation4], 0
    %16 = vsyncpa [#allocation3], 0
    // Predicated region
    $region2: #{tpu_custom_call.1} parent=1 // pred_check
      _
    $region3: #{tpu_custom_call.1} parent=1 // pred_check_branch
      %18 = sbr.rel (0) target = $region5
    $region4: #{tpu_custom_call.1} parent=1 // pred_region
      _
    $region5: #{tpu_custom_call.1} parent=1 // pred_fallthru
      _
    // Predicated region
    $region6: #{tpu_custom_call.1} parent=1 // pred_check
      _
    $region7: #{tpu_custom_call.1} parent=1 // pred_check_branch
      %20 = sbr.rel (0) target = $region9
    $region8: #{tpu_custom_call.1} parent=1 // pred_region
      _
    $region9: #{tpu_custom_call.1} parent=1 // pred_fallthru
      _
    // Predicated region
    $region10: #{tpu_custom_call.1} parent=1 // pred_check
      _
    $region11: #{tpu_custom_call.1} parent=1 // pred_check_branch
      %22 = sbr.rel (0) target = $region13
    $region12: #{tpu_custom_call.1} parent=1 // pred_region
      _
    $region13: #{tpu_custom_call.1} parent=1 // pred_fallthru
      _
    // Predicated region
    $region14: #{tpu_custom_call.1} parent=1 // pred_check
      _
    $region15: #{tpu_custom_call.1} parent=1 // pred_check_branch
      %24 = sbr.rel (0) target = $region17
    $region16: #{tpu_custom_call.1} parent=1 // pred_region
      _
    $region17: #{tpu_custom_call.1} parent=1 // pred_fallthru
      _
    // Predicated region
    $region18: #{tpu_custom_call.1} parent=1 // pred_check
      _
    $region19: #{tpu_custom_call.1} parent=1 // pred_check_branch
      %26 = sbr.rel (0) target = $region21
    $region20: #{tpu_custom_call.1} parent=1 // pred_region
      _
    $region21: #{tpu_custom_call.1} parent=1 // pred_fallthru
      _
    // Predicated region
    $region22: #{tpu_custom_call.1} parent=1 // pred_check
      _
    $region23: #{tpu_custom_call.1} parent=1 // pred_check_branch
      %28 = sbr.rel (0) target = $region25
    $region24: #{tpu_custom_call.1} parent=1 // pred_region
      %s30 = ssub.s32 16, 16
      %31 = vsyncadd [#allocation4], %s30
      %s33 = sshll.u32 %s5, 4
      %s34 = int_to_ptr.vmem [resolvable:$true] %s33
      %36 = dma.vmem_to_smem %s34, 16, [#allocation2], [#allocation4]
    $region25: #{tpu_custom_call.1} parent=1 // pred_fallthru
      _
    // Predicated region
    $region26: #{tpu_custom_call.1} parent=1 // pred_check
      _
    $region27: #{tpu_custom_call.1} parent=1 // pred_check_branch
      %38 = sbr.rel (0) target = $region29
    $region28: #{tpu_custom_call.1} parent=1 // pred_region
      _
    $region29: #{tpu_custom_call.1} parent=1 // pred_fallthru
      _
    // Predicated region
    $region30: #{tpu_custom_call.1} parent=1 // pred_check
      _
    $region31: #{tpu_custom_call.1} parent=1 // pred_check_branch
      %40 = sbr.rel (0) target = $region33
    $region32: #{tpu_custom_call.1} parent=1 // pred_region
      _
    $region33: #{tpu_custom_call.1} parent=1 // pred_fallthru
      _
    // Predicated region
    $region34: #{tpu_custom_call.1} parent=1 // pred_check
      _
    $region35: #{tpu_custom_call.1} parent=1 // pred_check_branch
      %42 = sbr.rel (0) target = $region37
    $region36: #{tpu_custom_call.1} parent=1 // pred_region
      _
    $region37: #{tpu_custom_call.1} parent=1 // pred_fallthru
      _
    // Predicated region
    $region38: #{tpu_custom_call.1} parent=1 // pred_check
      _
    $region39: #{tpu_custom_call.1} parent=1 // pred_check_branch
      %44 = sbr.rel (0) target = $region41
    $region40: #{tpu_custom_call.1} parent=1 // pred_region
      _
    $region41: #{tpu_custom_call.1} parent=1 // pred_fallthru
      _
    // Predicated region
    $region42: #{tpu_custom_call.1} parent=1 // pred_check
      _
    $region43: #{tpu_custom_call.1} parent=1 // pred_check_branch
      %46 = sbr.rel (0) target = $region45
    $region44: #{tpu_custom_call.1} parent=1 // pred_region
      %47 = dma.done [#allocation4], 16
    $region45: #{tpu_custom_call.1} parent=1 // pred_fallthru
      _
    %48 = sfence
    %v50 = vld [vmem:[%s0] sm:$0xf]
    %v51 = vld [vmem:[%s0 + $0x4] sm:$0xf]
    %v52 = vld [vmem:[%s0 + $0x8] sm:$0xf]
    %v53 = vld [vmem:[%s0 + $0xc] sm:$0xf]
    %v54 = vld [vmem:[%s0 + $0x10] sm:$0xf]
    %v55 = vld [vmem:[%s0 + $0x14] sm:$0xf]
    %v56 = vld [vmem:[%s0 + $0x18] sm:$0xf]
    %v57 = vld [vmem:[%s0 + $0x1c] sm:$0xf]
    %v58 = vld [vmem:[%s0 + $0x20] sm:$0xf]
    %v59 = vld [vmem:[%s0 + $0x24] sm:$0xf]
    %v60 = vld [vmem:[%s0 + $0x28] sm:$0xf]
    %v61 = vld [vmem:[%s0 + $0x2c] sm:$0xf]
    %v62 = vld [vmem:[%s0 + $0x30] sm:$0xf]
    %v63 = vld [vmem:[%s0 + $0x34] sm:$0xf]
    %v64 = vld [vmem:[%s0 + $0x38] sm:$0xf]
    %v65 = vld [vmem:[%s0 + $0x3c] sm:$0xf]
    %v66 = vld [vmem:[%s1] sm:$0xf]
    %v67 = vld [vmem:[%s1 + $0x4] sm:$0xf]
    %v68 = vld [vmem:[%s1 + $0x8] sm:$0xf]
    %v69 = vld [vmem:[%s1 + $0xc] sm:$0xf]
    %v70 = vld [vmem:[%s1 + $0x10] sm:$0xf]
    %v71 = vld [vmem:[%s1 + $0x14] sm:$0xf]
    %v72 = vld [vmem:[%s1 + $0x18] sm:$0xf]
    %v73 = vld [vmem:[%s1 + $0x1c] sm:$0xf]
    %v74 = vld [vmem:[%s2] sm:$0x1]
    %s75 = sld [smem:[#allocation2]]
    %v90 = vunpack.c.l.b16 %v52
    %v91 = vunpack.c.l.b16 %v53
    %v92 = vunpack.c.l.b16 %v54
    %v93 = vunpack.c.l.b16 %v55
    %v94 = vunpack.c.l.b16 %v56
    %v95 = vunpack.c.l.b16 %v57
    %v96 = vunpack.c.l.b16 %v58
    %v97 = vunpack.c.l.b16 %v59
    %v98 = vunpack.c.l.b16 %v60
    %v99 = vunpack.c.l.b16 %v61
    %v100 = vunpack.c.l.b16 %v62
    %v101 = vunpack.c.l.b16 %v63
    %v102 = vunpack.c.l.b16 %v64
    %v103 = vunpack.c.l.b16 %v65
    %v104 = vpack.c.b16 %v91, %v90
    %v105 = vpack.c.b16 %v93, %v92
    %v106 = vpack.c.b16 %v95, %v94
    %v107 = vpack.c.b16 %v97, %v96
    %v108 = vpack.c.b16 %v99, %v98
    %v109 = vpack.c.b16 %v101, %v100
    %v110 = vpack.c.b16 %v103, %v102
    %v115 = vunpack.c.l.b16 %v70
    %v116 = vunpack.c.l.b16 %v71
    %v117 = vunpack.c.l.b16 %v72
    %v118 = vunpack.c.l.b16 %v73
    %v119 = vpack.c.b16 %v116, %v115
    %v120 = vpack.c.b16 %v118, %v117
    %vm123 = vcmask 261120
    %v125 = vsel %vm123, %v104, 0
    %v128 = vsel %vm123, %v105, 0
    %v131 = vsel %vm123, %v106, 0
    %v134 = vsel %vm123, %v107, 0
    %v137 = vsel %vm123, %v108, 0
    %v140 = vsel %vm123, %v109, 0
    %v143 = vsel %vm123, %v110, 0
    %145 = vmatprep.subr.bf16.mxu0 0
    %146 = vmatpush1.bf16.msra.mxu0 %v119
    %147 = vmatprep.subr.bf16.mxu0 0
    %148 = vmatpush1.bf16.msra.mxu0 %v120
    %149 = vmatprep.subr.bf16.mxu0 0
    %150 = vmatpush1.bf16.msra.mxu0 0
    %151 = vmatprep.subr.bf16.mxu0 0
    %152 = vmatpush1.bf16.msra.mxu0 0
    %153 = vmatprep.subr.bf16.mxu0 0
    %154 = vmatpush1.bf16.msra.mxu0 0
    %155 = vmatprep.subr.bf16.mxu0 0
    %156 = vmatpush1.bf16.msra.mxu0 0
    %157 = vmatprep.subr.bf16.mxu0 0
    %158 = vmatpush1.bf16.msra.mxu0 0
    %159 = vmatprep.subr.bf16.mxu0 0
    %160 = vmatpush1.bf16.msra.mxu0 0
    %161 = vmatprep.subr.bf16.mxu0 0
    %162 = vmatpush1.bf16.msra.mxu0 0
    %163 = vmatprep.subr.bf16.mxu0 0
    %164 = vmatpush1.bf16.msra.mxu0 0
    %165 = vmatprep.subr.bf16.mxu0 0
    %166 = vmatpush1.bf16.msra.mxu0 0
    %167 = vmatprep.subr.bf16.mxu0 0
    %168 = vmatpush1.bf16.msra.mxu0 0
    %169 = vmatprep.subr.bf16.mxu0 0
    %170 = vmatpush1.bf16.msra.mxu0 0
    %171 = vmatprep.subr.bf16.mxu0 0
    %172 = vmatpush1.bf16.msra.mxu0 0
    %173 = vmatprep.subr.bf16.mxu0 0
    %174 = vmatpush1.bf16.msra.mxu0 0
    %175 = vmatprep.subr.bf16.mxu0 0
    %176 = vmatpush1.bf16.msra.mxu0 0
    %177 = vmatprep.mubr.bf16.mxu0 0
    %178 = vmatmul.mubr.bf16.gmra.mrb[0].mxu0 %v125
    %v179 = vpop.f32.mrb[0].mxu0
    %v180 = vadd.f32 0.0, %v179
    %v181 = vpop.f32.mrb[0].mxu0
    %v182 = vpop.f32.mrb[0].mxu0
    %v183 = vadd.f32 0.0, %v182
    %v184 = vpop.f32.mrb[0].mxu0
    %185 = vmatprep.mubr.bf16.mxu0 0
    %186 = vmatmul.mubr.bf16.gmra.mrb[0].mxu0 %v128
    %v187 = vpop.f32.mrb[0].mxu0
    %v188 = vadd.f32 0.0, %v187
    %v189 = vpop.f32.mrb[0].mxu0
    %v190 = vpop.f32.mrb[0].mxu0
    %v191 = vadd.f32 0.0, %v190
    %v192 = vpop.f32.mrb[0].mxu0
    %193 = vmatprep.mubr.bf16.mxu0 0
    %194 = vmatmul.mubr.bf16.gmra.mrb[0].mxu0 %v131
    %v195 = vpop.f32.mrb[0].mxu0
    %v196 = vadd.f32 0.0, %v195
    %v197 = vpop.f32.mrb[0].mxu0
    %v198 = vpop.f32.mrb[0].mxu0
    %v199 = vadd.f32 0.0, %v198
    %v200 = vpop.f32.mrb[0].mxu0
    %201 = vmatprep.mubr.bf16.mxu0 0
    %202 = vmatmul.mubr.bf16.gmra.mrb[0].mxu0 %v134
    %v203 = vpop.f32.mrb[0].mxu0
    %v204 = vadd.f32 0.0, %v203
    %v205 = vpop.f32.mrb[0].mxu0
    %v206 = vpop.f32.mrb[0].mxu0
    %v207 = vadd.f32 0.0, %v206
    %v208 = vpop.f32.mrb[0].mxu0
    %209 = vmatprep.mubr.bf16.mxu0 0
    %210 = vmatmul.mubr.bf16.gmra.mrb[0].mxu0 %v137
    %v211 = vpop.f32.mrb[0].mxu0
    %v212 = vadd.f32 0.0, %v211
    %v213 = vpop.f32.mrb[0].mxu0
    %v214 = vpop.f32.mrb[0].mxu0
    %v215 = vadd.f32 0.0, %v214
    %v216 = vpop.f32.mrb[0].mxu0
    %217 = vmatprep.mubr.bf16.mxu0 0
    %218 = vmatmul.mubr.bf16.gmra.mrb[0].mxu0 %v140
    %v219 = vpop.f32.mrb[0].mxu0
    %v220 = vadd.f32 0.0, %v219
    %v221 = vpop.f32.mrb[0].mxu0
    %v222 = vpop.f32.mrb[0].mxu0
    %v223 = vadd.f32 0.0, %v222
    %v224 = vpop.f32.mrb[0].mxu0
    %225 = vmatprep.mubr.bf16.mxu0 0
    %226 = vmatmul.mubr.bf16.gmra.mrb[0].mxu0 %v143
    %v227 = vpop.f32.mrb[0].mxu0
    %v228 = vadd.f32 0.0, %v227
    %v229 = vpop.f32.mrb[0].mxu0
    %v230 = vpop.f32.mrb[0].mxu0
    %v231 = vadd.f32 0.0, %v230
    %v232 = vpop.f32.mrb[0].mxu0
    %233 = vdwg.mxu0
    %v236 = vunpack.c.l.b16 %v50
    %v237 = vunpack.c.l.b16 %v51
    %v238 = vpack.c.b16 %v237, %v236
    %v243 = vunpack.c.l.b16 %v66
    %v244 = vunpack.c.l.b16 %v67
    %v245 = vunpack.c.l.b16 %v68
    %v246 = vunpack.c.l.b16 %v69
    %v247 = vpack.c.b16 %v244, %v243
    %v248 = vpack.c.b16 %v246, %v245
    %v252 = vsel %vm123, %v238, 0
    %254 = vmatprep.subr.bf16.mxu0 0
    %255 = vmatpush1.bf16.msra.mxu0 %v247
    %256 = vmatprep.subr.bf16.mxu0 0
    %257 = vmatpush1.bf16.msra.mxu0 %v248
    %258 = vmatprep.subr.bf16.mxu0 0
    %259 = vmatpush1.bf16.msra.mxu0 0
    %260 = vmatprep.subr.bf16.mxu0 0
    %261 = vmatpush1.bf16.msra.mxu0 0
    %262 = vmatprep.subr.bf16.mxu0 0
    %263 = vmatpush1.bf16.msra.mxu0 0
    %264 = vmatprep.subr.bf16.mxu0 0
    %265 = vmatpush1.bf16.msra.mxu0 0
    %266 = vmatprep.subr.bf16.mxu0 0
    %267 = vmatpush1.bf16.msra.mxu0 0
    %268 = vmatprep.subr.bf16.mxu0 0
    %269 = vmatpush1.bf16.msra.mxu0 0
    %270 = vmatprep.subr.bf16.mxu0 0
    %271 = vmatpush1.bf16.msra.mxu0 0
    %272 = vmatprep.subr.bf16.mxu0 0
    %273 = vmatpush1.bf16.msra.mxu0 0
    %274 = vmatprep.subr.bf16.mxu0 0
    %275 = vmatpush1.bf16.msra.mxu0 0
    %276 = vmatprep.subr.bf16.mxu0 0
    %277 = vmatpush1.bf16.msra.mxu0 0
    %278 = vmatprep.subr.bf16.mxu0 0
    %279 = vmatpush1.bf16.msra.mxu0 0
    %280 = vmatprep.subr.bf16.mxu0 0
    %281 = vmatpush1.bf16.msra.mxu0 0
    %282 = vmatprep.subr.bf16.mxu0 0
    %283 = vmatpush1.bf16.msra.mxu0 0
    %284 = vmatprep.subr.bf16.mxu0 0
    %285 = vmatpush1.bf16.msra.mxu0 0
    %286 = vmatprep.mubr.bf16.mxu0 0
    %287 = vmatmul.mubr.bf16.gmra.mrb[0].mxu0 %v252
    %v288 = vpop.f32.mrb[0].mxu0
    %v289 = vadd.f32 %v180, %v288
    %v290 = vpop.f32.mrb[0].mxu0
    %v291 = vpop.f32.mrb[0].mxu0
    %v292 = vadd.f32 %v183, %v291
    %v293 = vpop.f32.mrb[0].mxu0
    %294 = vmatprep.mubr.bf16.mxu0 0
    %295 = vmatmul.mubr.bf16.gmra.mrb[0].mxu0 %v125
    %v296 = vpop.f32.mrb[0].mxu0
    %v297 = vadd.f32 %v188, %v296
    %v298 = vpop.f32.mrb[0].mxu0
    %v299 = vpop.f32.mrb[0].mxu0
    %v300 = vadd.f32 %v191, %v299
    %v301 = vpop.f32.mrb[0].mxu0
    %302 = vmatprep.mubr.bf16.mxu0 0
    %303 = vmatmul.mubr.bf16.gmra.mrb[0].mxu0 %v128
    %v304 = vpop.f32.mrb[0].mxu0
    %v305 = vadd.f32 %v196, %v304
    %v306 = vpop.f32.mrb[0].mxu0
    %v307 = vpop.f32.mrb[0].mxu0
    %v308 = vadd.f32 %v199, %v307
    %v309 = vpop.f32.mrb[0].mxu0
    %310 = vmatprep.mubr.bf16.mxu0 0
    %311 = vmatmul.mubr.bf16.gmra.mrb[0].mxu0 %v131
    %v312 = vpop.f32.mrb[0].mxu0
    %v313 = vadd.f32 %v204, %v312
    %v314 = vpop.f32.mrb[0].mxu0
    %v315 = vpop.f32.mrb[0].mxu0
    %v316 = vadd.f32 %v207, %v315
    %v317 = vpop.f32.mrb[0].mxu0
    %318 = vmatprep.mubr.bf16.mxu0 0
    %319 = vmatmul.mubr.bf16.gmra.mrb[0].mxu0 %v134
    %v320 = vpop.f32.mrb[0].mxu0
    %v321 = vadd.f32 %v212, %v320
    %v322 = vpop.f32.mrb[0].mxu0
    %v323 = vpop.f32.mrb[0].mxu0
    %v324 = vadd.f32 %v215, %v323
    %v325 = vpop.f32.mrb[0].mxu0
    %326 = vmatprep.mubr.bf16.mxu0 0
    %327 = vmatmul.mubr.bf16.gmra.mrb[0].mxu0 %v137
    %v328 = vpop.f32.mrb[0].mxu0
    %v329 = vadd.f32 %v220, %v328
    %v330 = vpop.f32.mrb[0].mxu0
    %v331 = vpop.f32.mrb[0].mxu0
    %v332 = vadd.f32 %v223, %v331
    %v333 = vpop.f32.mrb[0].mxu0
    %334 = vmatprep.mubr.bf16.mxu0 0
    %335 = vmatmul.mubr.bf16.gmra.mrb[0].mxu0 %v140
    %v336 = vpop.f32.mrb[0].mxu0
    %v337 = vadd.f32 %v228, %v336
    %v338 = vpop.f32.mrb[0].mxu0
    %v339 = vpop.f32.mrb[0].mxu0
    %v340 = vadd.f32 %v231, %v339
    %v341 = vpop.f32.mrb[0].mxu0
    %342 = vdwg.mxu0
    %v344 = vlaneseq
    %v345 = vshrl.u32 %v344, 7
    %v346 = vsub.s32 0, %v345
    %v347 = vrot.slane %v74, %v346
    %v349 = vadd.f32 %v289, %v347
    %v350 = vadd.f32 %v292, %v347
    %v351 = vadd.f32 %v297, %v347
    %v352 = vadd.f32 %v300, %v347
    %v353 = vadd.f32 %v305, %v347
    %v354 = vadd.f32 %v308, %v347
    %v355 = vadd.f32 %v313, %v347
    %v356 = vadd.f32 %v316, %v347
    %v357 = vadd.f32 %v321, %v347
    %v358 = vadd.f32 %v324, %v347
    %v359 = vadd.f32 %v329, %v347
    %v360 = vadd.f32 %v332, %v347
    %v361 = vadd.f32 %v337, %v347
    %v362 = vadd.f32 %v340, %v347
    %vm363 = vcmp.gt.f32.partialorder %v349, 0.0
    %vm364 = vcmp.gt.f32.partialorder %v350, 0.0
    %vm365 = vcmp.gt.f32.partialorder %v351, 0.0
    %vm366 = vcmp.gt.f32.partialorder %v352, 0.0
    %vm367 = vcmp.gt.f32.partialorder %v353, 0.0
    %vm368 = vcmp.gt.f32.partialorder %v354, 0.0
    %vm369 = vcmp.gt.f32.partialorder %v355, 0.0
    %vm370 = vcmp.gt.f32.partialorder %v356, 0.0
    %vm371 = vcmp.gt.f32.partialorder %v357, 0.0
    %vm372 = vcmp.gt.f32.partialorder %v358, 0.0
    %vm373 = vcmp.gt.f32.partialorder %v359, 0.0
    %vm374 = vcmp.gt.f32.partialorder %v360, 0.0
    %vm375 = vcmp.gt.f32.partialorder %v361, 0.0
    %vm376 = vcmp.gt.f32.partialorder %v362, 0.0
    %v377 = vstv %s75
    %v378 = vmul.f32 %v377, %v349
    %v379 = vmul.f32 %v377, %v350
    %v380 = vmul.f32 %v377, %v351
    %v381 = vmul.f32 %v377, %v352
    %v382 = vmul.f32 %v377, %v353
    %v383 = vmul.f32 %v377, %v354
    %v384 = vmul.f32 %v377, %v355
    %v385 = vmul.f32 %v377, %v356
    %v386 = vmul.f32 %v377, %v357
    %v387 = vmul.f32 %v377, %v358
    %v388 = vmul.f32 %v377, %v359
    %v389 = vmul.f32 %v377, %v360
    %v390 = vmul.f32 %v377, %v361
    %v391 = vmul.f32 %v377, %v362
    %v392 = vsel %vm363, %v349, %v378
    %v393 = vsel %vm364, %v350, %v379
    %v394 = vsel %vm365, %v351, %v380
    %v395 = vsel %vm366, %v352, %v381
    %v396 = vsel %vm367, %v353, %v382
    %v397 = vsel %vm368, %v354, %v383
    %v398 = vsel %vm369, %v355, %v384
    %v399 = vsel %vm370, %v356, %v385
    %v400 = vsel %vm371, %v357, %v386
    %v401 = vsel %vm372, %v358, %v387
    %v402 = vsel %vm373, %v359, %v388
    %v403 = vsel %vm374, %v360, %v389
    %v404 = vsel %vm375, %v361, %v390
    %v405 = vsel %vm376, %v362, %v391
    %v406 = vpack.c.bf16 %v393, %v392
    %v407 = vpack.c.bf16 %v395, %v394
    %v408 = vpack.c.bf16 %v397, %v396
    %v409 = vpack.c.bf16 %v399, %v398
    %v410 = vpack.c.bf16 %v401, %v400
    %v411 = vpack.c.bf16 %v403, %v402
    %v412 = vpack.c.bf16 %v405, %v404
    %v413 = vld [vmem:[%s3] sm:$0xf]
    %v414 = vld [vmem:[%s3 + $0x4] sm:$0xf]
    %v415 = vld [vmem:[%s3 + $0x8] sm:$0xf]
    %v416 = vld [vmem:[%s3 + $0xc] sm:$0xf]
    %v417 = vld [vmem:[%s3 + $0x10] sm:$0xf]
    %v418 = vld [vmem:[%s3 + $0x14] sm:$0xf]
    %v419 = vld [vmem:[%s3 + $0x18] sm:$0xf]
    %v420 = vld [vmem:[%s3 + $0x1c] sm:$0xf]
    %v421 = vld [vmem:[%s3 + $0x20] sm:$0xf]
    %v422 = vld [vmem:[%s3 + $0x24] sm:$0xf]
    %v423 = vld [vmem:[%s3 + $0x28] sm:$0xf]
    %v424 = vld [vmem:[%s3 + $0x2c] sm:$0xf]
    %v425 = vld [vmem:[%s3 + $0x30] sm:$0xf]
    %v426 = vld [vmem:[%s3 + $0x34] sm:$0xf]
    %v427 = vld [vmem:[%s3 + $0x38] sm:$0xf]
    %v428 = vld [vmem:[%s3 + $0x3c] sm:$0xf]
    %v429 = vld [vmem:[%s4] sm:$0x1]
    %s430 = sld [smem:[#allocation2 + $0x1]]
    %v439 = vunpack.c.l.b16 %v421
    %v440 = vunpack.c.l.b16 %v422
    %v441 = vunpack.c.l.b16 %v423
    %v442 = vunpack.c.l.b16 %v424
    %v443 = vunpack.c.l.b16 %v425
    %v444 = vunpack.c.l.b16 %v426
    %v445 = vunpack.c.l.b16 %v427
    %v446 = vunpack.c.l.b16 %v428
    %v447 = vpack.c.b16 %v440, %v439
    %v448 = vpack.c.b16 %v442, %v441
    %v449 = vpack.c.b16 %v444, %v443
    %v450 = vpack.c.b16 %v446, %v445
    %vm455 = vcmask 523264
    %v457 = vsel %vm455, %v407, 0
    %v460 = vsel %vm455, %v408, 0
    %v463 = vsel %vm455, %v409, 0
    %v466 = vsel %vm455, %v410, 0
    %v469 = vsel %vm455, %v411, 0
    %v472 = vsel %vm455, %v412, 0
    %474 = vmatprep.subr.bf16.mxu0 0
    %475 = vmatpush1.bf16.msra.mxu0 %v447
    %476 = vmatprep.subr.bf16.mxu0 0
    %477 = vmatpush1.bf16.msra.mxu0 %v448
    %478 = vmatprep.subr.bf16.mxu0 0
    %479 = vmatpush1.bf16.msra.mxu0 %v449
    %480 = vmatprep.subr.bf16.mxu0 0
    %481 = vmatpush1.bf16.msra.mxu0 %v450
    %482 = vmatprep.subr.bf16.mxu0 0
    %483 = vmatpush1.bf16.msra.mxu0 0
    %484 = vmatprep.subr.bf16.mxu0 0
    %485 = vmatpush1.bf16.msra.mxu0 0
    %486 = vmatprep.subr.bf16.mxu0 0
    %487 = vmatpush1.bf16.msra.mxu0 0
    %488 = vmatprep.subr.bf16.mxu0 0
    %489 = vmatpush1.bf16.msra.mxu0 0
    %490 = vmatprep.subr.bf16.mxu0 0
    %491 = vmatpush1.bf16.msra.mxu0 0
    %492 = vmatprep.subr.bf16.mxu0 0
    %493 = vmatpush1.bf16.msra.mxu0 0
    %494 = vmatprep.subr.bf16.mxu0 0
    %495 = vmatpush1.bf16.msra.mxu0 0
    %496 = vmatprep.subr.bf16.mxu0 0
    %497 = vmatpush1.bf16.msra.mxu0 0
    %498 = vmatprep.subr.bf16.mxu0 0
    %499 = vmatpush1.bf16.msra.mxu0 0
    %500 = vmatprep.subr.bf16.mxu0 0
    %501 = vmatpush1.bf16.msra.mxu0 0
    %502 = vmatprep.subr.bf16.mxu0 0
    %503 = vmatpush1.bf16.msra.mxu0 0
    %504 = vmatprep.subr.bf16.mxu0 0
    %505 = vmatpush1.bf16.msra.mxu0 0
    %506 = vmatprep.mubr.bf16.mxu0 0
    %507 = vmatmul.mubr.bf16.gmra.mrb[0].mxu0 %v457
    %v508 = vpop.f32.mrb[0].mxu0
    %v509 = vadd.f32 0.0, %v508
    %v510 = vpop.f32.mrb[0].mxu0
    %v511 = vpop.f32.mrb[0].mxu0
    %v512 = vadd.f32 0.0, %v511
    %v513 = vpop.f32.mrb[0].mxu0
    %514 = vmatprep.mubr.bf16.mxu0 0
    %515 = vmatmul.mubr.bf16.gmra.mrb[0].mxu0 %v460
    %v516 = vpop.f32.mrb[0].mxu0
    %v517 = vadd.f32 0.0, %v516
    %v518 = vpop.f32.mrb[0].mxu0
    %v519 = vpop.f32.mrb[0].mxu0
    %v520 = vadd.f32 0.0, %v519
    %v521 = vpop.f32.mrb[0].mxu0
    %522 = vmatprep.mubr.bf16.mxu0 0
    %523 = vmatmul.mubr.bf16.gmra.mrb[0].mxu0 %v463
    %v524 = vpop.f32.mrb[0].mxu0
    %v525 = vadd.f32 0.0, %v524
    %v526 = vpop.f32.mrb[0].mxu0
    %v527 = vpop.f32.mrb[0].mxu0
    %v528 = vadd.f32 0.0, %v527
    %v529 = vpop.f32.mrb[0].mxu0
    %530 = vmatprep.mubr.bf16.mxu0 0
    %531 = vmatmul.mubr.bf16.gmra.mrb[0].mxu0 %v466
    %v532 = vpop.f32.mrb[0].mxu0
    %v533 = vadd.f32 0.0, %v532
    %v534 = vpop.f32.mrb[0].mxu0
    %v535 = vpop.f32.mrb[0].mxu0
    %v536 = vadd.f32 0.0, %v535
    %v537 = vpop.f32.mrb[0].mxu0
    %538 = vmatprep.mubr.bf16.mxu0 0
    %539 = vmatmul.mubr.bf16.gmra.mrb[0].mxu0 %v469
    %v540 = vpop.f32.mrb[0].mxu0
    %v541 = vadd.f32 0.0, %v540
    %v542 = vpop.f32.mrb[0].mxu0
    %v543 = vpop.f32.mrb[0].mxu0
    %v544 = vadd.f32 0.0, %v543
    %v545 = vpop.f32.mrb[0].mxu0
    %546 = vmatprep.mubr.bf16.mxu0 0
    %547 = vmatmul.mubr.bf16.gmra.mrb[0].mxu0 %v472
    %v548 = vpop.f32.mrb[0].mxu0
    %v549 = vadd.f32 0.0, %v548
    %v550 = vpop.f32.mrb[0].mxu0
    %v551 = vpop.f32.mrb[0].mxu0
    %v552 = vadd.f32 0.0, %v551
    %v553 = vpop.f32.mrb[0].mxu0
    %554 = vdwg.mxu0
    %v563 = vunpack.c.l.b16 %v413
    %v564 = vunpack.c.l.b16 %v414
    %v565 = vunpack.c.l.b16 %v415
    %v566 = vunpack.c.l.b16 %v416
    %v567 = vunpack.c.l.b16 %v417
    %v568 = vunpack.c.l.b16 %v418
    %v569 = vunpack.c.l.b16 %v419
    %v570 = vunpack.c.l.b16 %v420
    %v571 = vpack.c.b16 %v564, %v563
    %v572 = vpack.c.b16 %v566, %v565
    %v573 = vpack.c.b16 %v568, %v567
    %v574 = vpack.c.b16 %v570, %v569
    %v580 = vsel %vm455, %v406, 0
    %582 = vmatprep.subr.bf16.mxu0 0
    %583 = vmatpush1.bf16.msra.mxu0 %v571
    %584 = vmatprep.subr.bf16.mxu0 0
    %585 = vmatpush1.bf16.msra.mxu0 %v572
    %586 = vmatprep.subr.bf16.mxu0 0
    %587 = vmatpush1.bf16.msra.mxu0 %v573
    %588 = vmatprep.subr.bf16.mxu0 0
    %589 = vmatpush1.bf16.msra.mxu0 %v574
    %590 = vmatprep.subr.bf16.mxu0 0
    %591 = vmatpush1.bf16.msra.mxu0 0
    %592 = vmatprep.subr.bf16.mxu0 0
    %593 = vmatpush1.bf16.msra.mxu0 0
    %594 = vmatprep.subr.bf16.mxu0 0
    %595 = vmatpush1.bf16.msra.mxu0 0
    %596 = vmatprep.subr.bf16.mxu0 0
    %597 = vmatpush1.bf16.msra.mxu0 0
    %598 = vmatprep.subr.bf16.mxu0 0
    %599 = vmatpush1.bf16.msra.mxu0 0
    %600 = vmatprep.subr.bf16.mxu0 0
    %601 = vmatpush1.bf16.msra.mxu0 0
    %602 = vmatprep.subr.bf16.mxu0 0
    %603 = vmatpush1.bf16.msra.mxu0 0
    %604 = vmatprep.subr.bf16.mxu0 0
    %605 = vmatpush1.bf16.msra.mxu0 0
    %606 = vmatprep.subr.bf16.mxu0 0
    %607 = vmatpush1.bf16.msra.mxu0 0
    %608 = vmatprep.subr.bf16.mxu0 0
    %609 = vmatpush1.bf16.msra.mxu0 0
    %610 = vmatprep.subr.bf16.mxu0 0
    %611 = vmatpush1.bf16.msra.mxu0 0
    %612 = vmatprep.subr.bf16.mxu0 0
    %613 = vmatpush1.bf16.msra.mxu0 0
    %614 = vmatprep.mubr.bf16.mxu0 0
    %615 = vmatmul.mubr.bf16.gmra.mrb[0].mxu0 %v580
    %v616 = vpop.f32.mrb[0].mxu0
    %v617 = vadd.f32 %v509, %v616
    %v618 = vpop.f32.mrb[0].mxu0
    %v619 = vpop.f32.mrb[0].mxu0
    %v620 = vadd.f32 %v512, %v619
    %v621 = vpop.f32.mrb[0].mxu0
    %622 = vmatprep.mubr.bf16.mxu0 0
    %623 = vmatmul.mubr.bf16.gmra.mrb[0].mxu0 %v457
    %v624 = vpop.f32.mrb[0].mxu0
    %v625 = vadd.f32 %v517, %v624
    %v626 = vpop.f32.mrb[0].mxu0
    %v627 = vpop.f32.mrb[0].mxu0
    %v628 = vadd.f32 %v520, %v627
    %v629 = vpop.f32.mrb[0].mxu0
    %630 = vmatprep.mubr.bf16.mxu0 0
    %631 = vmatmul.mubr.bf16.gmra.mrb[0].mxu0 %v460
    %v632 = vpop.f32.mrb[0].mxu0
    %v633 = vadd.f32 %v525, %v632
    %v634 = vpop.f32.mrb[0].mxu0
    %v635 = vpop.f32.mrb[0].mxu0
    %v636 = vadd.f32 %v528, %v635
    %v637 = vpop.f32.mrb[0].mxu0
    %638 = vmatprep.mubr.bf16.mxu0 0
    %639 = vmatmul.mubr.bf16.gmra.mrb[0].mxu0 %v463
    %v640 = vpop.f32.mrb[0].mxu0
    %v641 = vadd.f32 %v533, %v640
    %v642 = vpop.f32.mrb[0].mxu0
    %v643 = vpop.f32.mrb[0].mxu0
    %v644 = vadd.f32 %v536, %v643
    %v645 = vpop.f32.mrb[0].mxu0
    %646 = vmatprep.mubr.bf16.mxu0 0
    %647 = vmatmul.mubr.bf16.gmra.mrb[0].mxu0 %v466
    %v648 = vpop.f32.mrb[0].mxu0
    %v649 = vadd.f32 %v541, %v648
    %v650 = vpop.f32.mrb[0].mxu0
    %v651 = vpop.f32.mrb[0].mxu0
    %v652 = vadd.f32 %v544, %v651
    %v653 = vpop.f32.mrb[0].mxu0
    %654 = vmatprep.mubr.bf16.mxu0 0
    %655 = vmatmul.mubr.bf16.gmra.mrb[0].mxu0 %v469
    %v656 = vpop.f32.mrb[0].mxu0
    %v657 = vadd.f32 %v549, %v656
    %v658 = vpop.f32.mrb[0].mxu0
    %v659 = vpop.f32.mrb[0].mxu0
    %v660 = vadd.f32 %v552, %v659
    %v661 = vpop.f32.mrb[0].mxu0
    %662 = vdwg.mxu0
    %v663 = vlaneseq
    %v664 = vshrl.u32 %v663, 7
    %v665 = vsub.s32 0, %v664
    %v666 = vrot.slane %v429, %v665
    %v667 = vadd.f32 %v617, %v666
    %v668 = vadd.f32 %v620, %v666
    %v669 = vadd.f32 %v625, %v666
    %v670 = vadd.f32 %v628, %v666
    %v671 = vadd.f32 %v633, %v666
    %v672 = vadd.f32 %v636, %v666
    %v673 = vadd.f32 %v641, %v666
    %v674 = vadd.f32 %v644, %v666
    %v675 = vadd.f32 %v649, %v666
    %v676 = vadd.f32 %v652, %v666
    %v677 = vadd.f32 %v657, %v666
    %v678 = vadd.f32 %v660, %v666
    %vm679 = vcmp.gt.f32.partialorder %v667, 0.0
    %vm680 = vcmp.gt.f32.partialorder %v668, 0.0
    %vm681 = vcmp.gt.f32.partialorder %v669, 0.0
    %vm682 = vcmp.gt.f32.partialorder %v670, 0.0
    %vm683 = vcmp.gt.f32.partialorder %v671, 0.0
    %vm684 = vcmp.gt.f32.partialorder %v672, 0.0
    %vm685 = vcmp.gt.f32.partialorder %v673, 0.0
    %vm686 = vcmp.gt.f32.partialorder %v674, 0.0
    %vm687 = vcmp.gt.f32.partialorder %v675, 0.0
    %vm688 = vcmp.gt.f32.partialorder %v676, 0.0
    %vm689 = vcmp.gt.f32.partialorder %v677, 0.0
    %vm690 = vcmp.gt.f32.partialorder %v678, 0.0
    %v691 = vstv %s430
    %v692 = vmul.f32 %v691, %v667
    %v693 = vmul.f32 %v691, %v668
    %v694 = vmul.f32 %v691, %v669
    %v695 = vmul.f32 %v691, %v670
    %v696 = vmul.f32 %v691, %v671
    %v697 = vmul.f32 %v691, %v672
    %v698 = vmul.f32 %v691, %v673
    %v699 = vmul.f32 %v691, %v674
    %v700 = vmul.f32 %v691, %v675
    %v701 = vmul.f32 %v691, %v676
    %v702 = vmul.f32 %v691, %v677
    %v703 = vmul.f32 %v691, %v678
    %v704 = vsel %vm679, %v667, %v692
    %v705 = vsel %vm680, %v668, %v693
    %v706 = vsel %vm681, %v669, %v694
    %v707 = vsel %vm682, %v670, %v695
    %v708 = vsel %vm683, %v671, %v696
    %v709 = vsel %vm684, %v672, %v697
    %v710 = vsel %vm685, %v673, %v698
    %v711 = vsel %vm686, %v674, %v699
    %v712 = vsel %vm687, %v675, %v700
    %v713 = vsel %vm688, %v676, %v701
    %v714 = vsel %vm689, %v677, %v702
    %v715 = vsel %vm690, %v678, %v703
    %v716 = vpack.c.bf16 %v705, %v704
    %v717 = vpack.c.bf16 %v707, %v706
    %v718 = vpack.c.bf16 %v709, %v708
    %v719 = vpack.c.bf16 %v711, %v710
    %v720 = vpack.c.bf16 %v713, %v712
    %v721 = vpack.c.bf16 %v715, %v714
    %s722 = scalar_lea.vmem %s3, 64
    %v723 = vld [vmem:[%s722] sm:$0xf]
    %v724 = vld [vmem:[%s722 + $0x4] sm:$0xf]
    %v725 = vld [vmem:[%s722 + $0x8] sm:$0xf]
    %v726 = vld [vmem:[%s722 + $0xc] sm:$0xf]
    %v727 = vld [vmem:[%s722 + $0x10] sm:$0xf]
    %v728 = vld [vmem:[%s722 + $0x14] sm:$0xf]
    %v729 = vld [vmem:[%s722 + $0x18] sm:$0xf]
    %v730 = vld [vmem:[%s722 + $0x1c] sm:$0xf]
    %v731 = vld [vmem:[%s722 + $0x20] sm:$0xf]
    %v732 = vld [vmem:[%s722 + $0x24] sm:$0xf]
    %v733 = vld [vmem:[%s722 + $0x28] sm:$0xf]
    %v734 = vld [vmem:[%s722 + $0x2c] sm:$0xf]
    %v735 = vld [vmem:[%s722 + $0x30] sm:$0xf]
    %v736 = vld [vmem:[%s722 + $0x34] sm:$0xf]
    %v737 = vld [vmem:[%s722 + $0x38] sm:$0xf]
    %v738 = vld [vmem:[%s722 + $0x3c] sm:$0xf]
    %v739 = vld [vmem:[%s4 + $0x1] sm:$0x1]
    %s740 = sld [smem:[#allocation2 + $0x2]]
    %v749 = vunpack.c.l.b16 %v731
    %v750 = vunpack.c.l.b16 %v732
    %v751 = vunpack.c.l.b16 %v733
    %v752 = vunpack.c.l.b16 %v734
    %v753 = vunpack.c.l.b16 %v735
    %v754 = vunpack.c.l.b16 %v736
    %v755 = vunpack.c.l.b16 %v737
    %v756 = vunpack.c.l.b16 %v738
    %v757 = vpack.c.b16 %v750, %v749
    %v758 = vpack.c.b16 %v752, %v751
    %v759 = vpack.c.b16 %v754, %v753
    %v760 = vpack.c.b16 %v756, %v755
    %v766 = vsel %vm455, %v717, 0
    %v769 = vsel %vm455, %v718, 0
    %v772 = vsel %vm455, %v719, 0
    %v775 = vsel %vm455, %v720, 0
    %v778 = vsel %vm455, %v721, 0
    %780 = vmatprep.subr.bf16.mxu0 0
    %781 = vmatpush1.bf16.msra.mxu0 %v757
    %782 = vmatprep.subr.bf16.mxu0 0
    %783 = vmatpush1.bf16.msra.mxu0 %v758
    %784 = vmatprep.subr.bf16.mxu0 0
    %785 = vmatpush1.bf16.msra.mxu0 %v759
    %786 = vmatprep.subr.bf16.mxu0 0
    %787 = vmatpush1.bf16.msra.mxu0 %v760
    %788 = vmatprep.subr.bf16.mxu0 0
    %789 = vmatpush1.bf16.msra.mxu0 0
    %790 = vmatprep.subr.bf16.mxu0 0
    %791 = vmatpush1.bf16.msra.mxu0 0
    %792 = vmatprep.subr.bf16.mxu0 0
    %793 = vmatpush1.bf16.msra.mxu0 0
    %794 = vmatprep.subr.bf16.mxu0 0
    %795 = vmatpush1.bf16.msra.mxu0 0
    %796 = vmatprep.subr.bf16.mxu0 0
    %797 = vmatpush1.bf16.msra.mxu0 0
    %798 = vmatprep.subr.bf16.mxu0 0
    %799 = vmatpush1.bf16.msra.mxu0 0
    %800 = vmatprep.subr.bf16.mxu0 0
    %801 = vmatpush1.bf16.msra.mxu0 0
    %802 = vmatprep.subr.bf16.mxu0 0
    %803 = vmatpush1.bf16.msra.mxu0 0
    %804 = vmatprep.subr.bf16.mxu0 0
    %805 = vmatpush1.bf16.msra.mxu0 0
    %806 = vmatprep.subr.bf16.mxu0 0
    %807 = vmatpush1.bf16.msra.mxu0 0
    %808 = vmatprep.subr.bf16.mxu0 0
    %809 = vmatpush1.bf16.msra.mxu0 0
    %810 = vmatprep.subr.bf16.mxu0 0
    %811 = vmatpush1.bf16.msra.mxu0 0
    %812 = vmatprep.mubr.bf16.mxu0 0
    %813 = vmatmul.mubr.bf16.gmra.mrb[0].mxu0 %v766
    %v814 = vpop.f32.mrb[0].mxu0
    %v815 = vadd.f32 0.0, %v814
    %v816 = vpop.f32.mrb[0].mxu0
    %v817 = vpop.f32.mrb[0].mxu0
    %v818 = vadd.f32 0.0, %v817
    %v819 = vpop.f32.mrb[0].mxu0
    %820 = vmatprep.mubr.bf16.mxu0 0
    %821 = vmatmul.mubr.bf16.gmra.mrb[0].mxu0 %v769
    %v822 = vpop.f32.mrb[0].mxu0
    %v823 = vadd.f32 0.0, %v822
    %v824 = vpop.f32.mrb[0].mxu0
    %v825 = vpop.f32.mrb[0].mxu0
    %v826 = vadd.f32 0.0, %v825
    %v827 = vpop.f32.mrb[0].mxu0
    %828 = vmatprep.mubr.bf16.mxu0 0
    %829 = vmatmul.mubr.bf16.gmra.mrb[0].mxu0 %v772
    %v830 = vpop.f32.mrb[0].mxu0
    %v831 = vadd.f32 0.0, %v830
    %v832 = vpop.f32.mrb[0].mxu0
    %v833 = vpop.f32.mrb[0].mxu0
    %v834 = vadd.f32 0.0, %v833
    %v835 = vpop.f32.mrb[0].mxu0
    %836 = vmatprep.mubr.bf16.mxu0 0
    %837 = vmatmul.mubr.bf16.gmra.mrb[0].mxu0 %v775
    %v838 = vpop.f32.mrb[0].mxu0
    %v839 = vadd.f32 0.0, %v838
    %v840 = vpop.f32.mrb[0].mxu0
    %v841 = vpop.f32.mrb[0].mxu0
    %v842 = vadd.f32 0.0, %v841
    %v843 = vpop.f32.mrb[0].mxu0
    %844 = vmatprep.mubr.bf16.mxu0 0
    %845 = vmatmul.mubr.bf16.gmra.mrb[0].mxu0 %v778
    %v846 = vpop.f32.mrb[0].mxu0
    %v847 = vadd.f32 0.0, %v846
    %v848 = vpop.f32.mrb[0].mxu0
    %v849 = vpop.f32.mrb[0].mxu0
    %v850 = vadd.f32 0.0, %v849
    %v851 = vpop.f32.mrb[0].mxu0
    %852 = vdwg.mxu0
    %v861 = vunpack.c.l.b16 %v723
    %v862 = vunpack.c.l.b16 %v724
    %v863 = vunpack.c.l.b16 %v725
    %v864 = vunpack.c.l.b16 %v726
    %v865 = vunpack.c.l.b16 %v727
    %v866 = vunpack.c.l.b16 %v728
    %v867 = vunpack.c.l.b16 %v729
    %v868 = vunpack.c.l.b16 %v730
    %v869 = vpack.c.b16 %v862, %v861
    %v870 = vpack.c.b16 %v864, %v863
    %v871 = vpack.c.b16 %v866, %v865
    %v872 = vpack.c.b16 %v868, %v867
    %v878 = vsel %vm455, %v716, 0
    %880 = vmatprep.subr.bf16.mxu0 0
    %881 = vmatpush1.bf16.msra.mxu0 %v869
    %882 = vmatprep.subr.bf16.mxu0 0
    %883 = vmatpush1.bf16.msra.mxu0 %v870
    %884 = vmatprep.subr.bf16.mxu0 0
    %885 = vmatpush1.bf16.msra.mxu0 %v871
    %886 = vmatprep.subr.bf16.mxu0 0
    %887 = vmatpush1.bf16.msra.mxu0 %v872
    %888 = vmatprep.subr.bf16.mxu0 0
    %889 = vmatpush1.bf16.msra.mxu0 0
    %890 = vmatprep.subr.bf16.mxu0 0
    %891 = vmatpush1.bf16.msra.mxu0 0
    %892 = vmatprep.subr.bf16.mxu0 0
    %893 = vmatpush1.bf16.msra.mxu0 0
    %894 = vmatprep.subr.bf16.mxu0 0
    %895 = vmatpush1.bf16.msra.mxu0 0
    %896 = vmatprep.subr.bf16.mxu0 0
    %897 = vmatpush1.bf16.msra.mxu0 0
    %898 = vmatprep.subr.bf16.mxu0 0
    %899 = vmatpush1.bf16.msra.mxu0 0
    %900 = vmatprep.subr.bf16.mxu0 0
    %901 = vmatpush1.bf16.msra.mxu0 0
    %902 = vmatprep.subr.bf16.mxu0 0
    %903 = vmatpush1.bf16.msra.mxu0 0
    %904 = vmatprep.subr.bf16.mxu0 0
    %905 = vmatpush1.bf16.msra.mxu0 0
    %906 = vmatprep.subr.bf16.mxu0 0
    %907 = vmatpush1.bf16.msra.mxu0 0
    %908 = vmatprep.subr.bf16.mxu0 0
    %909 = vmatpush1.bf16.msra.mxu0 0
    %910 = vmatprep.subr.bf16.mxu0 0
    %911 = vmatpush1.bf16.msra.mxu0 0
    %912 = vmatprep.mubr.bf16.mxu0 0
    %913 = vmatmul.mubr.bf16.gmra.mrb[0].mxu0 %v878
    %v914 = vpop.f32.mrb[0].mxu0
    %v915 = vadd.f32 %v815, %v914
    %v916 = vpop.f32.mrb[0].mxu0
    %v917 = vpop.f32.mrb[0].mxu0
    %v918 = vadd.f32 %v818, %v917
    %v919 = vpop.f32.mrb[0].mxu0
    %920 = vmatprep.mubr.bf16.mxu0 0
    %921 = vmatmul.mubr.bf16.gmra.mrb[0].mxu0 %v766
    %v922 = vpop.f32.mrb[0].mxu0
    %v923 = vadd.f32 %v823, %v922
    %v924 = vpop.f32.mrb[0].mxu0
    %v925 = vpop.f32.mrb[0].mxu0
    %v926 = vadd.f32 %v826, %v925
    %v927 = vpop.f32.mrb[0].mxu0
    %928 = vmatprep.mubr.bf16.mxu0 0
    %929 = vmatmul.mubr.bf16.gmra.mrb[0].mxu0 %v769
    %v930 = vpop.f32.mrb[0].mxu0
    %v931 = vadd.f32 %v831, %v930
    %v932 = vpop.f32.mrb[0].mxu0
    %v933 = vpop.f32.mrb[0].mxu0
    %v934 = vadd.f32 %v834, %v933
    %v935 = vpop.f32.mrb[0].mxu0
    %936 = vmatprep.mubr.bf16.mxu0 0
    %937 = vmatmul.mubr.bf16.gmra.mrb[0].mxu0 %v772
    %v938 = vpop.f32.mrb[0].mxu0
    %v939 = vadd.f32 %v839, %v938
    %v940 = vpop.f32.mrb[0].mxu0
    %v941 = vpop.f32.mrb[0].mxu0
    %v942 = vadd.f32 %v842, %v941
    %v943 = vpop.f32.mrb[0].mxu0
    %944 = vmatprep.mubr.bf16.mxu0 0
    %945 = vmatmul.mubr.bf16.gmra.mrb[0].mxu0 %v775
    %v946 = vpop.f32.mrb[0].mxu0
    %v947 = vadd.f32 %v847, %v946
    %v948 = vpop.f32.mrb[0].mxu0
    %v949 = vpop.f32.mrb[0].mxu0
    %v950 = vadd.f32 %v850, %v949
    %v951 = vpop.f32.mrb[0].mxu0
    %952 = vdwg.mxu0
    %v953 = vlaneseq
    %v954 = vshrl.u32 %v953, 7
    %v955 = vsub.s32 0, %v954
    %v956 = vrot.slane %v739, %v955
    %v957 = vadd.f32 %v915, %v956
    %v958 = vadd.f32 %v918, %v956
    %v959 = vadd.f32 %v923, %v956
    %v960 = vadd.f32 %v926, %v956
    %v961 = vadd.f32 %v931, %v956
    %v962 = vadd.f32 %v934, %v956
    %v963 = vadd.f32 %v939, %v956
    %v964 = vadd.f32 %v942, %v956
    %v965 = vadd.f32 %v947, %v956
    %v966 = vadd.f32 %v950, %v956
    %vm967 = vcmp.gt.f32.partialorder %v957, 0.0
    %vm968 = vcmp.gt.f32.partialorder %v958, 0.0
    %vm969 = vcmp.gt.f32.partialorder %v959, 0.0
    %vm970 = vcmp.gt.f32.partialorder %v960, 0.0
    %vm971 = vcmp.gt.f32.partialorder %v961, 0.0
    %vm972 = vcmp.gt.f32.partialorder %v962, 0.0
    %vm973 = vcmp.gt.f32.partialorder %v963, 0.0
    %vm974 = vcmp.gt.f32.partialorder %v964, 0.0
    %vm975 = vcmp.gt.f32.partialorder %v965, 0.0
    %vm976 = vcmp.gt.f32.partialorder %v966, 0.0
    %v977 = vstv %s740
    %v978 = vmul.f32 %v977, %v957
    %v979 = vmul.f32 %v977, %v958
    %v980 = vmul.f32 %v977, %v959
    %v981 = vmul.f32 %v977, %v960
    %v982 = vmul.f32 %v977, %v961
    %v983 = vmul.f32 %v977, %v962
    %v984 = vmul.f32 %v977, %v963
    %v985 = vmul.f32 %v977, %v964
    %v986 = vmul.f32 %v977, %v965
    %v987 = vmul.f32 %v977, %v966
    %v988 = vsel %vm967, %v957, %v978
    %v989 = vsel %vm968, %v958, %v979
    %v990 = vsel %vm969, %v959, %v980
    %v991 = vsel %vm970, %v960, %v981
    %v992 = vsel %vm971, %v961, %v982
    %v993 = vsel %vm972, %v962, %v983
    %v994 = vsel %vm973, %v963, %v984
    %v995 = vsel %vm974, %v964, %v985
    %v996 = vsel %vm975, %v965, %v986
    %v997 = vsel %vm976, %v966, %v987
    %v998 = vpack.c.bf16 %v989, %v988
    %v999 = vpack.c.bf16 %v991, %v990
    %v1000 = vpack.c.bf16 %v993, %v992
    %v1001 = vpack.c.bf16 %v995, %v994
    %v1002 = vpack.c.bf16 %v997, %v996
    %s1003 = scalar_lea.vmem %s3, 128
    %v1004 = vld [vmem:[%s1003] sm:$0xf]
    %v1005 = vld [vmem:[%s1003 + $0x4] sm:$0xf]
    %v1006 = vld [vmem:[%s1003 + $0x8] sm:$0xf]
    %v1007 = vld [vmem:[%s1003 + $0xc] sm:$0xf]
    %v1008 = vld [vmem:[%s1003 + $0x10] sm:$0xf]
    %v1009 = vld [vmem:[%s1003 + $0x14] sm:$0xf]
    %v1010 = vld [vmem:[%s1003 + $0x18] sm:$0xf]
    %v1011 = vld [vmem:[%s1003 + $0x1c] sm:$0xf]
    %v1012 = vld [vmem:[%s1003 + $0x20] sm:$0xf]
    %v1013 = vld [vmem:[%s1003 + $0x24] sm:$0xf]
    %v1014 = vld [vmem:[%s1003 + $0x28] sm:$0xf]
    %v1015 = vld [vmem:[%s1003 + $0x2c] sm:$0xf]
    %v1016 = vld [vmem:[%s1003 + $0x30] sm:$0xf]
    %v1017 = vld [vmem:[%s1003 + $0x34] sm:$0xf]
    %v1018 = vld [vmem:[%s1003 + $0x38] sm:$0xf]
    %v1019 = vld [vmem:[%s1003 + $0x3c] sm:$0xf]
    %v1020 = vld [vmem:[%s4 + $0x2] sm:$0x1]
    %s1021 = sld [smem:[#allocation2 + $0x3]]
    %v1030 = vunpack.c.l.b16 %v1012
    %v1031 = vunpack.c.l.b16 %v1013
    %v1032 = vunpack.c.l.b16 %v1014
    %v1033 = vunpack.c.l.b16 %v1015
    %v1034 = vunpack.c.l.b16 %v1016
    %v1035 = vunpack.c.l.b16 %v1017
    %v1036 = vunpack.c.l.b16 %v1018
    %v1037 = vunpack.c.l.b16 %v1019
    %v1038 = vpack.c.b16 %v1031, %v1030
    %v1039 = vpack.c.b16 %v1033, %v1032
    %v1040 = vpack.c.b16 %v1035, %v1034
    %v1041 = vpack.c.b16 %v1037, %v1036
    %v1047 = vsel %vm455, %v999, 0
    %v1050 = vsel %vm455, %v1000, 0
    %v1053 = vsel %vm455, %v1001, 0
    %v1056 = vsel %vm455, %v1002, 0
    %1058 = vmatprep.subr.bf16.mxu0 0
    %1059 = vmatpush1.bf16.msra.mxu0 %v1038
    %1060 = vmatprep.subr.bf16.mxu0 0
    %1061 = vmatpush1.bf16.msra.mxu0 %v1039
    %1062 = vmatprep.subr.bf16.mxu0 0
    %1063 = vmatpush1.bf16.msra.mxu0 %v1040
    %1064 = vmatprep.subr.bf16.mxu0 0
    %1065 = vmatpush1.bf16.msra.mxu0 %v1041
    %1066 = vmatprep.subr.bf16.mxu0 0
    %1067 = vmatpush1.bf16.msra.mxu0 0
    %1068 = vmatprep.subr.bf16.mxu0 0
    %1069 = vmatpush1.bf16.msra.mxu0 0
    %1070 = vmatprep.subr.bf16.mxu0 0
    %1071 = vmatpush1.bf16.msra.mxu0 0
    %1072 = vmatprep.subr.bf16.mxu0 0
    %1073 = vmatpush1.bf16.msra.mxu0 0
    %1074 = vmatprep.subr.bf16.mxu0 0
    %1075 = vmatpush1.bf16.msra.mxu0 0
    %1076 = vmatprep.subr.bf16.mxu0 0
    %1077 = vmatpush1.bf16.msra.mxu0 0
    %1078 = vmatprep.subr.bf16.mxu0 0
    %1079 = vmatpush1.bf16.msra.mxu0 0
    %1080 = vmatprep.subr.bf16.mxu0 0
    %1081 = vmatpush1.bf16.msra.mxu0 0
    %1082 = vmatprep.subr.bf16.mxu0 0
    %1083 = vmatpush1.bf16.msra.mxu0 0
    %1084 = vmatprep.subr.bf16.mxu0 0
    %1085 = vmatpush1.bf16.msra.mxu0 0
    %1086 = vmatprep.subr.bf16.mxu0 0
    %1087 = vmatpush1.bf16.msra.mxu0 0
    %1088 = vmatprep.subr.bf16.mxu0 0
    %1089 = vmatpush1.bf16.msra.mxu0 0
    %1090 = vmatprep.mubr.bf16.mxu0 0
    %1091 = vmatmul.mubr.bf16.gmra.mrb[0].mxu0 %v1047
    %v1092 = vpop.f32.mrb[0].mxu0
    %v1093 = vadd.f32 0.0, %v1092
    %v1094 = vpop.f32.mrb[0].mxu0
    %v1095 = vpop.f32.mrb[0].mxu0
    %v1096 = vadd.f32 0.0, %v1095
    %v1097 = vpop.f32.mrb[0].mxu0
    %1098 = vmatprep.mubr.bf16.mxu0 0
    %1099 = vmatmul.mubr.bf16.gmra.mrb[0].mxu0 %v1050
    %v1100 = vpop.f32.mrb[0].mxu0
    %v1101 = vadd.f32 0.0, %v1100
    %v1102 = vpop.f32.mrb[0].mxu0
    %v1103 = vpop.f32.mrb[0].mxu0
    %v1104 = vadd.f32 0.0, %v1103
    %v1105 = vpop.f32.mrb[0].mxu0
    %1106 = vmatprep.mubr.bf16.mxu0 0
    %1107 = vmatmul.mubr.bf16.gmra.mrb[0].mxu0 %v1053
    %v1108 = vpop.f32.mrb[0].mxu0
    %v1109 = vadd.f32 0.0, %v1108
    %v1110 = vpop.f32.mrb[0].mxu0
    %v1111 = vpop.f32.mrb[0].mxu0
    %v1112 = vadd.f32 0.0, %v1111
    %v1113 = vpop.f32.mrb[0].mxu0
    %1114 = vmatprep.mubr.bf16.mxu0 0
    %1115 = vmatmul.mubr.bf16.gmra.mrb[0].mxu0 %v1056
    %v1116 = vpop.f32.mrb[0].mxu0
    %v1117 = vadd.f32 0.0, %v1116
    %v1118 = vpop.f32.mrb[0].mxu0
    %v1119 = vpop.f32.mrb[0].mxu0
    %v1120 = vadd.f32 0.0, %v1119
    %v1121 = vpop.f32.mrb[0].mxu0
    %1122 = vdwg.mxu0
    %v1131 = vunpack.c.l.b16 %v1004
    %v1132 = vunpack.c.l.b16 %v1005
    %v1133 = vunpack.c.l.b16 %v1006
    %v1134 = vunpack.c.l.b16 %v1007
    %v1135 = vunpack.c.l.b16 %v1008
    %v1136 = vunpack.c.l.b16 %v1009
    %v1137 = vunpack.c.l.b16 %v1010
    %v1138 = vunpack.c.l.b16 %v1011
    %v1139 = vpack.c.b16 %v1132, %v1131
    %v1140 = vpack.c.b16 %v1134, %v1133
    %v1141 = vpack.c.b16 %v1136, %v1135
    %v1142 = vpack.c.b16 %v1138, %v1137
    %v1148 = vsel %vm455, %v998, 0
    %1150 = vmatprep.subr.bf16.mxu0 0
    %1151 = vmatpush1.bf16.msra.mxu0 %v1139
    %1152 = vmatprep.subr.bf16.mxu0 0
    %1153 = vmatpush1.bf16.msra.mxu0 %v1140
    %1154 = vmatprep.subr.bf16.mxu0 0
    %1155 = vmatpush1.bf16.msra.mxu0 %v1141
    %1156 = vmatprep.subr.bf16.mxu0 0
    %1157 = vmatpush1.bf16.msra.mxu0 %v1142
    %1158 = vmatprep.subr.bf16.mxu0 0
    %1159 = vmatpush1.bf16.msra.mxu0 0
    %1160 = vmatprep.subr.bf16.mxu0 0
    %1161 = vmatpush1.bf16.msra.mxu0 0
    %1162 = vmatprep.subr.bf16.mxu0 0
    %1163 = vmatpush1.bf16.msra.mxu0 0
    %1164 = vmatprep.subr.bf16.mxu0 0
    %1165 = vmatpush1.bf16.msra.mxu0 0
    %1166 = vmatprep.subr.bf16.mxu0 0
    %1167 = vmatpush1.bf16.msra.mxu0 0
    %1168 = vmatprep.subr.bf16.mxu0 0
    %1169 = vmatpush1.bf16.msra.mxu0 0
    %1170 = vmatprep.subr.bf16.mxu0 0
    %1171 = vmatpush1.bf16.msra.mxu0 0
    %1172 = vmatprep.subr.bf16.mxu0 0
    %1173 = vmatpush1.bf16.msra.mxu0 0
    %1174 = vmatprep.subr.bf16.mxu0 0
    %1175 = vmatpush1.bf16.msra.mxu0 0
    %1176 = vmatprep.subr.bf16.mxu0 0
    %1177 = vmatpush1.bf16.msra.mxu0 0
    %1178 = vmatprep.subr.bf16.mxu0 0
    %1179 = vmatpush1.bf16.msra.mxu0 0
    %1180 = vmatprep.subr.bf16.mxu0 0
    %1181 = vmatpush1.bf16.msra.mxu0 0
    %1182 = vmatprep.mubr.bf16.mxu0 0
    %1183 = vmatmul.mubr.bf16.gmra.mrb[0].mxu0 %v1148
    %v1184 = vpop.f32.mrb[0].mxu0
    %v1185 = vadd.f32 %v1093, %v1184
    %v1186 = vpop.f32.mrb[0].mxu0
    %v1187 = vpop.f32.mrb[0].mxu0
    %v1188 = vadd.f32 %v1096, %v1187
    %v1189 = vpop.f32.mrb[0].mxu0
    %1190 = vmatprep.mubr.bf16.mxu0 0
    %1191 = vmatmul.mubr.bf16.gmra.mrb[0].mxu0 %v1047
    %v1192 = vpop.f32.mrb[0].mxu0
    %v1193 = vadd.f32 %v1101, %v1192
    %v1194 = vpop.f32.mrb[0].mxu0
    %v1195 = vpop.f32.mrb[0].mxu0
    %v1196 = vadd.f32 %v1104, %v1195
    %v1197 = vpop.f32.mrb[0].mxu0
    %1198 = vmatprep.mubr.bf16.mxu0 0
    %1199 = vmatmul.mubr.bf16.gmra.mrb[0].mxu0 %v1050
    %v1200 = vpop.f32.mrb[0].mxu0
    %v1201 = vadd.f32 %v1109, %v1200
    %v1202 = vpop.f32.mrb[0].mxu0
    %v1203 = vpop.f32.mrb[0].mxu0
    %v1204 = vadd.f32 %v1112, %v1203
    %v1205 = vpop.f32.mrb[0].mxu0
    %1206 = vmatprep.mubr.bf16.mxu0 0
    %1207 = vmatmul.mubr.bf16.gmra.mrb[0].mxu0 %v1053
    %v1208 = vpop.f32.mrb[0].mxu0
    %v1209 = vadd.f32 %v1117, %v1208
    %v1210 = vpop.f32.mrb[0].mxu0
    %v1211 = vpop.f32.mrb[0].mxu0
    %v1212 = vadd.f32 %v1120, %v1211
    %v1213 = vpop.f32.mrb[0].mxu0
    %1214 = vdwg.mxu0
    %v1215 = vlaneseq
    %v1216 = vshrl.u32 %v1215, 7
    %v1217 = vsub.s32 0, %v1216
    %v1218 = vrot.slane %v1020, %v1217
    %v1219 = vadd.f32 %v1185, %v1218
    %v1220 = vadd.f32 %v1188, %v1218
    %v1221 = vadd.f32 %v1193, %v1218
    %v1222 = vadd.f32 %v1196, %v1218
    %v1223 = vadd.f32 %v1201, %v1218
    %v1224 = vadd.f32 %v1204, %v1218
    %v1225 = vadd.f32 %v1209, %v1218
    %v1226 = vadd.f32 %v1212, %v1218
    %vm1227 = vcmp.gt.f32.partialorder %v1219, 0.0
    %vm1228 = vcmp.gt.f32.partialorder %v1220, 0.0
    %vm1229 = vcmp.gt.f32.partialorder %v1221, 0.0
    %vm1230 = vcmp.gt.f32.partialorder %v1222, 0.0
    %vm1231 = vcmp.gt.f32.partialorder %v1223, 0.0
    %vm1232 = vcmp.gt.f32.partialorder %v1224, 0.0
    %vm1233 = vcmp.gt.f32.partialorder %v1225, 0.0
    %vm1234 = vcmp.gt.f32.partialorder %v1226, 0.0
    %v1235 = vstv %s1021
    %v1236 = vmul.f32 %v1235, %v1219
    %v1237 = vmul.f32 %v1235, %v1220
    %v1238 = vmul.f32 %v1235, %v1221
    %v1239 = vmul.f32 %v1235, %v1222
    %v1240 = vmul.f32 %v1235, %v1223
    %v1241 = vmul.f32 %v1235, %v1224
    %v1242 = vmul.f32 %v1235, %v1225
    %v1243 = vmul.f32 %v1235, %v1226
    %v1244 = vsel %vm1227, %v1219, %v1236
    %v1245 = vsel %vm1228, %v1220, %v1237
    %v1246 = vsel %vm1229, %v1221, %v1238
    %v1247 = vsel %vm1230, %v1222, %v1239
    %v1248 = vsel %vm1231, %v1223, %v1240
    %v1249 = vsel %vm1232, %v1224, %v1241
    %v1250 = vsel %vm1233, %v1225, %v1242
    %v1251 = vsel %vm1234, %v1226, %v1243
    %v1252 = vpack.c.bf16 %v1245, %v1244
    %v1253 = vpack.c.bf16 %v1247, %v1246
    %v1254 = vpack.c.bf16 %v1249, %v1248
    %v1255 = vpack.c.bf16 %v1251, %v1250
    %s1256 = scalar_lea.vmem %s3, 192
    %v1257 = vld [vmem:[%s1256] sm:$0xf]
    %v1258 = vld [vmem:[%s1256 + $0x4] sm:$0xf]
    %v1259 = vld [vmem:[%s1256 + $0x8] sm:$0xf]
    %v1260 = vld [vmem:[%s1256 + $0xc] sm:$0xf]
    %v1261 = vld [vmem:[%s1256 + $0x10] sm:$0xf]
    %v1262 = vld [vmem:[%s1256 + $0x14] sm:$0xf]
    %v1263 = vld [vmem:[%s1256 + $0x18] sm:$0xf]
    %v1264 = vld [vmem:[%s1256 + $0x1c] sm:$0xf]
    %v1265 = vld [vmem:[%s1256 + $0x20] sm:$0xf]
    %v1266 = vld [vmem:[%s1256 + $0x24] sm:$0xf]
    %v1267 = vld [vmem:[%s1256 + $0x28] sm:$0xf]
    %v1268 = vld [vmem:[%s1256 + $0x2c] sm:$0xf]
    %v1269 = vld [vmem:[%s1256 + $0x30] sm:$0xf]
    %v1270 = vld [vmem:[%s1256 + $0x34] sm:$0xf]
    %v1271 = vld [vmem:[%s1256 + $0x38] sm:$0xf]
    %v1272 = vld [vmem:[%s1256 + $0x3c] sm:$0xf]
    %v1273 = vld [vmem:[%s4 + $0x3] sm:$0x1]
    %s1274 = sld [smem:[#allocation2 + $0x4]]
    %v1283 = vunpack.c.l.b16 %v1265
    %v1284 = vunpack.c.l.b16 %v1266
    %v1285 = vunpack.c.l.b16 %v1267
    %v1286 = vunpack.c.l.b16 %v1268
    %v1287 = vunpack.c.l.b16 %v1269
    %v1288 = vunpack.c.l.b16 %v1270
    %v1289 = vunpack.c.l.b16 %v1271
    %v1290 = vunpack.c.l.b16 %v1272
    %v1291 = vpack.c.b16 %v1284, %v1283
    %v1292 = vpack.c.b16 %v1286, %v1285
    %v1293 = vpack.c.b16 %v1288, %v1287
    %v1294 = vpack.c.b16 %v1290, %v1289
    %v1300 = vsel %vm455, %v1253, 0
    %v1303 = vsel %vm455, %v1254, 0
    %v1306 = vsel %vm455, %v1255, 0
    %1308 = vmatprep.subr.bf16.mxu0 0
    %1309 = vmatpush1.bf16.msra.mxu0 %v1291
    %1310 = vmatprep.subr.bf16.mxu0 0
    %1311 = vmatpush1.bf16.msra.mxu0 %v1292
    %1312 = vmatprep.subr.bf16.mxu0 0
    %1313 = vmatpush1.bf16.msra.mxu0 %v1293
    %1314 = vmatprep.subr.bf16.mxu0 0
    %1315 = vmatpush1.bf16.msra.mxu0 %v1294
    %1316 = vmatprep.subr.bf16.mxu0 0
    %1317 = vmatpush1.bf16.msra.mxu0 0
    %1318 = vmatprep.subr.bf16.mxu0 0
    %1319 = vmatpush1.bf16.msra.mxu0 0
    %1320 = vmatprep.subr.bf16.mxu0 0
    %1321 = vmatpush1.bf16.msra.mxu0 0
    %1322 = vmatprep.subr.bf16.mxu0 0
    %1323 = vmatpush1.bf16.msra.mxu0 0
    %1324 = vmatprep.subr.bf16.mxu0 0
    %1325 = vmatpush1.bf16.msra.mxu0 0
    %1326 = vmatprep.subr.bf16.mxu0 0
    %1327 = vmatpush1.bf16.msra.mxu0 0
    %1328 = vmatprep.subr.bf16.mxu0 0
    %1329 = vmatpush1.bf16.msra.mxu0 0
    %1330 = vmatprep.subr.bf16.mxu0 0
    %1331 = vmatpush1.bf16.msra.mxu0 0
    %1332 = vmatprep.subr.bf16.mxu0 0
    %1333 = vmatpush1.bf16.msra.mxu0 0
    %1334 = vmatprep.subr.bf16.mxu0 0
    %1335 = vmatpush1.bf16.msra.mxu0 0
    %1336 = vmatprep.subr.bf16.mxu0 0
    %1337 = vmatpush1.bf16.msra.mxu0 0
    %1338 = vmatprep.subr.bf16.mxu0 0
    %1339 = vmatpush1.bf16.msra.mxu0 0
    %1340 = vmatprep.mubr.bf16.mxu0 0
    %1341 = vmatmul.mubr.bf16.gmra.mrb[0].mxu0 %v1300
    %v1342 = vpop.f32.mrb[0].mxu0
    %v1343 = vadd.f32 0.0, %v1342
    %v1344 = vpop.f32.mrb[0].mxu0
    %v1345 = vpop.f32.mrb[0].mxu0
    %v1346 = vadd.f32 0.0, %v1345
    %v1347 = vpop.f32.mrb[0].mxu0
    %1348 = vmatprep.mubr.bf16.mxu0 0
    %1349 = vmatmul.mubr.bf16.gmra.mrb[0].mxu0 %v1303
    %v1350 = vpop.f32.mrb[0].mxu0
    %v1351 = vadd.f32 0.0, %v1350
    %v1352 = vpop.f32.mrb[0].mxu0
    %v1353 = vpop.f32.mrb[0].mxu0
    %v1354 = vadd.f32 0.0, %v1353
    %v1355 = vpop.f32.mrb[0].mxu0
    %1356 = vmatprep.mubr.bf16.mxu0 0
    %1357 = vmatmul.mubr.bf16.gmra.mrb[0].mxu0 %v1306
    %v1358 = vpop.f32.mrb[0].mxu0
    %v1359 = vadd.f32 0.0, %v1358
    %v1360 = vpop.f32.mrb[0].mxu0
    %v1361 = vpop.f32.mrb[0].mxu0
    %v1362 = vadd.f32 0.0, %v1361
    %v1363 = vpop.f32.mrb[0].mxu0
    %1364 = vdwg.mxu0
    %v1373 = vunpack.c.l.b16 %v1257
    %v1374 = vunpack.c.l.b16 %v1258
    %v1375 = vunpack.c.l.b16 %v1259
    %v1376 = vunpack.c.l.b16 %v1260
    %v1377 = vunpack.c.l.b16 %v1261
    %v1378 = vunpack.c.l.b16 %v1262
    %v1379 = vunpack.c.l.b16 %v1263
    %v1380 = vunpack.c.l.b16 %v1264
    %v1381 = vpack.c.b16 %v1374, %v1373
    %v1382 = vpack.c.b16 %v1376, %v1375
    %v1383 = vpack.c.b16 %v1378, %v1377
    %v1384 = vpack.c.b16 %v1380, %v1379
    %v1390 = vsel %vm455, %v1252, 0
    %1392 = vmatprep.subr.bf16.mxu0 0
    %1393 = vmatpush1.bf16.msra.mxu0 %v1381
    %1394 = vmatprep.subr.bf16.mxu0 0
    %1395 = vmatpush1.bf16.msra.mxu0 %v1382
    %1396 = vmatprep.subr.bf16.mxu0 0
    %1397 = vmatpush1.bf16.msra.mxu0 %v1383
    %1398 = vmatprep.subr.bf16.mxu0 0
    %1399 = vmatpush1.bf16.msra.mxu0 %v1384
    %1400 = vmatprep.subr.bf16.mxu0 0
    %1401 = vmatpush1.bf16.msra.mxu0 0
    %1402 = vmatprep.subr.bf16.mxu0 0
    %1403 = vmatpush1.bf16.msra.mxu0 0
    %1404 = vmatprep.subr.bf16.mxu0 0
    %1405 = vmatpush1.bf16.msra.mxu0 0
    %1406 = vmatprep.subr.bf16.mxu0 0
    %1407 = vmatpush1.bf16.msra.mxu0 0
    %1408 = vmatprep.subr.bf16.mxu0 0
    %1409 = vmatpush1.bf16.msra.mxu0 0
    %1410 = vmatprep.subr.bf16.mxu0 0
    %1411 = vmatpush1.bf16.msra.mxu0 0
    %1412 = vmatprep.subr.bf16.mxu0 0
    %1413 = vmatpush1.bf16.msra.mxu0 0
    %1414 = vmatprep.subr.bf16.mxu0 0
    %1415 = vmatpush1.bf16.msra.mxu0 0
    %1416 = vmatprep.subr.bf16.mxu0 0
    %1417 = vmatpush1.bf16.msra.mxu0 0
    %1418 = vmatprep.subr.bf16.mxu0 0
    %1419 = vmatpush1.bf16.msra.mxu0 0
    %1420 = vmatprep.subr.bf16.mxu0 0
    %1421 = vmatpush1.bf16.msra.mxu0 0
    %1422 = vmatprep.subr.bf16.mxu0 0
    %1423 = vmatpush1.bf16.msra.mxu0 0
    %1424 = vmatprep.mubr.bf16.mxu0 0
    %1425 = vmatmul.mubr.bf16.gmra.mrb[0].mxu0 %v1390
    %v1426 = vpop.f32.mrb[0].mxu0
    %v1427 = vadd.f32 %v1343, %v1426
    %v1428 = vpop.f32.mrb[0].mxu0
    %v1429 = vpop.f32.mrb[0].mxu0
    %v1430 = vadd.f32 %v1346, %v1429
    %v1431 = vpop.f32.mrb[0].mxu0
    %1432 = vmatprep.mubr.bf16.mxu0 0
    %1433 = vmatmul.mubr.bf16.gmra.mrb[0].mxu0 %v1300
    %v1434 = vpop.f32.mrb[0].mxu0
    %v1435 = vadd.f32 %v1351, %v1434
    %v1436 = vpop.f32.mrb[0].mxu0
    %v1437 = vpop.f32.mrb[0].mxu0
    %v1438 = vadd.f32 %v1354, %v1437
    %v1439 = vpop.f32.mrb[0].mxu0
    %1440 = vmatprep.mubr.bf16.mxu0 0
    %1441 = vmatmul.mubr.bf16.gmra.mrb[0].mxu0 %v1303
    %v1442 = vpop.f32.mrb[0].mxu0
    %v1443 = vadd.f32 %v1359, %v1442
    %v1444 = vpop.f32.mrb[0].mxu0
    %v1445 = vpop.f32.mrb[0].mxu0
    %v1446 = vadd.f32 %v1362, %v1445
    %v1447 = vpop.f32.mrb[0].mxu0
    %1448 = vdwg.mxu0
    %v1449 = vlaneseq
    %v1450 = vshrl.u32 %v1449, 7
    %v1451 = vsub.s32 0, %v1450
    %v1452 = vrot.slane %v1273, %v1451
    %v1453 = vadd.f32 %v1427, %v1452
    %v1454 = vadd.f32 %v1430, %v1452
    %v1455 = vadd.f32 %v1435, %v1452
    %v1456 = vadd.f32 %v1438, %v1452
    %v1457 = vadd.f32 %v1443, %v1452
    %v1458 = vadd.f32 %v1446, %v1452
    %vm1459 = vcmp.gt.f32.partialorder %v1453, 0.0
    %vm1460 = vcmp.gt.f32.partialorder %v1454, 0.0
    %vm1461 = vcmp.gt.f32.partialorder %v1455, 0.0
    %vm1462 = vcmp.gt.f32.partialorder %v1456, 0.0
    %vm1463 = vcmp.gt.f32.partialorder %v1457, 0.0
    %vm1464 = vcmp.gt.f32.partialorder %v1458, 0.0
    %v1465 = vstv %s1274
    %v1466 = vmul.f32 %v1465, %v1453
    %v1467 = vmul.f32 %v1465, %v1454
    %v1468 = vmul.f32 %v1465, %v1455
    %v1469 = vmul.f32 %v1465, %v1456
    %v1470 = vmul.f32 %v1465, %v1457
    %v1471 = vmul.f32 %v1465, %v1458
    %v1472 = vsel %vm1459, %v1453, %v1466
    %v1473 = vsel %vm1460, %v1454, %v1467
    %v1474 = vsel %vm1461, %v1455, %v1468
    %v1475 = vsel %vm1462, %v1456, %v1469
    %v1476 = vsel %vm1463, %v1457, %v1470
    %v1477 = vsel %vm1464, %v1458, %v1471
    %v1478 = vpack.c.bf16 %v1473, %v1472
    %v1479 = vpack.c.bf16 %v1475, %v1474
    %v1480 = vpack.c.bf16 %v1477, %v1476
    %s1481 = scalar_lea.vmem %s3, 256
    %v1482 = vld [vmem:[%s1481] sm:$0xf]
    %v1483 = vld [vmem:[%s1481 + $0x4] sm:$0xf]
    %v1484 = vld [vmem:[%s1481 + $0x8] sm:$0xf]
    %v1485 = vld [vmem:[%s1481 + $0xc] sm:$0xf]
    %v1486 = vld [vmem:[%s1481 + $0x10] sm:$0xf]
    %v1487 = vld [vmem:[%s1481 + $0x14] sm:$0xf]
    %v1488 = vld [vmem:[%s1481 + $0x18] sm:$0xf]
    %v1489 = vld [vmem:[%s1481 + $0x1c] sm:$0xf]
    %v1490 = vld [vmem:[%s1481 + $0x20] sm:$0xf]
    %v1491 = vld [vmem:[%s1481 + $0x24] sm:$0xf]
    %v1492 = vld [vmem:[%s1481 + $0x28] sm:$0xf]
    %v1493 = vld [vmem:[%s1481 + $0x2c] sm:$0xf]
    %v1494 = vld [vmem:[%s1481 + $0x30] sm:$0xf]
    %v1495 = vld [vmem:[%s1481 + $0x34] sm:$0xf]
    %v1496 = vld [vmem:[%s1481 + $0x38] sm:$0xf]
    %v1497 = vld [vmem:[%s1481 + $0x3c] sm:$0xf]
    %v1498 = vld [vmem:[%s4 + $0x4] sm:$0x1]
    %s1499 = sld [smem:[#allocation2 + $0x5]]
    %v1508 = vunpack.c.l.b16 %v1490
    %v1509 = vunpack.c.l.b16 %v1491
    %v1510 = vunpack.c.l.b16 %v1492
    %v1511 = vunpack.c.l.b16 %v1493
    %v1512 = vunpack.c.l.b16 %v1494
    %v1513 = vunpack.c.l.b16 %v1495
    %v1514 = vunpack.c.l.b16 %v1496
    %v1515 = vunpack.c.l.b16 %v1497
    %v1516 = vpack.c.b16 %v1509, %v1508
    %v1517 = vpack.c.b16 %v1511, %v1510
    %v1518 = vpack.c.b16 %v1513, %v1512
    %v1519 = vpack.c.b16 %v1515, %v1514
    %v1525 = vsel %vm455, %v1479, 0
    %v1528 = vsel %vm455, %v1480, 0
    %1530 = vmatprep.subr.bf16.mxu0 0
    %1531 = vmatpush1.bf16.msra.mxu0 %v1516
    %1532 = vmatprep.subr.bf16.mxu0 0
    %1533 = vmatpush1.bf16.msra.mxu0 %v1517
    %1534 = vmatprep.subr.bf16.mxu0 0
    %1535 = vmatpush1.bf16.msra.mxu0 %v1518
    %1536 = vmatprep.subr.bf16.mxu0 0
    %1537 = vmatpush1.bf16.msra.mxu0 %v1519
    %1538 = vmatprep.subr.bf16.mxu0 0
    %1539 = vmatpush1.bf16.msra.mxu0 0
    %1540 = vmatprep.subr.bf16.mxu0 0
    %1541 = vmatpush1.bf16.msra.mxu0 0
    %1542 = vmatprep.subr.bf16.mxu0 0
    %1543 = vmatpush1.bf16.msra.mxu0 0
    %1544 = vmatprep.subr.bf16.mxu0 0
    %1545 = vmatpush1.bf16.msra.mxu0 0
    %1546 = vmatprep.subr.bf16.mxu0 0
    %1547 = vmatpush1.bf16.msra.mxu0 0
    %1548 = vmatprep.subr.bf16.mxu0 0
    %1549 = vmatpush1.bf16.msra.mxu0 0
    %1550 = vmatprep.subr.bf16.mxu0 0
    %1551 = vmatpush1.bf16.msra.mxu0 0
    %1552 = vmatprep.subr.bf16.mxu0 0
    %1553 = vmatpush1.bf16.msra.mxu0 0
    %1554 = vmatprep.subr.bf16.mxu0 0
    %1555 = vmatpush1.bf16.msra.mxu0 0
    %1556 = vmatprep.subr.bf16.mxu0 0
    %1557 = vmatpush1.bf16.msra.mxu0 0
    %1558 = vmatprep.subr.bf16.mxu0 0
    %1559 = vmatpush1.bf16.msra.mxu0 0
    %1560 = vmatprep.subr.bf16.mxu0 0
    %1561 = vmatpush1.bf16.msra.mxu0 0
    %1562 = vmatprep.mubr.bf16.mxu0 0
    %1563 = vmatmul.mubr.bf16.gmra.mrb[0].mxu0 %v1525
    %v1564 = vpop.f32.mrb[0].mxu0
    %v1565 = vadd.f32 0.0, %v1564
    %v1566 = vpop.f32.mrb[0].mxu0
    %v1567 = vpop.f32.mrb[0].mxu0
    %v1568 = vadd.f32 0.0, %v1567
    %v1569 = vpop.f32.mrb[0].mxu0
    %1570 = vmatprep.mubr.bf16.mxu0 0
    %1571 = vmatmul.mubr.bf16.gmra.mrb[0].mxu0 %v1528
    %v1572 = vpop.f32.mrb[0].mxu0
    %v1573 = vadd.f32 0.0, %v1572
    %v1574 = vpop.f32.mrb[0].mxu0
    %v1575 = vpop.f32.mrb[0].mxu0
    %v1576 = vadd.f32 0.0, %v1575
    %v1577 = vpop.f32.mrb[0].mxu0
    %1578 = vdwg.mxu0
    %v1587 = vunpack.c.l.b16 %v1482
    %v1588 = vunpack.c.l.b16 %v1483
    %v1589 = vunpack.c.l.b16 %v1484
    %v1590 = vunpack.c.l.b16 %v1485
    %v1591 = vunpack.c.l.b16 %v1486
    %v1592 = vunpack.c.l.b16 %v1487
    %v1593 = vunpack.c.l.b16 %v1488
    %v1594 = vunpack.c.l.b16 %v1489
    %v1595 = vpack.c.b16 %v1588, %v1587
    %v1596 = vpack.c.b16 %v1590, %v1589
    %v1597 = vpack.c.b16 %v1592, %v1591
    %v1598 = vpack.c.b16 %v1594, %v1593
    %v1604 = vsel %vm455, %v1478, 0
    %1606 = vmatprep.subr.bf16.mxu0 0
    %1607 = vmatpush1.bf16.msra.mxu0 %v1595
    %1608 = vmatprep.subr.bf16.mxu0 0
    %1609 = vmatpush1.bf16.msra.mxu0 %v1596
    %1610 = vmatprep.subr.bf16.mxu0 0
    %1611 = vmatpush1.bf16.msra.mxu0 %v1597
    %1612 = vmatprep.subr.bf16.mxu0 0
    %1613 = vmatpush1.bf16.msra.mxu0 %v1598
    %1614 = vmatprep.subr.bf16.mxu0 0
    %1615 = vmatpush1.bf16.msra.mxu0 0
    %1616 = vmatprep.subr.bf16.mxu0 0
    %1617 = vmatpush1.bf16.msra.mxu0 0
    %1618 = vmatprep.subr.bf16.mxu0 0
    %1619 = vmatpush1.bf16.msra.mxu0 0
    %1620 = vmatprep.subr.bf16.mxu0 0
    %1621 = vmatpush1.bf16.msra.mxu0 0
    %1622 = vmatprep.subr.bf16.mxu0 0
    %1623 = vmatpush1.bf16.msra.mxu0 0
    %1624 = vmatprep.subr.bf16.mxu0 0
    %1625 = vmatpush1.bf16.msra.mxu0 0
    %1626 = vmatprep.subr.bf16.mxu0 0
    %1627 = vmatpush1.bf16.msra.mxu0 0
    %1628 = vmatprep.subr.bf16.mxu0 0
    %1629 = vmatpush1.bf16.msra.mxu0 0
    %1630 = vmatprep.subr.bf16.mxu0 0
    %1631 = vmatpush1.bf16.msra.mxu0 0
    %1632 = vmatprep.subr.bf16.mxu0 0
    %1633 = vmatpush1.bf16.msra.mxu0 0
    %1634 = vmatprep.subr.bf16.mxu0 0
    %1635 = vmatpush1.bf16.msra.mxu0 0
    %1636 = vmatprep.subr.bf16.mxu0 0
    %1637 = vmatpush1.bf16.msra.mxu0 0
    %1638 = vmatprep.mubr.bf16.mxu0 0
    %1639 = vmatmul.mubr.bf16.gmra.mrb[0].mxu0 %v1604
    %v1640 = vpop.f32.mrb[0].mxu0
    %v1641 = vadd.f32 %v1565, %v1640
    %v1642 = vpop.f32.mrb[0].mxu0
    %v1643 = vpop.f32.mrb[0].mxu0
    %v1644 = vadd.f32 %v1568, %v1643
    %v1645 = vpop.f32.mrb[0].mxu0
    %1646 = vmatprep.mubr.bf16.mxu0 0
    %1647 = vmatmul.mubr.bf16.gmra.mrb[0].mxu0 %v1525
    %v1648 = vpop.f32.mrb[0].mxu0
    %v1649 = vadd.f32 %v1573, %v1648
    %v1650 = vpop.f32.mrb[0].mxu0
    %v1651 = vpop.f32.mrb[0].mxu0
    %v1652 = vadd.f32 %v1576, %v1651
    %v1653 = vpop.f32.mrb[0].mxu0
    %1654 = vdwg.mxu0
    %v1655 = vlaneseq
    %v1656 = vshrl.u32 %v1655, 7
    %v1657 = vsub.s32 0, %v1656
    %v1658 = vrot.slane %v1498, %v1657
    %v1659 = vadd.f32 %v1641, %v1658
    %v1660 = vadd.f32 %v1644, %v1658
    %v1661 = vadd.f32 %v1649, %v1658
    %v1662 = vadd.f32 %v1652, %v1658
    %vm1663 = vcmp.gt.f32.partialorder %v1659, 0.0
    %vm1664 = vcmp.gt.f32.partialorder %v1660, 0.0
    %vm1665 = vcmp.gt.f32.partialorder %v1661, 0.0
    %vm1666 = vcmp.gt.f32.partialorder %v1662, 0.0
    %v1667 = vstv %s1499
    %v1668 = vmul.f32 %v1667, %v1659
    %v1669 = vmul.f32 %v1667, %v1660
    %v1670 = vmul.f32 %v1667, %v1661
    %v1671 = vmul.f32 %v1667, %v1662
    %v1672 = vsel %vm1663, %v1659, %v1668
    %v1673 = vsel %vm1664, %v1660, %v1669
    %v1674 = vsel %vm1665, %v1661, %v1670
    %v1675 = vsel %vm1666, %v1662, %v1671
    %v1676 = vpack.c.bf16 %v1673, %v1672
    %v1677 = vpack.c.bf16 %v1675, %v1674
    %s1678 = scalar_lea.vmem %s3, 320
    %v1679 = vld [vmem:[%s1678] sm:$0xf]
    %v1680 = vld [vmem:[%s1678 + $0x4] sm:$0xf]
    %v1681 = vld [vmem:[%s1678 + $0x8] sm:$0xf]
    %v1682 = vld [vmem:[%s1678 + $0xc] sm:$0xf]
    %v1683 = vld [vmem:[%s1678 + $0x10] sm:$0xf]
    %v1684 = vld [vmem:[%s1678 + $0x14] sm:$0xf]
    %v1685 = vld [vmem:[%s1678 + $0x18] sm:$0xf]
    %v1686 = vld [vmem:[%s1678 + $0x1c] sm:$0xf]
    %v1687 = vld [vmem:[%s1678 + $0x20] sm:$0xf]
    %v1688 = vld [vmem:[%s1678 + $0x24] sm:$0xf]
    %v1689 = vld [vmem:[%s1678 + $0x28] sm:$0xf]
    %v1690 = vld [vmem:[%s1678 + $0x2c] sm:$0xf]
    %v1691 = vld [vmem:[%s1678 + $0x30] sm:$0xf]
    %v1692 = vld [vmem:[%s1678 + $0x34] sm:$0xf]
    %v1693 = vld [vmem:[%s1678 + $0x38] sm:$0xf]
    %v1694 = vld [vmem:[%s1678 + $0x3c] sm:$0xf]
    %v1695 = vld [vmem:[%s4 + $0x5] sm:$0x1]
    %s1696 = sld [smem:[#allocation2 + $0x6]]
    %v1705 = vunpack.c.l.b16 %v1687
    %v1706 = vunpack.c.l.b16 %v1688
    %v1707 = vunpack.c.l.b16 %v1689
    %v1708 = vunpack.c.l.b16 %v1690
    %v1709 = vunpack.c.l.b16 %v1691
    %v1710 = vunpack.c.l.b16 %v1692
    %v1711 = vunpack.c.l.b16 %v1693
    %v1712 = vunpack.c.l.b16 %v1694
    %v1713 = vpack.c.b16 %v1706, %v1705
    %v1714 = vpack.c.b16 %v1708, %v1707
    %v1715 = vpack.c.b16 %v1710, %v1709
    %v1716 = vpack.c.b16 %v1712, %v1711
    %v1722 = vsel %vm455, %v1677, 0
    %1724 = vmatprep.subr.bf16.mxu0 0
    %1725 = vmatpush1.bf16.msra.mxu0 %v1713
    %1726 = vmatprep.subr.bf16.mxu0 0
    %1727 = vmatpush1.bf16.msra.mxu0 %v1714
    %1728 = vmatprep.subr.bf16.mxu0 0
    %1729 = vmatpush1.bf16.msra.mxu0 %v1715
    %1730 = vmatprep.subr.bf16.mxu0 0
    %1731 = vmatpush1.bf16.msra.mxu0 %v1716
    %1732 = vmatprep.subr.bf16.mxu0 0
    %1733 = vmatpush1.bf16.msra.mxu0 0
    %1734 = vmatprep.subr.bf16.mxu0 0
    %1735 = vmatpush1.bf16.msra.mxu0 0
    %1736 = vmatprep.subr.bf16.mxu0 0
    %1737 = vmatpush1.bf16.msra.mxu0 0
    %1738 = vmatprep.subr.bf16.mxu0 0
    %1739 = vmatpush1.bf16.msra.mxu0 0
    %1740 = vmatprep.subr.bf16.mxu0 0
    %1741 = vmatpush1.bf16.msra.mxu0 0
    %1742 = vmatprep.subr.bf16.mxu0 0
    %1743 = vmatpush1.bf16.msra.mxu0 0
    %1744 = vmatprep.subr.bf16.mxu0 0
    %1745 = vmatpush1.bf16.msra.mxu0 0
    %1746 = vmatprep.subr.bf16.mxu0 0
    %1747 = vmatpush1.bf16.msra.mxu0 0
    %1748 = vmatprep.subr.bf16.mxu0 0
    %1749 = vmatpush1.bf16.msra.mxu0 0
    %1750 = vmatprep.subr.bf16.mxu0 0
    %1751 = vmatpush1.bf16.msra.mxu0 0
    %1752 = vmatprep.subr.bf16.mxu0 0
    %1753 = vmatpush1.bf16.msra.mxu0 0
    %1754 = vmatprep.subr.bf16.mxu0 0
    %1755 = vmatpush1.bf16.msra.mxu0 0
    %1756 = vmatprep.mubr.bf16.mxu0 0
    %1757 = vmatmul.mubr.bf16.gmra.mrb[0].mxu0 %v1722
    %v1758 = vpop.f32.mrb[0].mxu0
    %v1759 = vadd.f32 0.0, %v1758
    %v1760 = vpop.f32.mrb[0].mxu0
    %v1761 = vpop.f32.mrb[0].mxu0
    %v1762 = vadd.f32 0.0, %v1761
    %v1763 = vpop.f32.mrb[0].mxu0
    %1764 = vdwg.mxu0
    %v1773 = vunpack.c.l.b16 %v1679
    %v1774 = vunpack.c.l.b16 %v1680
    %v1775 = vunpack.c.l.b16 %v1681
    %v1776 = vunpack.c.l.b16 %v1682
    %v1777 = vunpack.c.l.b16 %v1683
    %v1778 = vunpack.c.l.b16 %v1684
    %v1779 = vunpack.c.l.b16 %v1685
    %v1780 = vunpack.c.l.b16 %v1686
    %v1781 = vpack.c.b16 %v1774, %v1773
    %v1782 = vpack.c.b16 %v1776, %v1775
    %v1783 = vpack.c.b16 %v1778, %v1777
    %v1784 = vpack.c.b16 %v1780, %v1779
    %v1790 = vsel %vm455, %v1676, 0
    %1792 = vmatprep.subr.bf16.mxu0 0
    %1793 = vmatpush1.bf16.msra.mxu0 %v1781
    %1794 = vmatprep.subr.bf16.mxu0 0
    %1795 = vmatpush1.bf16.msra.mxu0 %v1782
    %1796 = vmatprep.subr.bf16.mxu0 0
    %1797 = vmatpush1.bf16.msra.mxu0 %v1783
    %1798 = vmatprep.subr.bf16.mxu0 0
    %1799 = vmatpush1.bf16.msra.mxu0 %v1784
    %1800 = vmatprep.subr.bf16.mxu0 0
    %1801 = vmatpush1.bf16.msra.mxu0 0
    %1802 = vmatprep.subr.bf16.mxu0 0
    %1803 = vmatpush1.bf16.msra.mxu0 0
    %1804 = vmatprep.subr.bf16.mxu0 0
    %1805 = vmatpush1.bf16.msra.mxu0 0
    %1806 = vmatprep.subr.bf16.mxu0 0
    %1807 = vmatpush1.bf16.msra.mxu0 0
    %1808 = vmatprep.subr.bf16.mxu0 0
    %1809 = vmatpush1.bf16.msra.mxu0 0
    %1810 = vmatprep.subr.bf16.mxu0 0
    %1811 = vmatpush1.bf16.msra.mxu0 0
    %1812 = vmatprep.subr.bf16.mxu0 0
    %1813 = vmatpush1.bf16.msra.mxu0 0
    %1814 = vmatprep.subr.bf16.mxu0 0
    %1815 = vmatpush1.bf16.msra.mxu0 0
    %1816 = vmatprep.subr.bf16.mxu0 0
    %1817 = vmatpush1.bf16.msra.mxu0 0
    %1818 = vmatprep.subr.bf16.mxu0 0
    %1819 = vmatpush1.bf16.msra.mxu0 0
    %1820 = vmatprep.subr.bf16.mxu0 0
    %1821 = vmatpush1.bf16.msra.mxu0 0
    %1822 = vmatprep.subr.bf16.mxu0 0
    %1823 = vmatpush1.bf16.msra.mxu0 0
    %1824 = vmatprep.mubr.bf16.mxu0 0
    %1825 = vmatmul.mubr.bf16.gmra.mrb[0].mxu0 %v1790
    %v1826 = vpop.f32.mrb[0].mxu0
    %v1827 = vadd.f32 %v1759, %v1826
    %v1828 = vpop.f32.mrb[0].mxu0
    %v1829 = vpop.f32.mrb[0].mxu0
    %v1830 = vadd.f32 %v1762, %v1829
    %v1831 = vpop.f32.mrb[0].mxu0
    %1832 = vdwg.mxu0
    %v1833 = vlaneseq
    %v1834 = vshrl.u32 %v1833, 7
    %v1835 = vsub.s32 0, %v1834
    %v1836 = vrot.slane %v1695, %v1835
    %v1837 = vadd.f32 %v1827, %v1836
    %v1838 = vadd.f32 %v1830, %v1836
    %vm1839 = vcmp.gt.f32.partialorder %v1837, 0.0
    %vm1840 = vcmp.gt.f32.partialorder %v1838, 0.0
    %v1841 = vstv %s1696
    %v1842 = vmul.f32 %v1841, %v1837
    %v1843 = vmul.f32 %v1841, %v1838
    %v1844 = vsel %vm1839, %v1837, %v1842
    %v1845 = vsel %vm1840, %v1838, %v1843
    %v1846 = vpack.c.bf16 %v1845, %v1844
    %v1847 = vld [vmem:[%s6] sm:$0xf]
    %v1848 = vld [vmem:[%s6 + $0x4] sm:$0xf]
    %v1849 = vld [vmem:[%s6 + $0x8] sm:$0xf]
    %v1850 = vld [vmem:[%s6 + $0xc] sm:$0xf]
    %v1851 = vld [vmem:[%s6 + $0x10] sm:$0xf]
    %v1852 = vld [vmem:[%s6 + $0x14] sm:$0xf]
    %v1853 = vld [vmem:[%s6 + $0x18] sm:$0xf]
    %v1854 = vld [vmem:[%s6 + $0x1c] sm:$0xf]
    %v1855 = vld [vmem:[%s7] sm:$0x1]
    %v1857 = vlaneseq
    %v1858 = vshrl.u32 %v1857, 7
    %v1859 = vsub.s32 0, %v1858
    %v1860 = vrot.slane %v1855, %v1859
    %v1870 = vunpack.c.l.b16 %v1847
    %v1871 = vunpack.c.l.b16 %v1848
    %v1872 = vunpack.c.l.b16 %v1849
    %v1873 = vunpack.c.l.b16 %v1850
    %v1874 = vunpack.c.l.b16 %v1851
    %v1875 = vunpack.c.l.b16 %v1852
    %v1876 = vunpack.c.l.b16 %v1853
    %v1877 = vunpack.c.l.b16 %v1854
    %v1878 = vpack.c.b16 %v1871, %v1870
    %v1879 = vpack.c.b16 %v1873, %v1872
    %v1880 = vpack.c.b16 %v1875, %v1874
    %v1881 = vpack.c.b16 %v1877, %v1876
    %v1887 = vsel %vm455, %v1846, 0
    %1889 = vmatprep.subr.bf16.mxu0 0
    %1890 = vmatpush1.bf16.msra.mxu0 %v1878
    %1891 = vmatprep.subr.bf16.mxu0 0
    %1892 = vmatpush1.bf16.msra.mxu0 %v1879
    %1893 = vmatprep.subr.bf16.mxu0 0
    %1894 = vmatpush1.bf16.msra.mxu0 %v1880
    %1895 = vmatprep.subr.bf16.mxu0 0
    %1896 = vmatpush1.bf16.msra.mxu0 %v1881
    %1897 = vmatprep.subr.bf16.mxu0 0
    %1898 = vmatpush1.bf16.msra.mxu0 0
    %1899 = vmatprep.subr.bf16.mxu0 0
    %1900 = vmatpush1.bf16.msra.mxu0 0
    %1901 = vmatprep.subr.bf16.mxu0 0
    %1902 = vmatpush1.bf16.msra.mxu0 0
    %1903 = vmatprep.subr.bf16.mxu0 0
    %1904 = vmatpush1.bf16.msra.mxu0 0
    %1905 = vmatprep.subr.bf16.mxu0 0
    %1906 = vmatpush1.bf16.msra.mxu0 0
    %1907 = vmatprep.subr.bf16.mxu0 0
    %1908 = vmatpush1.bf16.msra.mxu0 0
    %1909 = vmatprep.subr.bf16.mxu0 0
    %1910 = vmatpush1.bf16.msra.mxu0 0
    %1911 = vmatprep.subr.bf16.mxu0 0
    %1912 = vmatpush1.bf16.msra.mxu0 0
    %1913 = vmatprep.subr.bf16.mxu0 0
    %1914 = vmatpush1.bf16.msra.mxu0 0
    %1915 = vmatprep.subr.bf16.mxu0 0
    %1916 = vmatpush1.bf16.msra.mxu0 0
    %1917 = vmatprep.subr.bf16.mxu0 0
    %1918 = vmatpush1.bf16.msra.mxu0 0
    %1919 = vmatprep.subr.bf16.mxu0 0
    %1920 = vmatpush1.bf16.msra.mxu0 0
    %1921 = vmatprep.mubr.bf16.mxu0 0
    %1922 = vmatmul.mubr.bf16.gmra.mrb[0].mxu0 %v1887
    %v1923 = vpop.f32.mrb[0].mxu0
    %v1924 = vadd.f32 %v1860, %v1923
    %v1925 = vpop.f32.mrb[0].mxu0
    %v1926 = vpop.f32.mrb[0].mxu0
    %v1927 = vadd.f32 %v1860, %v1926
    %v1928 = vpop.f32.mrb[0].mxu0
    %1929 = vdwg.mxu0
    %v1930 = vmax.f32 %v1924, 0.0
    %v1931 = vmax.f32 %v1927, 0.0
    %v1932 = vpack.c.bf16 %v1931, %v1930
    %v1933 = vld [vmem:[%s8] sm:$0xf]
    %v1934 = vld [vmem:[%s8 + $0x4] sm:$0xf]
    %v1935 = vld [vmem:[%s8 + $0x8] sm:$0xf]
    %v1936 = vld [vmem:[%s8 + $0xc] sm:$0xf]
    %v1937 = vld [vmem:[%s9] sm:$0x1]
    %v1939 = vlaneseq
    %v1940 = vshrl.u32 %v1939, 7
    %v1941 = vsub.s32 0, %v1940
    %v1942 = vrot.slane %v1937, %v1941
    %v1948 = vunpack.c.l.b16 %v1933
    %v1949 = vunpack.c.l.b16 %v1934
    %v1950 = vunpack.c.l.b16 %v1935
    %v1951 = vunpack.c.l.b16 %v1936
    %v1952 = vpack.c.b16 %v1949, %v1948
    %v1953 = vpack.c.b16 %v1951, %v1950
    %v1957 = vsel %vm123, %v1932, 0
    %1959 = vmatprep.subr.bf16.mxu0 0
    %1960 = vmatpush1.bf16.msra.mxu0 %v1952
    %1961 = vmatprep.subr.bf16.mxu0 0
    %1962 = vmatpush1.bf16.msra.mxu0 %v1953
    %1963 = vmatprep.subr.bf16.mxu0 0
    %1964 = vmatpush1.bf16.msra.mxu0 0
    %1965 = vmatprep.subr.bf16.mxu0 0
    %1966 = vmatpush1.bf16.msra.mxu0 0
    %1967 = vmatprep.subr.bf16.mxu0 0
    %1968 = vmatpush1.bf16.msra.mxu0 0
    %1969 = vmatprep.subr.bf16.mxu0 0
    %1970 = vmatpush1.bf16.msra.mxu0 0
    %1971 = vmatprep.subr.bf16.mxu0 0
    %1972 = vmatpush1.bf16.msra.mxu0 0
    %1973 = vmatprep.subr.bf16.mxu0 0
    %1974 = vmatpush1.bf16.msra.mxu0 0
    %1975 = vmatprep.subr.bf16.mxu0 0
    %1976 = vmatpush1.bf16.msra.mxu0 0
    %1977 = vmatprep.subr.bf16.mxu0 0
    %1978 = vmatpush1.bf16.msra.mxu0 0
    %1979 = vmatprep.subr.bf16.mxu0 0
    %1980 = vmatpush1.bf16.msra.mxu0 0
    %1981 = vmatprep.subr.bf16.mxu0 0
    %1982 = vmatpush1.bf16.msra.mxu0 0
    %1983 = vmatprep.subr.bf16.mxu0 0
    %1984 = vmatpush1.bf16.msra.mxu0 0
    %1985 = vmatprep.subr.bf16.mxu0 0
    %1986 = vmatpush1.bf16.msra.mxu0 0
    %1987 = vmatprep.subr.bf16.mxu0 0
    %1988 = vmatpush1.bf16.msra.mxu0 0
    %1989 = vmatprep.subr.bf16.mxu0 0
    %1990 = vmatpush1.bf16.msra.mxu0 0
    %1991 = vmatprep.mubr.bf16.mxu0 0
    %1992 = vmatmul.mubr.bf16.gmra.mrb[0].mxu0 %v1957
    %v1993 = vpop.f32.mrb[0].mxu0
    %v1994 = vadd.f32 %v1942, %v1993
    %v1995 = vpop.f32.mrb[0].mxu0
    %v1996 = vpop.f32.mrb[0].mxu0
    %v1997 = vadd.f32 %v1942, %v1996
    %v1998 = vpop.f32.mrb[0].mxu0
    %1999 = vdwg.mxu0
    %2000 = vst [vmem:[#allocation5] sm:$0xff] %v1994
    %2001 = vst [vmem:[#allocation5 + $0x8] sm:$0xff] %v1997
    // Predicated region
    $region46: #{tpu_custom_call.1} parent=1 // pred_check
      _
    $region47: #{tpu_custom_call.1} parent=1 // pred_check_branch
      %2003 = sbr.rel (0) target = $region49
    $region48: #{tpu_custom_call.1} parent=1 // pred_region
      %s2005 = ssub.s32 256, 256
      %2006 = vsyncadd [#allocation3], %s2005
      %s2007 = sshll.u32 [#allocation5], 4
      %s2008 = int_to_ptr.vmem [resolvable:$true] %s2007
      %2013 = dma.vmem_to_hbm [thread:$0]  %s2008, 256, %s10, [#allocation3], 128, 128, 8
    $region49: #{tpu_custom_call.1} parent=1 // pred_fallthru
      _
    // Predicated region
    $region50: #{tpu_custom_call.1} parent=1 // pred_check
      _
    $region51: #{tpu_custom_call.1} parent=1 // pred_check_branch
      %2015 = sbr.rel (0) target = $region53
    $region52: #{tpu_custom_call.1} parent=1 // pred_region
      %2016 = dma.done [#allocation3], 256
    $region53: #{tpu_custom_call.1} parent=1 // pred_fallthru
      _
    %2017 = vsyncpa [#allocation3], 1
    %2018 = vsyncpa [#allocation4], 1

</llo_original>
